<compile_context>
chip_gen: v5e
topology: v5e:2x2
jax: 0.10.0
libtpu: 0.0.40
codegen_flags: <defaults>
</compile_context>

<pallas_src>
import math

import jax
import jax.numpy as jnp
from jax import lax
from jax.experimental import pallas as pl
from jax.experimental.pallas import tpu as pltpu


def _mirror_kernel(flags_ref, m_hw_ref, l_x_ref, l_y_ref,
                   x_ref, y_ref, ox_ref, oy_ref):
    """One grid step: permute one lane-dense (rows, H*W) slab of X and of Y.

    flags_ref : SMEM int32[3] = [flip_D, flip_H, flip_W] (scalar-prefetched).
    m_hw_ref  : (H*W, H*W) 0/1 matrix kron(M_H, M_W); right-multiply = H/W flip.
    l_*_ref   : (rows, rows) 0/1 matrix kron(I, M_D); left-multiply = D flip
                (identity when flip_D == 0).
    x_ref/ox_ref, y_ref/oy_ref : (rows, H*W) slabs made of whole channel groups,
                so no flip ever crosses a block boundary.
    """
    hw_flip = (flags_ref[1] != 0) | (flags_ref[2] != 0)

    def permute(src_ref, dst_ref, l_ref):
        if (src_ref.dtype == jnp.float32
                or not jnp.issubdtype(src_ref.dtype, jnp.floating)):
            # f32 (and integer-via-f32) path.  HIGHEST keeps the 0/1 permutation
            # bit-exact for f32; do NOT lower to DEFAULT (lossy bf16 rounding).
            # TODO(synk): integer labels with |v| >= 2**24 need an XLU reversal path.
            cdtype, prec = jnp.float32, lax.Precision.HIGHEST
        else:
            # bf16/f16 path: 0/1-matrix x bf16 is exact at default MXU precision;
            # skip the f32 round-trip (matters most on v5e: no bf16 VPU).
            cdtype, prec = src_ref.dtype, None

        data = src_ref[...].astype(cdtype)
        m_l = l_ref[...].astype(cdtype)

        @pl.when(hw_flip)
        def _():
            t = jnp.dot(data, m_hw_ref[...].astype(cdtype),
                        preferred_element_type=jnp.float32, precision=prec)
            o = jnp.dot(m_l, t.astype(cdtype),
                        preferred_element_type=jnp.float32, precision=prec)
            dst_ref[...] = o.astype(dst_ref.dtype)

        @pl.when(jnp.logical_not(hw_flip))
        def _():
            # Only a (possible) D flip: a single tiny (rows x rows) permutation.
            o = jnp.dot(m_l, data,
                        preferred_element_type=jnp.float32, precision=prec)
            dst_ref[...] = o.astype(dst_ref.dtype)

    permute(x_ref, ox_ref, l_x_ref)
    permute(y_ref, oy_ref, l_y_ref)


def _axis_matrix(flag, n):
    """(n, n) f32 permutation: identity if flag == 0, anti-identity (reverse) if 1."""
    eye = jnp.eye(n, dtype=jnp.float32)
    f = flag.astype(jnp.float32)
    return f * eye[::-1] + (1.0 - f) * eye


def _choose_num_steps(bc_x, bc_y, d, hw, itemsize_x, itemsize_y):
    """Number of grid steps over the fused (B*C) axis.

    Each step handles (B*C)/num_steps whole channel groups of shape (D, H*W),
    so the D/H/W flips never cross block boundaries.  Constraints:
      * num_steps divides B*C of both X and Y (uniform blocks),
      * each block's sublane extent (bc/ns)*D is 8-aligned (or ns == 1,
        i.e. block == full array, which is always legal),
      * keep >= 2 steps when possible so v7x can shard over its 2 TensorCores,
      * keep the X block under ~4 MiB so double-buffered in+out blocks stay
        well inside v7x's 64 MiB VMEM (v5e/v6e have 128 MiB).
    """
    max_block_bytes = 4 * 1024 * 1024
    g = math.gcd(bc_x, bc_y)

    def legal(ns):
        if g % ns:
            return False
        rx, ry = (bc_x // ns) * d, (bc_y // ns) * d
        return ns == 1 or (rx % 8 == 0 and ry % 8 == 0)

    def x_block_bytes(ns):
        return (bc_x // ns) * d * hw * itemsize_x

    multi = [ns for ns in range(2, g + 1) if legal(ns)]
    for ns in multi:                       # smallest ns >= 2 -> biggest blocks
        if x_block_bytes(ns) <= max_block_bytes:
            return ns
    if multi:                              # everything too big: take the most steps we can
        return multi[-1]
    return 1


def _fused_flip_call(flags, x2, y2, d, h, w):
    """One pallas_call flipping both volumes, laid out as (B*C*D, H*W)."""
    hw = h * w
    n_x, hw_x = x2.shape
    n_y, hw_y = y2.shape
    assert hw_x == hw and hw_y == hw
    bc_x, bc_y = n_x // d, n_y // d

    ns = _choose_num_steps(bc_x, bc_y, d, hw, x2.dtype.itemsize, y2.dtype.itemsize)
    k_x, k_y = bc_x // ns, bc_y // ns
    r_x, r_y = k_x * d, k_y * d                      # rows per block

    # Hoisted 0/1 permutation operands (built once per call, outside the kernel).
    # TODO(synk): for large H*W the (H*W)^2 kron operand becomes impractical;
    # an XLU reversal path should replace the MXU permutation there.
    m_d = _axis_matrix(flags[0], d)
    m_hw = jnp.kron(_axis_matrix(flags[1], h), _axis_matrix(flags[2], w))   # (HW, HW)
    l_x = jnp.kron(jnp.eye(k_x, dtype=jnp.float32), m_d)                    # (r_x, r_x)
    l_y = jnp.kron(jnp.eye(k_y, dtype=jnp.float32), m_d)                    # (r_y, r_y)

    row_map = lambda i, flags_ref: (i, 0)
    mat_map = lambda i, flags_ref: (0, 0)

    # HBM-bound op: report bytes, not (multi-pass) permutation-matmul flops.
    bytes_accessed = 2 * (x2.size * x2.dtype.itemsize + y2.size * y2.dtype.itemsize)
    cost = pl.CostEstimate(flops=0, transcendentals=0, bytes_accessed=bytes_accessed)

    # VMEM budget: double-buffered in+out blocks + resident permutation matrices.
    blk_bytes = r_x * hw * x2.dtype.itemsize + r_y * hw * y2.dtype.itemsize
    mat_bytes = (hw * hw + r_x * r_x + r_y * r_y) * 4
    needed = 4 * blk_bytes + 2 * mat_bytes
    vmem_limit = int(min(max(2 * needed, 32 * 1024 * 1024), 64 * 1024 * 1024))

    return pl.pallas_call(
        _mirror_kernel,
        out_shape=(jax.ShapeDtypeStruct(x2.shape, x2.dtype),
                   jax.ShapeDtypeStruct(y2.shape, y2.dtype)),
        grid_spec=pltpu.PrefetchScalarGridSpec(
            num_scalar_prefetch=1,
            grid=(ns,),
            in_specs=[
                pl.BlockSpec((hw, hw), mat_map),     # kron(M_H, M_W), resident
                pl.BlockSpec((r_x, r_x), mat_map),   # kron(I, M_D) for X blocks
                pl.BlockSpec((r_y, r_y), mat_map),   # kron(I, M_D) for Y blocks
                pl.BlockSpec((r_x, hw), row_map),    # X slab (whole channel groups)
                pl.BlockSpec((r_y, hw), row_map),    # Y slab
            ],
            out_specs=[
                pl.BlockSpec((r_x, hw), row_map),
                pl.BlockSpec((r_y, hw), row_map),
            ],
        ),
        compiler_params=pltpu.CompilerParams(
            dimension_semantics=("parallel",),       # >= 2 steps -> v7x 2-TC sharding
            vmem_limit_bytes=vmem_limit),
        cost_estimate=cost,
    )(flags, m_hw, l_x, l_y, x2, y2)


@jax.jit
def _mirror_apply(X, Y, flags):
    """Flip NCDHW tensors X and Y along (D, H, W) according to int32 flags[3]."""
    b, c, d, h, w = X.shape
    by, cy, dy, hy, wy = Y.shape
    assert (d, h, w) == (dy, hy, wy), "X and Y must share the (D, H, W) grid"

    # Lane-dense 2D views: rows = B*C*D, lanes = H*W (free contiguous reshapes).
    x2 = X.reshape(b * c * d, h * w)
    y2 = Y.reshape(by * cy * dy, hy * wy)

    def do_flip(args):
        f, xa, ya = args
        return _fused_flip_call(f, xa, ya, d, h, w)

    def no_flip(args):
        _, xa, ya = args
        return xa, ya

    # Short-circuit the all-zero-flags case (1/8 of random draws): a true no-op.
    ox2, oy2 = lax.cond(jnp.any(flags != 0), do_flip, no_flip, (flags, x2, y2))
    return ox2.reshape(X.shape), oy2.reshape(Y.shape)


def mirror_transform(data, key):
    """Pallas equivalent of MirrorTransform.forward.

    The torch module draws random.random() < 0.5 per spatial axis; here the
    three Bernoulli(0.5) flags are drawn from a JAX PRNG key and the same flips
    are applied to data['X'] and data['Y'] in a single fused kernel launch.
    """
    flags = jax.random.bernoulli(key, 0.5, (3,)).astype(jnp.int32)   # [D, H, W]
    out = dict(data)
    out['X'], out['Y'] = _mirror_apply(data['X'], data['Y'], flags)
    return out, flags


def _reference_flip(x, flags):
    out = x
    for ax, f in zip((-3, -2, -1), flags):
        if bool(f):
            out = jnp.flip(out, axis=ax)
    return out


if __name__ == "__main__":
    key = jax.random.PRNGKey(0)
    kx_, ky_, kflip = jax.random.split(key, 3)

    # X is (B=2, C=4, D=8, H=16, W=16) volumetric features,
    # Y is (B=2, C=1, D=8, H=16, W=16) labels sharing the spatial grid.
    X = jax.random.normal(kx_, (2, 4, 8, 16, 16), dtype=jnp.float32)
    Y = jax.random.normal(ky_, (2, 1, 8, 16, 16), dtype=jnp.float32)
    data = {'X': X, 'Y': Y}

    # Module-style call with random flags.
    out, flags = mirror_transform(data, kflip)
    jax.block_until_ready(out['X'])
    jax.block_until_ready(out['Y'])

    flags_host = tuple(int(v) for v in jax.device_get(flags))
    assert jnp.array_equal(out['X'], _reference_flip(X, flags_host)), "X flip mismatch"
    assert jnp.array_equal(out['Y'], _reference_flip(Y, flags_host)), "Y flip mismatch"

    # Exercise all explicit flag combinations (f32 path).
    for f in ((0, 0, 0), (1, 0, 0), (0, 1, 0), (0, 0, 1),
              (1, 1, 0), (1, 0, 1), (0, 1, 1), (1, 1, 1)):
        fl = jnp.array(f, dtype=jnp.int32)
        ox, oy = _mirror_apply(X, Y, fl)
        jax.block_until_ready(ox)
        assert jnp.array_equal(ox, _reference_flip(X, f)), f"X mismatch for flags {f}"
        assert jnp.array_equal(oy, _reference_flip(Y, f)), f"Y mismatch for flags {f}"

    # Exercise the bf16 (no-f32-round-trip) path as well.
    Xb, Yb = X.astype(jnp.bfloat16), Y.astype(jnp.bfloat16)
    fl = jnp.array((1, 1, 1), dtype=jnp.int32)
    oxb, oyb = _mirror_apply(Xb, Yb, fl)
    jax.block_until_ready(oxb)
    assert jnp.array_equal(oxb, _reference_flip(Xb, (1, 1, 1))), "bf16 X mismatch"
    assert jnp.array_equal(oyb, _reference_flip(Yb, (1, 1, 1))), "bf16 Y mismatch"

    print("KERNEL_OK")
</pallas_src>

<mosaic_0001>
module attributes {stable_mosaic.version = 11 : i64} {
  func.func @_mirror_kernel(%arg0: i32, %arg1: memref<3xi32, #tpu.memory_space<smem>>, %arg2: memref<256x256xf32, #tpu.memory_space<vmem>>, %arg3: memref<32x32xf32, #tpu.memory_space<vmem>>, %arg4: memref<8x8xf32, #tpu.memory_space<vmem>>, %arg5: memref<32x256xf32, #tpu.memory_space<vmem>>, %arg6: memref<8x256xf32, #tpu.memory_space<vmem>>, %arg7: memref<32x256xf32, #tpu.memory_space<vmem>>, %arg8: memref<8x256xf32, #tpu.memory_space<vmem>>) attributes {dimension_semantics = [#tpu.dimension_semantics<parallel>], iteration_bounds = array<i64: 2>, scalar_prefetch = 1 : i64, scratch_operands = 0 : i64, tpu.core_type = #tpu.core_type<tc>, window_params = [{pipeline_mode = #tpu.pipeline_mode<synchronous>, transform_indices = @transform_0, window_bounds = array<i64: 256, 256>}, {pipeline_mode = #tpu.pipeline_mode<synchronous>, transform_indices = @transform_1, window_bounds = array<i64: 32, 32>}, {pipeline_mode = #tpu.pipeline_mode<synchronous>, transform_indices = @transform_2, window_bounds = array<i64: 8, 8>}, {transform_indices = @transform_3, window_bounds = array<i64: 32, 256>}, {transform_indices = @transform_4, window_bounds = array<i64: 8, 256>}, {transform_indices = @transform_5, window_bounds = array<i64: 32, 256>}, {transform_indices = @transform_6, window_bounds = array<i64: 8, 256>}]} {
    %c1 = arith.constant 1 : index
    %0 = memref.load %arg1[%c1] : memref<3xi32, #tpu.memory_space<smem>>
    %c0_i32 = arith.constant 0 : i32
    %1 = arith.cmpi ne, %0, %c0_i32 : i32
    %c2 = arith.constant 2 : index
    %2 = memref.load %arg1[%c2] : memref<3xi32, #tpu.memory_space<smem>>
    %c0_i32_0 = arith.constant 0 : i32
    %3 = arith.cmpi ne, %2, %c0_i32_0 : i32
    %4 = arith.ori %1, %3 : i1
    %c0 = arith.constant 0 : index
    %c0_1 = arith.constant 0 : index
    %5 = vector.load %arg5[%c0, %c0_1] : memref<32x256xf32, #tpu.memory_space<vmem>>, vector<32x256xf32>
    %c0_2 = arith.constant 0 : index
    %c0_3 = arith.constant 0 : index
    %6 = vector.load %arg3[%c0_2, %c0_3] : memref<32x32xf32, #tpu.memory_space<vmem>>, vector<32x32xf32>
    %7 = arith.extui %4 : i1 to i32
    %c0_i32_4 = arith.constant 0 : i32
    %8 = arith.cmpi ne, %7, %c0_i32_4 : i32
    scf.if %8 {
      %c0_13 = arith.constant 0 : index
      %c0_14 = arith.constant 0 : index
      %19 = vector.load %arg2[%c0_13, %c0_14] : memref<256x256xf32, #tpu.memory_space<vmem>>, vector<256x256xf32>
      %cst = arith.constant dense<0.000000e+00> : vector<32x256xf32>
      %20 = tpu.matmul %5, %19, %cst {dimension_numbers = #tpu.dot_dimension_numbers<[1], [0], [0], [1], [0, 0, 1, 1], [], []>, precision = #tpu.contract_precision<fp32>} : vector<32x256xf32>, vector<256x256xf32>, vector<32x256xf32> -> vector<32x256xf32>
      %cst_15 = arith.constant dense<0.000000e+00> : vector<32x256xf32>
      %21 = tpu.matmul %6, %20, %cst_15 {dimension_numbers = #tpu.dot_dimension_numbers<[1], [0], [0], [1], [0, 0, 1, 1], [], []>, precision = #tpu.contract_precision<fp32>} : vector<32x32xf32>, vector<32x256xf32>, vector<32x256xf32> -> vector<32x256xf32>
      %c0_16 = arith.constant 0 : index
      %c0_17 = arith.constant 0 : index
      %22 = vector.load %arg7[%c0_16, %c0_17] : memref<32x256xf32, #tpu.memory_space<vmem>>, vector<32x256xf32>
      tpu.vector_store %arg7[%c0_16, %c0_17], %21 {strides = array<i32>} : memref<32x256xf32, #tpu.memory_space<vmem>>, vector<32x256xf32>,
    } else {
    }
    %true = arith.constant true
    %9 = arith.xori %4, %true : i1
    %10 = arith.extui %9 : i1 to i32
    %c0_i32_5 = arith.constant 0 : i32
    %11 = arith.cmpi ne, %10, %c0_i32_5 : i32
    scf.if %11 {
      %cst = arith.constant dense<0.000000e+00> : vector<32x256xf32>
      %19 = tpu.matmul %6, %5, %cst {dimension_numbers = #tpu.dot_dimension_numbers<[1], [0], [0], [1], [0, 0, 1, 1], [], []>, precision = #tpu.contract_precision<fp32>} : vector<32x32xf32>, vector<32x256xf32>, vector<32x256xf32> -> vector<32x256xf32>
      %c0_13 = arith.constant 0 : index
      %c0_14 = arith.constant 0 : index
      %20 = vector.load %arg7[%c0_13, %c0_14] : memref<32x256xf32, #tpu.memory_space<vmem>>, vector<32x256xf32>
      tpu.vector_store %arg7[%c0_13, %c0_14], %19 {strides = array<i32>} : memref<32x256xf32, #tpu.memory_space<vmem>>, vector<32x256xf32>,
    } else {
    }
    %c0_6 = arith.constant 0 : index
    %c0_7 = arith.constant 0 : index
    %12 = vector.load %arg6[%c0_6, %c0_7] : memref<8x256xf32, #tpu.memory_space<vmem>>, vector<8x256xf32>
    %c0_8 = arith.constant 0 : index
    %c0_9 = arith.constant 0 : index
    %13 = vector.load %arg4[%c0_8, %c0_9] : memref<8x8xf32, #tpu.memory_space<vmem>>, vector<8x8xf32>
    %14 = arith.extui %4 : i1 to i32
    %c0_i32_10 = arith.constant 0 : i32
    %15 = arith.cmpi ne, %14, %c0_i32_10 : i32
    scf.if %15 {
      %c0_13 = arith.constant 0 : index
      %c0_14 = arith.constant 0 : index
      %19 = vector.load %arg2[%c0_13, %c0_14] : memref<256x256xf32, #tpu.memory_space<vmem>>, vector<256x256xf32>
      %cst = arith.constant dense<0.000000e+00> : vector<8x256xf32>
      %20 = tpu.matmul %12, %19, %cst {dimension_numbers = #tpu.dot_dimension_numbers<[1], [0], [0], [1], [0, 0, 1, 1], [], []>, precision = #tpu.contract_precision<fp32>} : vector<8x256xf32>, vector<256x256xf32>, vector<8x256xf32> -> vector<8x256xf32>
      %cst_15 = arith.constant dense<0.000000e+00> : vector<8x256xf32>
      %21 = tpu.matmul %13, %20, %cst_15 {dimension_numbers = #tpu.dot_dimension_numbers<[1], [0], [0], [1], [0, 0, 1, 1], [], []>, precision = #tpu.contract_precision<fp32>} : vector<8x8xf32>, vector<8x256xf32>, vector<8x256xf32> -> vector<8x256xf32>
      %c0_16 = arith.constant 0 : index
      %c0_17 = arith.constant 0 : index
      %22 = vector.load %arg8[%c0_16, %c0_17] : memref<8x256xf32, #tpu.memory_space<vmem>>, vector<8x256xf32>
      tpu.vector_store %arg8[%c0_16, %c0_17], %21 {strides = array<i32>} : memref<8x256xf32, #tpu.memory_space<vmem>>, vector<8x256xf32>,
    } else {
    }
    %true_11 = arith.constant true
    %16 = arith.xori %4, %true_11 : i1
    %17 = arith.extui %16 : i1 to i32
    %c0_i32_12 = arith.constant 0 : i32
    %18 = arith.cmpi ne, %17, %c0_i32_12 : i32
    scf.if %18 {
      %cst = arith.constant dense<0.000000e+00> : vector<8x256xf32>
      %19 = tpu.matmul %13, %12, %cst {dimension_numbers = #tpu.dot_dimension_numbers<[1], [0], [0], [1], [0, 0, 1, 1], [], []>, precision = #tpu.contract_precision<fp32>} : vector<8x8xf32>, vector<8x256xf32>, vector<8x256xf32> -> vector<8x256xf32>
      %c0_13 = arith.constant 0 : index
      %c0_14 = arith.constant 0 : index
      %20 = vector.load %arg8[%c0_13, %c0_14] : memref<8x256xf32, #tpu.memory_space<vmem>>, vector<8x256xf32>
      tpu.vector_store %arg8[%c0_13, %c0_14], %19 {strides = array<i32>} : memref<8x256xf32, #tpu.memory_space<vmem>>, vector<8x256xf32>,
    } else {
    }
    return
  }
  func.func @transform_0(%arg0: i32, %arg1: memref<3xi32, #tpu.memory_space<smem>>) -> (i32, i32) {
    %c0_i32 = arith.constant 0 : i32
    %c0_i32_0 = arith.constant 0 : i32
    %c0_i32_1 = arith.constant 0 : i32
    return %c0_i32, %c0_i32_0 : i32, i32
  }
  func.func @transform_1(%arg0: i32, %arg1: memref<3xi32, #tpu.memory_space<smem>>) -> (i32, i32) {
    %c0_i32 = arith.constant 0 : i32
    %c0_i32_0 = arith.constant 0 : i32
    %c0_i32_1 = arith.constant 0 : i32
    return %c0_i32, %c0_i32_0 : i32, i32
  }
  func.func @transform_2(%arg0: i32, %arg1: memref<3xi32, #tpu.memory_space<smem>>) -> (i32, i32) {
    %c0_i32 = arith.constant 0 : i32
    %c0_i32_0 = arith.constant 0 : i32
    %c0_i32_1 = arith.constant 0 : i32
    return %c0_i32, %c0_i32_0 : i32, i32
  }
  func.func @transform_3(%arg0: i32, %arg1: memref<3xi32, #tpu.memory_space<smem>>) -> (i32, i32) {
    %c0_i32 = arith.constant 0 : i32
    %c0_i32_0 = arith.constant 0 : i32
    return %arg0, %c0_i32 : i32, i32
  }
  func.func @transform_4(%arg0: i32, %arg1: memref<3xi32, #tpu.memory_space<smem>>) -> (i32, i32) {
    %c0_i32 = arith.constant 0 : i32
    %c0_i32_0 = arith.constant 0 : i32
    return %arg0, %c0_i32 : i32, i32
  }
  func.func @transform_5(%arg0: i32, %arg1: memref<3xi32, #tpu.memory_space<smem>>) -> (i32, i32) {
    %c0_i32 = arith.constant 0 : i32
    %c0_i32_0 = arith.constant 0 : i32
    return %arg0, %c0_i32 : i32, i32
  }
  func.func @transform_6(%arg0: i32, %arg1: memref<3xi32, #tpu.memory_space<smem>>) -> (i32, i32) {
    %c0_i32 = arith.constant 0 : i32
    %c0_i32_0 = arith.constant 0 : i32
    return %arg0, %c0_i32 : i32, i32
  }
}

</mosaic_0001>

<llo_original>
// kernel: branch_1_fun.1
$region0: #{branch_1_fun.1}
  #allocation0 [shape = 'u32[]', space=smem, size = 0x4, offset = 0x4, fixed_abs, tag = 'smem constant byte address 0x4 - core index']
  #allocation1 [shape = 'u32[72,128]{1,0:T(1,128)}', space=vmem, size = 0x9000, scoped, tag = 'internal scratch']
  #allocation2 [shape = 's32[1]{0}', space=sflag, size = 0x4, scoped, tag = 'scoped memory for branch_1_fun.1']
  #allocation3 [shape = 'u8[512]{0}', space=smem, size = 0x200, scoped, tag = 'prefetched SMEM operand 0']
  %s0 = inlined_call_operand.vmem [shape: s32[3], index: 0, kind: input, shape index: {}]
  %s1 = inlined_call_operand.vmem [shape: f32[256,256], index: 1, kind: input, shape index: {}]
  %s2 = inlined_call_operand.vmem [shape: f32[32,32], index: 2, kind: input, shape index: {}]
  %s3 = inlined_call_operand.vmem [shape: f32[8,8], index: 3, kind: input, shape index: {}]
  %s4 = inlined_call_operand.vmem [shape: f32[64,256], index: 4, kind: input, shape index: {}]
  %s5 = inlined_call_operand.vmem [shape: f32[16,256], index: 5, kind: input, shape index: {}]
  %s6 = inlined_call_operand.hbm [shape: f32[64,256], index: 6, kind: output, shape index: {0}]
  %s7 = inlined_call_operand.hbm [shape: f32[16,256], index: 7, kind: output, shape index: {1}]
  %8 = xla_tuple %s6, %s7
  %s9 = sld [smem:[#allocation0]]
  $region77: #{branch_1_fun.1} parent=0
    _
  %s11 = ssub.s32 1, %s9
  %s12 = scalar_select 0, %s11, %s9
  %s14 = sshll.u32 %s0, 4
  %s15 = int_to_ptr.vmem [resolvable:$true] %s14
  %17 = dma.vmem_to_smem %s15, 16, [#allocation3], [#allocation2]
  %19 = dma.done [#allocation2], 16
  %20 = sfence
  $region1: #{branch_1_fun.1} parent=0
    #allocation4 [shape = 'u8[65536]{0}', space=vmem, size = 0x10000, scoped, tag = 'output window, operand 0']
    #allocation5 [shape = 's32[2]{0}', space=sflag, size = 0x8, scoped, tag = 'scoped memory for branch_1_fun.1']
    #allocation6 [shape = 'u8[16384]{0}', space=vmem, size = 0x4000, scoped, tag = 'output window, operand 1']
    #allocation7 [shape = 's32[2]{0}', space=sflag, size = 0x8, scoped, tag = 'scoped memory for branch_1_fun.1']
    %21 = vsyncpa [#allocation5], 0
    %s22 = scalar_lea.sflag [#allocation5], 1
    %23 = vsyncpa %s22, 0
    %24 = vsyncpa [#allocation7], 0
    %s25 = scalar_lea.sflag [#allocation7], 1
    %26 = vsyncpa %s25, 0
    loop: start=0, step=1, limit=4
    $region2: #{branch_1_fun.1} parent=1 // loop_pre_header
      _
    $region3: #{branch_1_fun.1} parent=1 // loop_header
      %s28 = sphi 0, %s32
      %p29 = scmp.ge.s32.totalorder %s28, 4
      %s36 = sphi 0, %s36
      %s38 = sphi 0, %s36
      %s39 = sphi 0, %s38
      %s53 = sphi 0, %s39
      %s57 = sphi 0, %s57
      %s59 = sphi 0, %s57
      %s60 = sphi 0, %s59
      %s74 = sphi 0, %s60
      %s78 = sphi 0, %s78
      %s80 = sphi 0, %s78
      %s81 = sphi 0, %s80
      %s95 = sphi 0, %s81
      %s101 = sphi 0, %s103
      %s104 = sphi 0, %s101
      %s105 = sphi 0, %s104
      %s121 = sphi 0, %s105
      %s127 = sphi 0, %s129
      %s130 = sphi 0, %s127
      %s131 = sphi 0, %s130
      %s147 = sphi 0, %s131
      %s153 = sphi 0, %s155
      %s156 = sphi 0, %s153
      %s157 = sphi 0, %s156
      %s173 = sphi 0, %s157
      %s179 = sphi 0, %s181
      %s182 = sphi 0, %s179
      %s183 = sphi 0, %s182
      %s199 = sphi 0, %s183
    $region4: #{branch_1_fun.1} parent=1 // loop_header_branch
      %31 = sbr.rel (%p29) target = $region8
    $region5: #{branch_1_fun.1} parent=1 // loop_body
      %s33 = ssub.s32 %s28, 1
      %s34 = ssub.s32 %s28, 2
      %s35 = sadd.s32 %s28, 1
      %s37 = sadd.s32 %s36, 1
      %p40 = scmp.eq.s32.totalorder %s28, 1
      %p41 = scmp.ne.s32.totalorder %s36, %s38
      %p42 = scmp.eq.s32.totalorder %s28, 0
      %p43 = por %p41, %p42
      %p44 = scmp.ne.s32.totalorder %s36, %s38
      %p45 = scmp.eq.s32.totalorder %s33, 1
      %p46 = por %p44, %p45
      %p47 = scmp.ne.s32.totalorder %s38, %s39
      %p48 = scmp.eq.s32.totalorder %s33, 0
      %p49 = por %p47, %p48
      %p50 = scmp.ne.s32.totalorder %s38, %s39
      %p51 = scmp.eq.s32.totalorder %s34, 1
      %p52 = por %p50, %p51
      %p54 = scmp.ne.s32.totalorder %s39, %s53
      %p55 = scmp.eq.s32.totalorder %s34, 0
      %p56 = por %p54, %p55
      %s58 = sadd.s32 %s57, 1
      %p61 = scmp.eq.s32.totalorder %s28, 1
      %p62 = scmp.ne.s32.totalorder %s57, %s59
      %p63 = scmp.eq.s32.totalorder %s28, 0
      %p64 = por %p62, %p63
      %p65 = scmp.ne.s32.totalorder %s57, %s59
      %p66 = scmp.eq.s32.totalorder %s33, 1
      %p67 = por %p65, %p66
      %p68 = scmp.ne.s32.totalorder %s59, %s60
      %p69 = scmp.eq.s32.totalorder %s33, 0
      %p70 = por %p68, %p69
      %p71 = scmp.ne.s32.totalorder %s59, %s60
      %p72 = scmp.eq.s32.totalorder %s34, 1
      %p73 = por %p71, %p72
      %p75 = scmp.ne.s32.totalorder %s60, %s74
      %p76 = scmp.eq.s32.totalorder %s34, 0
      %p77 = por %p75, %p76
      %s79 = sadd.s32 %s78, 1
      %p82 = scmp.eq.s32.totalorder %s28, 1
      %p83 = scmp.ne.s32.totalorder %s78, %s80
      %p84 = scmp.eq.s32.totalorder %s28, 0
      %p85 = por %p83, %p84
      %p86 = scmp.ne.s32.totalorder %s78, %s80
      %p87 = scmp.eq.s32.totalorder %s33, 1
      %p88 = por %p86, %p87
      %p89 = scmp.ne.s32.totalorder %s80, %s81
      %p90 = scmp.eq.s32.totalorder %s33, 0
      %p91 = por %p89, %p90
      %p92 = scmp.ne.s32.totalorder %s80, %s81
      %p93 = scmp.eq.s32.totalorder %s34, 1
      %p94 = por %p92, %p93
      %p96 = scmp.ne.s32.totalorder %s81, %s95
      %p97 = scmp.eq.s32.totalorder %s34, 0
      %p98 = por %p96, %p97
      %s99 = ssub.s32 %s28, %s35
      %p100 = scmp.eq.s32.totalorder %s99, 0
      %s102 = sadd.s32 %s101, 1
      %s103 = scalar_select %p100, %s101, %s102
      %p106 = pneg %p100
      %p107 = scmp.eq.s32.totalorder %s28, 1
      %p108 = por %p106, %p107
      %p109 = scmp.ne.s32.totalorder %s101, %s104
      %p110 = scmp.eq.s32.totalorder %s28, 0
      %p111 = por %p109, %p110
      %p112 = scmp.ne.s32.totalorder %s101, %s104
      %p113 = scmp.eq.s32.totalorder %s33, 1
      %p114 = por %p112, %p113
      %p115 = scmp.ne.s32.totalorder %s104, %s105
      %p116 = scmp.eq.s32.totalorder %s33, 0
      %p117 = por %p115, %p116
      %p118 = scmp.ne.s32.totalorder %s104, %s105
      %p119 = scmp.eq.s32.totalorder %s34, 1
      %p120 = por %p118, %p119
      %p122 = scmp.ne.s32.totalorder %s105, %s121
      %p123 = scmp.eq.s32.totalorder %s34, 0
      %p124 = por %p122, %p123
      %s125 = ssub.s32 %s28, %s35
      %p126 = scmp.eq.s32.totalorder %s125, 0
      %s128 = sadd.s32 %s127, 1
      %s129 = scalar_select %p126, %s127, %s128
      %p132 = pneg %p126
      %p133 = scmp.eq.s32.totalorder %s28, 1
      %p134 = por %p132, %p133
      %p135 = scmp.ne.s32.totalorder %s127, %s130
      %p136 = scmp.eq.s32.totalorder %s28, 0
      %p137 = por %p135, %p136
      %p138 = scmp.ne.s32.totalorder %s127, %s130
      %p139 = scmp.eq.s32.totalorder %s33, 1
      %p140 = por %p138, %p139
      %p141 = scmp.ne.s32.totalorder %s130, %s131
      %p142 = scmp.eq.s32.totalorder %s33, 0
      %p143 = por %p141, %p142
      %p144 = scmp.ne.s32.totalorder %s130, %s131
      %p145 = scmp.eq.s32.totalorder %s34, 1
      %p146 = por %p144, %p145
      %p148 = scmp.ne.s32.totalorder %s131, %s147
      %p149 = scmp.eq.s32.totalorder %s34, 0
      %p150 = por %p148, %p149
      %s151 = ssub.s32 %s28, %s35
      %p152 = scmp.eq.s32.totalorder %s151, 0
      %s154 = sadd.s32 %s153, 1
      %s155 = scalar_select %p152, %s153, %s154
      %p158 = pneg %p152
      %p159 = scmp.eq.s32.totalorder %s28, 1
      %p160 = por %p158, %p159
      %p161 = scmp.ne.s32.totalorder %s153, %s156
      %p162 = scmp.eq.s32.totalorder %s28, 0
      %p163 = por %p161, %p162
      %p164 = scmp.ne.s32.totalorder %s153, %s156
      %p165 = scmp.eq.s32.totalorder %s33, 1
      %p166 = por %p164, %p165
      %p167 = scmp.ne.s32.totalorder %s156, %s157
      %p168 = scmp.eq.s32.totalorder %s33, 0
      %p169 = por %p167, %p168
      %p170 = scmp.ne.s32.totalorder %s156, %s157
      %p171 = scmp.eq.s32.totalorder %s34, 1
      %p172 = por %p170, %p171
      %p174 = scmp.ne.s32.totalorder %s157, %s173
      %p175 = scmp.eq.s32.totalorder %s34, 0
      %p176 = por %p174, %p175
      %s177 = ssub.s32 %s28, %s35
      %p178 = scmp.eq.s32.totalorder %s177, 0
      %s180 = sadd.s32 %s179, 1
      %s181 = scalar_select %p178, %s179, %s180
      %p184 = pneg %p178
      %p185 = scmp.eq.s32.totalorder %s28, 1
      %p186 = por %p184, %p185
      %p187 = scmp.ne.s32.totalorder %s179, %s182
      %p188 = scmp.eq.s32.totalorder %s28, 0
      %p189 = por %p187, %p188
      %p190 = scmp.ne.s32.totalorder %s179, %s182
      %p191 = scmp.eq.s32.totalorder %s33, 1
      %p192 = por %p190, %p191
      %p193 = scmp.ne.s32.totalorder %s182, %s183
      %p194 = scmp.eq.s32.totalorder %s33, 0
      %p195 = por %p193, %p194
      %p196 = scmp.ne.s32.totalorder %s182, %s183
      %p197 = scmp.eq.s32.totalorder %s34, 1
      %p198 = por %p196, %p197
      %p200 = scmp.ne.s32.totalorder %s183, %s199
      %p201 = scmp.eq.s32.totalorder %s34, 0
      %p202 = por %p200, %p201
      %p203 = scmp.le.s32.totalorder 1, %s28
      %p204 = scmp.lt.s32.totalorder %s28, 3
      %p205 = pnand %p203, %p204
      %p206 = pneg %p205
      // Predicated region
      $region9: #{branch_1_fun.1} parent=5 // pred_check
        _
      $region10: #{branch_1_fun.1} parent=5 // pred_check_branch
        %208 = sbr.rel (%p205) target = $region12
      $region11: #{branch_1_fun.1} parent=5 // pred_region
        %s209 = ssub.s32 %s28, 1
        // Predicated region
        $region13: #{branch_1_fun.1} parent=11 // pred_check
          %p210 = pneg %p49
        $region14: #{branch_1_fun.1} parent=11 // pred_check_branch
          %212 = sbr.rel (%p210) target = $region16
        $region15: #{branch_1_fun.1} parent=11 // pred_region
          _
        $region16: #{branch_1_fun.1} parent=11 // pred_fallthru
          _
        // Predicated region
        $region17: #{branch_1_fun.1} parent=11 // pred_check
          %p213 = pneg %p70
        $region18: #{branch_1_fun.1} parent=11 // pred_check_branch
          %215 = sbr.rel (%p213) target = $region20
        $region19: #{branch_1_fun.1} parent=11 // pred_region
          _
        $region20: #{branch_1_fun.1} parent=11 // pred_fallthru
          _
        // Predicated region
        $region21: #{branch_1_fun.1} parent=11 // pred_check
          %p216 = pneg %p91
        $region22: #{branch_1_fun.1} parent=11 // pred_check_branch
          %218 = sbr.rel (%p216) target = $region24
        $region23: #{branch_1_fun.1} parent=11 // pred_region
          _
        $region24: #{branch_1_fun.1} parent=11 // pred_fallthru
          _
      $region12: #{branch_1_fun.1} parent=5 // pred_fallthru
        _
      %p219 = scmp.lt.s32.totalorder %s28, 2
      // Predicated region
      $region25: #{branch_1_fun.1} parent=5 // pred_check
        %p220 = pneg %p219
      $region26: #{branch_1_fun.1} parent=5 // pred_check_branch
        %222 = sbr.rel (%p220) target = $region28
      $region27: #{branch_1_fun.1} parent=5 // pred_region
        // Predicated region
        $region29: #{branch_1_fun.1} parent=27 // pred_check
          %p223 = pneg %p111
        $region30: #{branch_1_fun.1} parent=27 // pred_check_branch
          %225 = sbr.rel (%p223) target = $region32
        $region31: #{branch_1_fun.1} parent=27 // pred_region
          %s226 = smul.u32 4, %s28
          %p227 = scmp.lt.s32.totalorder %s226, 7
          %s228 = scalar_select %p227, %s226, 7
          %s229 = smul.addr %s228, 2
          %s230 = smul.addr %s229, 8
          %s231 = scalar_lea.vmem %s4, %s230
          %s232 = smul.u32 4, %s28
        $region32: #{branch_1_fun.1} parent=27 // pred_fallthru
          _
        // Predicated region
        $region33: #{branch_1_fun.1} parent=27 // pred_check
          %p233 = pneg %p137
        $region34: #{branch_1_fun.1} parent=27 // pred_check_branch
          %235 = sbr.rel (%p233) target = $region36
        $region35: #{branch_1_fun.1} parent=27 // pred_region
          %p236 = scmp.lt.s32.totalorder %s28, 1
          %s237 = scalar_select %p236, %s28, 1
          %s238 = smul.addr %s237, 2
          %s239 = smul.addr %s238, 8
          %s240 = scalar_lea.vmem %s5, %s239
        $region36: #{branch_1_fun.1} parent=27 // pred_fallthru
          _
      $region28: #{branch_1_fun.1} parent=5 // pred_fallthru
        _
      %p241 = scmp.le.s32.totalorder 1, %s28
      %p242 = scmp.lt.s32.totalorder %s28, 3
      %p243 = pnand %p241, %p242
      %p244 = pneg %p243
      // Predicated region
      $region37: #{branch_1_fun.1} parent=5 // pred_check
        _
      $region38: #{branch_1_fun.1} parent=5 // pred_check_branch
        %246 = sbr.rel (%p243) target = $region40
      $region39: #{branch_1_fun.1} parent=5 // pred_region
        %s247 = ssub.s32 %s28, 1
        %p248 = pneg %p49
        %p249 = pneg %p46
        %p250 = pneg %p70
        %p251 = pneg %p67
        %p252 = pneg %p91
        %p253 = pneg %p88
        %s254 = smul.u32 4, %s33
        %p255 = scmp.lt.s32.totalorder %s254, 7
        %s256 = scalar_select %p255, %s254, 7
        %s257 = smul.addr %s256, 2
        %s258 = smul.addr %s257, 8
        %s259 = scalar_lea.vmem %s4, %s258
        %p260 = pneg %p117
        %p261 = pneg %p114
        %p262 = scmp.lt.s32.totalorder %s33, 1
        %s263 = scalar_select %p262, %s33, 1
        %s264 = smul.addr %s263, 2
        %s265 = smul.addr %s264, 8
        %s266 = scalar_lea.vmem %s5, %s265
        %p267 = pneg %p143
        %p268 = pneg %p140
        %p269 = pneg %p169
        %p270 = pneg %p166
        %s271 = sand.u32 %s156, 1
        %s272 = scalar_lea.sflag [#allocation5], %s271
        %s273 = sand.u32 %s156, 1
        %s274 = smul.addr %s273, 64
        %s275 = scalar_lea.vmem [#allocation4], %s274
        %p276 = pneg %p195
        %p277 = pneg %p192
        %s278 = sand.u32 %s182, 1
        %s279 = scalar_lea.sflag [#allocation7], %s278
        %s280 = sand.u32 %s182, 1
        %s281 = smul.addr %s280, 16
        %s282 = scalar_lea.vmem [#allocation6], %s281
        %s283 = smul.u32 4, %s33
        %p284 = scmp.lt.s32.totalorder %s283, 7
        %s285 = scalar_select %p284, %s283, 7
        %s286 = smul.addr %s285, 2
        %s287 = smul.addr %s286, 8
        %s288 = scalar_lea.vmem %s4, %s287
        %s289 = smul.u32 4, %s33
        %p290 = scmp.lt.s32.totalorder %s33, 1
        %s291 = scalar_select %p290, %s33, 1
        %s292 = smul.addr %s291, 2
        %s293 = smul.addr %s292, 8
        %s294 = scalar_lea.vmem %s5, %s293
        %s295 = smul.u32 4, %s33
        %s296 = sld [smem:[#allocation3 + $0x1]]
        %p297 = scmp.ne.s32.totalorder %s296, 0
        %s298 = sld [smem:[#allocation3 + $0x2]]
        %p299 = scmp.ne.s32.totalorder %s298, 0
        %p300 = por %p297, %p299
        %v301 = vld [vmem:[%s288] sm:$0xff]
        %v302 = vld [vmem:[%s288 + $0x8] sm:$0xff]
        %v303 = vld [vmem:[%s288 + $0x10] sm:$0xff]
        %v304 = vld [vmem:[%s288 + $0x18] sm:$0xff]
        %v305 = vld [vmem:[%s288 + $0x20] sm:$0xff]
        %v306 = vld [vmem:[%s288 + $0x28] sm:$0xff]
        %v307 = vld [vmem:[%s288 + $0x30] sm:$0xff]
        %v308 = vld [vmem:[%s288 + $0x38] sm:$0xff]
        %v309 = vld [vmem:[%s2] sm:$0xff]
        %v310 = vld [vmem:[%s2 + $0x8] sm:$0xff]
        %v311 = vld [vmem:[%s2 + $0x10] sm:$0xff]
        %v312 = vld [vmem:[%s2 + $0x18] sm:$0xff]
        // Predicated region
        $region41: #{branch_1_fun.1} parent=39 // pred_check
          %p313 = pneg %p300
        $region42: #{branch_1_fun.1} parent=39 // pred_check_branch
          %315 = sbr.rel (%p313) target = $region44
        $region43: #{branch_1_fun.1} parent=39 // pred_region
          %v316 = vld [vmem:[%s1] sm:$0xff]
          %v317 = vld [vmem:[%s1 + $0x8] sm:$0xff]
          %v318 = vld [vmem:[%s1 + $0x10] sm:$0xff]
          %v319 = vld [vmem:[%s1 + $0x18] sm:$0xff]
          %v320 = vld [vmem:[%s1 + $0x20] sm:$0xff]
          %v321 = vld [vmem:[%s1 + $0x28] sm:$0xff]
          %v322 = vld [vmem:[%s1 + $0x30] sm:$0xff]
          %v323 = vld [vmem:[%s1 + $0x38] sm:$0xff]
          %v324 = vld [vmem:[%s1 + $0x40] sm:$0xff]
          %v325 = vld [vmem:[%s1 + $0x48] sm:$0xff]
          %v326 = vld [vmem:[%s1 + $0x50] sm:$0xff]
          %v327 = vld [vmem:[%s1 + $0x58] sm:$0xff]
          %v328 = vld [vmem:[%s1 + $0x60] sm:$0xff]
          %v329 = vld [vmem:[%s1 + $0x68] sm:$0xff]
          %v330 = vld [vmem:[%s1 + $0x70] sm:$0xff]
          %v331 = vld [vmem:[%s1 + $0x78] sm:$0xff]
          %v332 = vld [vmem:[%s1 + $0x80] sm:$0xff]
          %v333 = vld [vmem:[%s1 + $0x88] sm:$0xff]
          %v334 = vld [vmem:[%s1 + $0x90] sm:$0xff]
          %v335 = vld [vmem:[%s1 + $0x98] sm:$0xff]
          %v336 = vld [vmem:[%s1 + $0xa0] sm:$0xff]
          %v337 = vld [vmem:[%s1 + $0xa8] sm:$0xff]
          %v338 = vld [vmem:[%s1 + $0xb0] sm:$0xff]
          %v339 = vld [vmem:[%s1 + $0xb8] sm:$0xff]
          %v340 = vld [vmem:[%s1 + $0xc0] sm:$0xff]
          %v341 = vld [vmem:[%s1 + $0xc8] sm:$0xff]
          %v342 = vld [vmem:[%s1 + $0xd0] sm:$0xff]
          %v343 = vld [vmem:[%s1 + $0xd8] sm:$0xff]
          %v344 = vld [vmem:[%s1 + $0xe0] sm:$0xff]
          %v345 = vld [vmem:[%s1 + $0xe8] sm:$0xff]
          %v346 = vld [vmem:[%s1 + $0xf0] sm:$0xff]
          %v347 = vld [vmem:[%s1 + $0xf8] sm:$0xff]
          %v348 = vld [vmem:[%s1 + $0x100] sm:$0xff]
          %v349 = vld [vmem:[%s1 + $0x108] sm:$0xff]
          %v350 = vld [vmem:[%s1 + $0x110] sm:$0xff]
          %v351 = vld [vmem:[%s1 + $0x118] sm:$0xff]
          %v352 = vld [vmem:[%s1 + $0x120] sm:$0xff]
          %v353 = vld [vmem:[%s1 + $0x128] sm:$0xff]
          %v354 = vld [vmem:[%s1 + $0x130] sm:$0xff]
          %v355 = vld [vmem:[%s1 + $0x138] sm:$0xff]
          %v356 = vld [vmem:[%s1 + $0x140] sm:$0xff]
          %v357 = vld [vmem:[%s1 + $0x148] sm:$0xff]
          %v358 = vld [vmem:[%s1 + $0x150] sm:$0xff]
          %v359 = vld [vmem:[%s1 + $0x158] sm:$0xff]
          %v360 = vld [vmem:[%s1 + $0x160] sm:$0xff]
          %v361 = vld [vmem:[%s1 + $0x168] sm:$0xff]
          %v362 = vld [vmem:[%s1 + $0x170] sm:$0xff]
          %v363 = vld [vmem:[%s1 + $0x178] sm:$0xff]
          %v364 = vld [vmem:[%s1 + $0x180] sm:$0xff]
          %v365 = vld [vmem:[%s1 + $0x188] sm:$0xff]
          %v366 = vld [vmem:[%s1 + $0x190] sm:$0xff]
          %v367 = vld [vmem:[%s1 + $0x198] sm:$0xff]
          %v368 = vld [vmem:[%s1 + $0x1a0] sm:$0xff]
          %v369 = vld [vmem:[%s1 + $0x1a8] sm:$0xff]
          %v370 = vld [vmem:[%s1 + $0x1b0] sm:$0xff]
          %v371 = vld [vmem:[%s1 + $0x1b8] sm:$0xff]
          %v372 = vld [vmem:[%s1 + $0x1c0] sm:$0xff]
          %v373 = vld [vmem:[%s1 + $0x1c8] sm:$0xff]
          %v374 = vld [vmem:[%s1 + $0x1d0] sm:$0xff]
          %v375 = vld [vmem:[%s1 + $0x1d8] sm:$0xff]
          %v376 = vld [vmem:[%s1 + $0x1e0] sm:$0xff]
          %v377 = vld [vmem:[%s1 + $0x1e8] sm:$0xff]
          %v378 = vld [vmem:[%s1 + $0x1f0] sm:$0xff]
          %v379 = vld [vmem:[%s1 + $0x1f8] sm:$0xff]
          %v380 = vand.u32 %v346, 4294901760
          %381 = vmatpush.msra.mxu0 %v380
          %v382 = vand.u32 %v344, 4294901760
          %383 = vmatpush.msra.mxu0 %v382
          %v384 = vand.u32 %v342, 4294901760
          %385 = vmatpush.msra.mxu0 %v384
          %v386 = vand.u32 %v340, 4294901760
          %387 = vmatpush.msra.mxu0 %v386
          %v388 = vand.u32 %v338, 4294901760
          %389 = vmatpush.msra.mxu0 %v388
          %v390 = vand.u32 %v336, 4294901760
          %391 = vmatpush.msra.mxu0 %v390
          %v392 = vand.u32 %v334, 4294901760
          %393 = vmatpush.msra.mxu0 %v392
          %v394 = vand.u32 %v332, 4294901760
          %395 = vmatpush.msra.mxu0 %v394
          %v396 = vand.u32 %v330, 4294901760
          %397 = vmatpush.msra.mxu0 %v396
          %v398 = vand.u32 %v328, 4294901760
          %399 = vmatpush.msra.mxu0 %v398
          %v400 = vand.u32 %v326, 4294901760
          %401 = vmatpush.msra.mxu0 %v400
          %v402 = vand.u32 %v324, 4294901760
          %403 = vmatpush.msra.mxu0 %v402
          %v404 = vand.u32 %v322, 4294901760
          %405 = vmatpush.msra.mxu0 %v404
          %v406 = vand.u32 %v320, 4294901760
          %407 = vmatpush.msra.mxu0 %v406
          %v408 = vand.u32 %v318, 4294901760
          %409 = vmatpush.msra.mxu0 %v408
          %v410 = vand.u32 %v316, 4294901760
          %411 = vmatpush.msra.mxu0 %v410
          %v412 = vand.u32 %v301, 4294901760
          %v413 = vsub.f32 %v301, %v412
          %v414 = vand.u32 %v413, 4294901760
          %v415 = vsub.f32 %v413, %v414
          %v416 = vand.u32 %v415, 4294901760
          %417 = vmatmul.f32.gmra.mxu0 %v416
          %v418 = vpop.f32.mrf.mxu0
          %v419 = vadd.f32 0.0, %v418
          %v420 = vand.u32 %v303, 4294901760
          %v421 = vsub.f32 %v303, %v420
          %v422 = vand.u32 %v421, 4294901760
          %v423 = vsub.f32 %v421, %v422
          %v424 = vand.u32 %v423, 4294901760
          %425 = vmatmul.f32.gmra.mxu0 %v424
          %v426 = vpop.f32.mrf.mxu0
          %v427 = vadd.f32 0.0, %v426
          %v428 = vand.u32 %v305, 4294901760
          %v429 = vsub.f32 %v305, %v428
          %v430 = vand.u32 %v429, 4294901760
          %v431 = vsub.f32 %v429, %v430
          %v432 = vand.u32 %v431, 4294901760
          %433 = vmatmul.f32.gmra.mxu0 %v432
          %v434 = vpop.f32.mrf.mxu0
          %v435 = vadd.f32 0.0, %v434
          %v436 = vand.u32 %v307, 4294901760
          %v437 = vsub.f32 %v307, %v436
          %v438 = vand.u32 %v437, 4294901760
          %v439 = vsub.f32 %v437, %v438
          %v440 = vand.u32 %v439, 4294901760
          %441 = vmatmul.f32.gmra.mxu0 %v440
          %v442 = vpop.f32.mrf.mxu0
          %v443 = vadd.f32 0.0, %v442
          %444 = vdwg.mxu0
          %v445 = vand.u32 %v346, 4294901760
          %v446 = vsub.f32 %v346, %v445
          %v447 = vand.u32 %v446, 4294901760
          %v448 = vsub.f32 %v446, %v447
          %v449 = vand.u32 %v448, 4294901760
          %450 = vmatpush.msra.mxu0 %v449
          %v451 = vand.u32 %v344, 4294901760
          %v452 = vsub.f32 %v344, %v451
          %v453 = vand.u32 %v452, 4294901760
          %v454 = vsub.f32 %v452, %v453
          %v455 = vand.u32 %v454, 4294901760
          %456 = vmatpush.msra.mxu0 %v455
          %v457 = vand.u32 %v342, 4294901760
          %v458 = vsub.f32 %v342, %v457
          %v459 = vand.u32 %v458, 4294901760
          %v460 = vsub.f32 %v458, %v459
          %v461 = vand.u32 %v460, 4294901760
          %462 = vmatpush.msra.mxu0 %v461
          %v463 = vand.u32 %v340, 4294901760
          %v464 = vsub.f32 %v340, %v463
          %v465 = vand.u32 %v464, 4294901760
          %v466 = vsub.f32 %v464, %v465
          %v467 = vand.u32 %v466, 4294901760
          %468 = vmatpush.msra.mxu0 %v467
          %v469 = vand.u32 %v338, 4294901760
          %v470 = vsub.f32 %v338, %v469
          %v471 = vand.u32 %v470, 4294901760
          %v472 = vsub.f32 %v470, %v471
          %v473 = vand.u32 %v472, 4294901760
          %474 = vmatpush.msra.mxu0 %v473
          %v475 = vand.u32 %v336, 4294901760
          %v476 = vsub.f32 %v336, %v475
          %v477 = vand.u32 %v476, 4294901760
          %v478 = vsub.f32 %v476, %v477
          %v479 = vand.u32 %v478, 4294901760
          %480 = vmatpush.msra.mxu0 %v479
          %v481 = vand.u32 %v334, 4294901760
          %v482 = vsub.f32 %v334, %v481
          %v483 = vand.u32 %v482, 4294901760
          %v484 = vsub.f32 %v482, %v483
          %v485 = vand.u32 %v484, 4294901760
          %486 = vmatpush.msra.mxu0 %v485
          %v487 = vand.u32 %v332, 4294901760
          %v488 = vsub.f32 %v332, %v487
          %v489 = vand.u32 %v488, 4294901760
          %v490 = vsub.f32 %v488, %v489
          %v491 = vand.u32 %v490, 4294901760
          %492 = vmatpush.msra.mxu0 %v491
          %v493 = vand.u32 %v330, 4294901760
          %v494 = vsub.f32 %v330, %v493
          %v495 = vand.u32 %v494, 4294901760
          %v496 = vsub.f32 %v494, %v495
          %v497 = vand.u32 %v496, 4294901760
          %498 = vmatpush.msra.mxu0 %v497
          %v499 = vand.u32 %v328, 4294901760
          %v500 = vsub.f32 %v328, %v499
          %v501 = vand.u32 %v500, 4294901760
          %v502 = vsub.f32 %v500, %v501
          %v503 = vand.u32 %v502, 4294901760
          %504 = vmatpush.msra.mxu0 %v503
          %v505 = vand.u32 %v326, 4294901760
          %v506 = vsub.f32 %v326, %v505
          %v507 = vand.u32 %v506, 4294901760
          %v508 = vsub.f32 %v506, %v507
          %v509 = vand.u32 %v508, 4294901760
          %510 = vmatpush.msra.mxu0 %v509
          %v511 = vand.u32 %v324, 4294901760
          %v512 = vsub.f32 %v324, %v511
          %v513 = vand.u32 %v512, 4294901760
          %v514 = vsub.f32 %v512, %v513
          %v515 = vand.u32 %v514, 4294901760
          %516 = vmatpush.msra.mxu0 %v515
          %v517 = vand.u32 %v322, 4294901760
          %v518 = vsub.f32 %v322, %v517
          %v519 = vand.u32 %v518, 4294901760
          %v520 = vsub.f32 %v518, %v519
          %v521 = vand.u32 %v520, 4294901760
          %522 = vmatpush.msra.mxu0 %v521
          %v523 = vand.u32 %v320, 4294901760
          %v524 = vsub.f32 %v320, %v523
          %v525 = vand.u32 %v524, 4294901760
          %v526 = vsub.f32 %v524, %v525
          %v527 = vand.u32 %v526, 4294901760
          %528 = vmatpush.msra.mxu0 %v527
          %v529 = vand.u32 %v318, 4294901760
          %v530 = vsub.f32 %v318, %v529
          %v531 = vand.u32 %v530, 4294901760
          %v532 = vsub.f32 %v530, %v531
          %v533 = vand.u32 %v532, 4294901760
          %534 = vmatpush.msra.mxu0 %v533
          %v535 = vand.u32 %v316, 4294901760
          %v536 = vsub.f32 %v316, %v535
          %v537 = vand.u32 %v536, 4294901760
          %v538 = vsub.f32 %v536, %v537
          %v539 = vand.u32 %v538, 4294901760
          %540 = vmatpush.msra.mxu0 %v539
          %v541 = vand.u32 %v301, 4294901760
          %542 = vmatmul.f32.gmra.mxu0 %v541
          %v543 = vpop.f32.mrf.mxu0
          %v544 = vadd.f32 %v419, %v543
          %v545 = vand.u32 %v303, 4294901760
          %546 = vmatmul.f32.gmra.mxu0 %v545
          %v547 = vpop.f32.mrf.mxu0
          %v548 = vadd.f32 %v427, %v547
          %v549 = vand.u32 %v305, 4294901760
          %550 = vmatmul.f32.gmra.mxu0 %v549
          %v551 = vpop.f32.mrf.mxu0
          %v552 = vadd.f32 %v435, %v551
          %v553 = vand.u32 %v307, 4294901760
          %554 = vmatmul.f32.gmra.mxu0 %v553
          %v555 = vpop.f32.mrf.mxu0
          %v556 = vadd.f32 %v443, %v555
          %557 = vdwg.mxu0
          %v558 = vand.u32 %v346, 4294901760
          %v559 = vsub.f32 %v346, %v558
          %560 = vmatpush.msra.mxu0 %v559
          %v561 = vand.u32 %v344, 4294901760
          %v562 = vsub.f32 %v344, %v561
          %563 = vmatpush.msra.mxu0 %v562
          %v564 = vand.u32 %v342, 4294901760
          %v565 = vsub.f32 %v342, %v564
          %566 = vmatpush.msra.mxu0 %v565
          %v567 = vand.u32 %v340, 4294901760
          %v568 = vsub.f32 %v340, %v567
          %569 = vmatpush.msra.mxu0 %v568
          %v570 = vand.u32 %v338, 4294901760
          %v571 = vsub.f32 %v338, %v570
          %572 = vmatpush.msra.mxu0 %v571
          %v573 = vand.u32 %v336, 4294901760
          %v574 = vsub.f32 %v336, %v573
          %575 = vmatpush.msra.mxu0 %v574
          %v576 = vand.u32 %v334, 4294901760
          %v577 = vsub.f32 %v334, %v576
          %578 = vmatpush.msra.mxu0 %v577
          %v579 = vand.u32 %v332, 4294901760
          %v580 = vsub.f32 %v332, %v579
          %581 = vmatpush.msra.mxu0 %v580
          %v582 = vand.u32 %v330, 4294901760
          %v583 = vsub.f32 %v330, %v582
          %584 = vmatpush.msra.mxu0 %v583
          %v585 = vand.u32 %v328, 4294901760
          %v586 = vsub.f32 %v328, %v585
          %587 = vmatpush.msra.mxu0 %v586
          %v588 = vand.u32 %v326, 4294901760
          %v589 = vsub.f32 %v326, %v588
          %590 = vmatpush.msra.mxu0 %v589
          %v591 = vand.u32 %v324, 4294901760
          %v592 = vsub.f32 %v324, %v591
          %593 = vmatpush.msra.mxu0 %v592
          %v594 = vand.u32 %v322, 4294901760
          %v595 = vsub.f32 %v322, %v594
          %596 = vmatpush.msra.mxu0 %v595
          %v597 = vand.u32 %v320, 4294901760
          %v598 = vsub.f32 %v320, %v597
          %599 = vmatpush.msra.mxu0 %v598
          %v600 = vand.u32 %v318, 4294901760
          %v601 = vsub.f32 %v318, %v600
          %602 = vmatpush.msra.mxu0 %v601
          %v603 = vand.u32 %v316, 4294901760
          %v604 = vsub.f32 %v316, %v603
          %605 = vmatpush.msra.mxu0 %v604
          %v606 = vand.u32 %v301, 4294901760
          %v607 = vsub.f32 %v301, %v606
          %608 = vmatmul.f32.gmra.mxu0 %v607
          %v609 = vpop.f32.mrf.mxu0
          %v610 = vadd.f32 %v544, %v609
          %v611 = vand.u32 %v303, 4294901760
          %v612 = vsub.f32 %v303, %v611
          %613 = vmatmul.f32.gmra.mxu0 %v612
          %v614 = vpop.f32.mrf.mxu0
          %v615 = vadd.f32 %v548, %v614
          %v616 = vand.u32 %v305, 4294901760
          %v617 = vsub.f32 %v305, %v616
          %618 = vmatmul.f32.gmra.mxu0 %v617
          %v619 = vpop.f32.mrf.mxu0
          %v620 = vadd.f32 %v552, %v619
          %v621 = vand.u32 %v307, 4294901760
          %v622 = vsub.f32 %v307, %v621
          %623 = vmatmul.f32.gmra.mxu0 %v622
          %v624 = vpop.f32.mrf.mxu0
          %v625 = vadd.f32 %v556, %v624
          %626 = vdwg.mxu0
          %v627 = vand.u32 %v346, 4294901760
          %628 = vmatpush.msra.mxu0 %v627
          %v629 = vand.u32 %v344, 4294901760
          %630 = vmatpush.msra.mxu0 %v629
          %v631 = vand.u32 %v342, 4294901760
          %632 = vmatpush.msra.mxu0 %v631
          %v633 = vand.u32 %v340, 4294901760
          %634 = vmatpush.msra.mxu0 %v633
          %v635 = vand.u32 %v338, 4294901760
          %636 = vmatpush.msra.mxu0 %v635
          %v637 = vand.u32 %v336, 4294901760
          %638 = vmatpush.msra.mxu0 %v637
          %v639 = vand.u32 %v334, 4294901760
          %640 = vmatpush.msra.mxu0 %v639
          %v641 = vand.u32 %v332, 4294901760
          %642 = vmatpush.msra.mxu0 %v641
          %v643 = vand.u32 %v330, 4294901760
          %644 = vmatpush.msra.mxu0 %v643
          %v645 = vand.u32 %v328, 4294901760
          %646 = vmatpush.msra.mxu0 %v645
          %v647 = vand.u32 %v326, 4294901760
          %648 = vmatpush.msra.mxu0 %v647
          %v649 = vand.u32 %v324, 4294901760
          %650 = vmatpush.msra.mxu0 %v649
          %v651 = vand.u32 %v322, 4294901760
          %652 = vmatpush.msra.mxu0 %v651
          %v653 = vand.u32 %v320, 4294901760
          %654 = vmatpush.msra.mxu0 %v653
          %v655 = vand.u32 %v318, 4294901760
          %656 = vmatpush.msra.mxu0 %v655
          %v657 = vand.u32 %v316, 4294901760
          %658 = vmatpush.msra.mxu0 %v657
          %v659 = vand.u32 %v301, 4294901760
          %v660 = vsub.f32 %v301, %v659
          %v661 = vand.u32 %v660, 4294901760
          %662 = vmatmul.f32.gmra.mxu0 %v661
          %v663 = vpop.f32.mrf.mxu0
          %v664 = vadd.f32 %v610, %v663
          %v665 = vand.u32 %v303, 4294901760
          %v666 = vsub.f32 %v303, %v665
          %v667 = vand.u32 %v666, 4294901760
          %668 = vmatmul.f32.gmra.mxu0 %v667
          %v669 = vpop.f32.mrf.mxu0
          %v670 = vadd.f32 %v615, %v669
          %v671 = vand.u32 %v305, 4294901760
          %v672 = vsub.f32 %v305, %v671
          %v673 = vand.u32 %v672, 4294901760
          %674 = vmatmul.f32.gmra.mxu0 %v673
          %v675 = vpop.f32.mrf.mxu0
          %v676 = vadd.f32 %v620, %v675
          %v677 = vand.u32 %v307, 4294901760
          %v678 = vsub.f32 %v307, %v677
          %v679 = vand.u32 %v678, 4294901760
          %680 = vmatmul.f32.gmra.mxu0 %v679
          %v681 = vpop.f32.mrf.mxu0
          %v682 = vadd.f32 %v625, %v681
          %683 = vdwg.mxu0
          %v684 = vand.u32 %v346, 4294901760
          %v685 = vsub.f32 %v346, %v684
          %v686 = vand.u32 %v685, 4294901760
          %687 = vmatpush.msra.mxu0 %v686
          %v688 = vand.u32 %v344, 4294901760
          %v689 = vsub.f32 %v344, %v688
          %v690 = vand.u32 %v689, 4294901760
          %691 = vmatpush.msra.mxu0 %v690
          %v692 = vand.u32 %v342, 4294901760
          %v693 = vsub.f32 %v342, %v692
          %v694 = vand.u32 %v693, 4294901760
          %695 = vmatpush.msra.mxu0 %v694
          %v696 = vand.u32 %v340, 4294901760
          %v697 = vsub.f32 %v340, %v696
          %v698 = vand.u32 %v697, 4294901760
          %699 = vmatpush.msra.mxu0 %v698
          %v700 = vand.u32 %v338, 4294901760
          %v701 = vsub.f32 %v338, %v700
          %v702 = vand.u32 %v701, 4294901760
          %703 = vmatpush.msra.mxu0 %v702
          %v704 = vand.u32 %v336, 4294901760
          %v705 = vsub.f32 %v336, %v704
          %v706 = vand.u32 %v705, 4294901760
          %707 = vmatpush.msra.mxu0 %v706
          %v708 = vand.u32 %v334, 4294901760
          %v709 = vsub.f32 %v334, %v708
          %v710 = vand.u32 %v709, 4294901760
          %711 = vmatpush.msra.mxu0 %v710
          %v712 = vand.u32 %v332, 4294901760
          %v713 = vsub.f32 %v332, %v712
          %v714 = vand.u32 %v713, 4294901760
          %715 = vmatpush.msra.mxu0 %v714
          %v716 = vand.u32 %v330, 4294901760
          %v717 = vsub.f32 %v330, %v716
          %v718 = vand.u32 %v717, 4294901760
          %719 = vmatpush.msra.mxu0 %v718
          %v720 = vand.u32 %v328, 4294901760
          %v721 = vsub.f32 %v328, %v720
          %v722 = vand.u32 %v721, 4294901760
          %723 = vmatpush.msra.mxu0 %v722
          %v724 = vand.u32 %v326, 4294901760
          %v725 = vsub.f32 %v326, %v724
          %v726 = vand.u32 %v725, 4294901760
          %727 = vmatpush.msra.mxu0 %v726
          %v728 = vand.u32 %v324, 4294901760
          %v729 = vsub.f32 %v324, %v728
          %v730 = vand.u32 %v729, 4294901760
          %731 = vmatpush.msra.mxu0 %v730
          %v732 = vand.u32 %v322, 4294901760
          %v733 = vsub.f32 %v322, %v732
          %v734 = vand.u32 %v733, 4294901760
          %735 = vmatpush.msra.mxu0 %v734
          %v736 = vand.u32 %v320, 4294901760
          %v737 = vsub.f32 %v320, %v736
          %v738 = vand.u32 %v737, 4294901760
          %739 = vmatpush.msra.mxu0 %v738
          %v740 = vand.u32 %v318, 4294901760
          %v741 = vsub.f32 %v318, %v740
          %v742 = vand.u32 %v741, 4294901760
          %743 = vmatpush.msra.mxu0 %v742
          %v744 = vand.u32 %v316, 4294901760
          %v745 = vsub.f32 %v316, %v744
          %v746 = vand.u32 %v745, 4294901760
          %747 = vmatpush.msra.mxu0 %v746
          %v748 = vand.u32 %v301, 4294901760
          %749 = vmatmul.f32.gmra.mxu0 %v748
          %v750 = vpop.f32.mrf.mxu0
          %v751 = vadd.f32 %v664, %v750
          %v752 = vand.u32 %v303, 4294901760
          %753 = vmatmul.f32.gmra.mxu0 %v752
          %v754 = vpop.f32.mrf.mxu0
          %v755 = vadd.f32 %v670, %v754
          %v756 = vand.u32 %v305, 4294901760
          %757 = vmatmul.f32.gmra.mxu0 %v756
          %v758 = vpop.f32.mrf.mxu0
          %v759 = vadd.f32 %v676, %v758
          %v760 = vand.u32 %v307, 4294901760
          %761 = vmatmul.f32.gmra.mxu0 %v760
          %v762 = vpop.f32.mrf.mxu0
          %v763 = vadd.f32 %v682, %v762
          %764 = vdwg.mxu0
          %v765 = vand.u32 %v346, 4294901760
          %766 = vmatpush.msra.mxu0 %v765
          %v767 = vand.u32 %v344, 4294901760
          %768 = vmatpush.msra.mxu0 %v767
          %v769 = vand.u32 %v342, 4294901760
          %770 = vmatpush.msra.mxu0 %v769
          %v771 = vand.u32 %v340, 4294901760
          %772 = vmatpush.msra.mxu0 %v771
          %v773 = vand.u32 %v338, 4294901760
          %774 = vmatpush.msra.mxu0 %v773
          %v775 = vand.u32 %v336, 4294901760
          %776 = vmatpush.msra.mxu0 %v775
          %v777 = vand.u32 %v334, 4294901760
          %778 = vmatpush.msra.mxu0 %v777
          %v779 = vand.u32 %v332, 4294901760
          %780 = vmatpush.msra.mxu0 %v779
          %v781 = vand.u32 %v330, 4294901760
          %782 = vmatpush.msra.mxu0 %v781
          %v783 = vand.u32 %v328, 4294901760
          %784 = vmatpush.msra.mxu0 %v783
          %v785 = vand.u32 %v326, 4294901760
          %786 = vmatpush.msra.mxu0 %v785
          %v787 = vand.u32 %v324, 4294901760
          %788 = vmatpush.msra.mxu0 %v787
          %v789 = vand.u32 %v322, 4294901760
          %790 = vmatpush.msra.mxu0 %v789
          %v791 = vand.u32 %v320, 4294901760
          %792 = vmatpush.msra.mxu0 %v791
          %v793 = vand.u32 %v318, 4294901760
          %794 = vmatpush.msra.mxu0 %v793
          %v795 = vand.u32 %v316, 4294901760
          %796 = vmatpush.msra.mxu0 %v795
          %v797 = vand.u32 %v301, 4294901760
          %798 = vmatmul.f32.gmra.mxu0 %v797
          %v799 = vpop.f32.mrf.mxu0
          %v800 = vadd.f32 %v751, %v799
          %v801 = vand.u32 %v303, 4294901760
          %802 = vmatmul.f32.gmra.mxu0 %v801
          %v803 = vpop.f32.mrf.mxu0
          %v804 = vadd.f32 %v755, %v803
          %v805 = vand.u32 %v305, 4294901760
          %806 = vmatmul.f32.gmra.mxu0 %v805
          %v807 = vpop.f32.mrf.mxu0
          %v808 = vadd.f32 %v759, %v807
          %v809 = vand.u32 %v307, 4294901760
          %810 = vmatmul.f32.gmra.mxu0 %v809
          %v811 = vpop.f32.mrf.mxu0
          %v812 = vadd.f32 %v763, %v811
          %813 = vdwg.mxu0
          %v814 = vand.u32 %v378, 4294901760
          %815 = vmatpush.msra.mxu0 %v814
          %v816 = vand.u32 %v376, 4294901760
          %817 = vmatpush.msra.mxu0 %v816
          %v818 = vand.u32 %v374, 4294901760
          %819 = vmatpush.msra.mxu0 %v818
          %v820 = vand.u32 %v372, 4294901760
          %821 = vmatpush.msra.mxu0 %v820
          %v822 = vand.u32 %v370, 4294901760
          %823 = vmatpush.msra.mxu0 %v822
          %v824 = vand.u32 %v368, 4294901760
          %825 = vmatpush.msra.mxu0 %v824
          %v826 = vand.u32 %v366, 4294901760
          %827 = vmatpush.msra.mxu0 %v826
          %v828 = vand.u32 %v364, 4294901760
          %829 = vmatpush.msra.mxu0 %v828
          %v830 = vand.u32 %v362, 4294901760
          %831 = vmatpush.msra.mxu0 %v830
          %v832 = vand.u32 %v360, 4294901760
          %833 = vmatpush.msra.mxu0 %v832
          %v834 = vand.u32 %v358, 4294901760
          %835 = vmatpush.msra.mxu0 %v834
          %v836 = vand.u32 %v356, 4294901760
          %837 = vmatpush.msra.mxu0 %v836
          %v838 = vand.u32 %v354, 4294901760
          %839 = vmatpush.msra.mxu0 %v838
          %v840 = vand.u32 %v352, 4294901760
          %841 = vmatpush.msra.mxu0 %v840
          %v842 = vand.u32 %v350, 4294901760
          %843 = vmatpush.msra.mxu0 %v842
          %v844 = vand.u32 %v348, 4294901760
          %845 = vmatpush.msra.mxu0 %v844
          %v846 = vand.u32 %v302, 4294901760
          %v847 = vsub.f32 %v302, %v846
          %v848 = vand.u32 %v847, 4294901760
          %v849 = vsub.f32 %v847, %v848
          %v850 = vand.u32 %v849, 4294901760
          %851 = vmatmul.f32.gmra.mxu0 %v850
          %v852 = vpop.f32.mrf.mxu0
          %v853 = vadd.f32 %v800, %v852
          %v854 = vand.u32 %v304, 4294901760
          %v855 = vsub.f32 %v304, %v854
          %v856 = vand.u32 %v855, 4294901760
          %v857 = vsub.f32 %v855, %v856
          %v858 = vand.u32 %v857, 4294901760
          %859 = vmatmul.f32.gmra.mxu0 %v858
          %v860 = vpop.f32.mrf.mxu0
          %v861 = vadd.f32 %v804, %v860
          %v862 = vand.u32 %v306, 4294901760
          %v863 = vsub.f32 %v306, %v862
          %v864 = vand.u32 %v863, 4294901760
          %v865 = vsub.f32 %v863, %v864
          %v866 = vand.u32 %v865, 4294901760
          %867 = vmatmul.f32.gmra.mxu0 %v866
          %v868 = vpop.f32.mrf.mxu0
          %v869 = vadd.f32 %v808, %v868
          %v870 = vand.u32 %v308, 4294901760
          %v871 = vsub.f32 %v308, %v870
          %v872 = vand.u32 %v871, 4294901760
          %v873 = vsub.f32 %v871, %v872
          %v874 = vand.u32 %v873, 4294901760
          %875 = vmatmul.f32.gmra.mxu0 %v874
          %v876 = vpop.f32.mrf.mxu0
          %v877 = vadd.f32 %v812, %v876
          %878 = vdwg.mxu0
          %v879 = vand.u32 %v378, 4294901760
          %v880 = vsub.f32 %v378, %v879
          %v881 = vand.u32 %v880, 4294901760
          %v882 = vsub.f32 %v880, %v881
          %v883 = vand.u32 %v882, 4294901760
          %884 = vmatpush.msra.mxu0 %v883
          %v885 = vand.u32 %v376, 4294901760
          %v886 = vsub.f32 %v376, %v885
          %v887 = vand.u32 %v886, 4294901760
          %v888 = vsub.f32 %v886, %v887
          %v889 = vand.u32 %v888, 4294901760
          %890 = vmatpush.msra.mxu0 %v889
          %v891 = vand.u32 %v374, 4294901760
          %v892 = vsub.f32 %v374, %v891
          %v893 = vand.u32 %v892, 4294901760
          %v894 = vsub.f32 %v892, %v893
          %v895 = vand.u32 %v894, 4294901760
          %896 = vmatpush.msra.mxu0 %v895
          %v897 = vand.u32 %v372, 4294901760
          %v898 = vsub.f32 %v372, %v897
          %v899 = vand.u32 %v898, 4294901760
          %v900 = vsub.f32 %v898, %v899
          %v901 = vand.u32 %v900, 4294901760
          %902 = vmatpush.msra.mxu0 %v901
          %v903 = vand.u32 %v370, 4294901760
          %v904 = vsub.f32 %v370, %v903
          %v905 = vand.u32 %v904, 4294901760
          %v906 = vsub.f32 %v904, %v905
          %v907 = vand.u32 %v906, 4294901760
          %908 = vmatpush.msra.mxu0 %v907
          %v909 = vand.u32 %v368, 4294901760
          %v910 = vsub.f32 %v368, %v909
          %v911 = vand.u32 %v910, 4294901760
          %v912 = vsub.f32 %v910, %v911
          %v913 = vand.u32 %v912, 4294901760
          %914 = vmatpush.msra.mxu0 %v913
          %v915 = vand.u32 %v366, 4294901760
          %v916 = vsub.f32 %v366, %v915
          %v917 = vand.u32 %v916, 4294901760
          %v918 = vsub.f32 %v916, %v917
          %v919 = vand.u32 %v918, 4294901760
          %920 = vmatpush.msra.mxu0 %v919
          %v921 = vand.u32 %v364, 4294901760
          %v922 = vsub.f32 %v364, %v921
          %v923 = vand.u32 %v922, 4294901760
          %v924 = vsub.f32 %v922, %v923
          %v925 = vand.u32 %v924, 4294901760
          %926 = vmatpush.msra.mxu0 %v925
          %v927 = vand.u32 %v362, 4294901760
          %v928 = vsub.f32 %v362, %v927
          %v929 = vand.u32 %v928, 4294901760
          %v930 = vsub.f32 %v928, %v929
          %v931 = vand.u32 %v930, 4294901760
          %932 = vmatpush.msra.mxu0 %v931
          %v933 = vand.u32 %v360, 4294901760
          %v934 = vsub.f32 %v360, %v933
          %v935 = vand.u32 %v934, 4294901760
          %v936 = vsub.f32 %v934, %v935
          %v937 = vand.u32 %v936, 4294901760
          %938 = vmatpush.msra.mxu0 %v937
          %v939 = vand.u32 %v358, 4294901760
          %v940 = vsub.f32 %v358, %v939
          %v941 = vand.u32 %v940, 4294901760
          %v942 = vsub.f32 %v940, %v941
          %v943 = vand.u32 %v942, 4294901760
          %944 = vmatpush.msra.mxu0 %v943
          %v945 = vand.u32 %v356, 4294901760
          %v946 = vsub.f32 %v356, %v945
          %v947 = vand.u32 %v946, 4294901760
          %v948 = vsub.f32 %v946, %v947
          %v949 = vand.u32 %v948, 4294901760
          %950 = vmatpush.msra.mxu0 %v949
          %v951 = vand.u32 %v354, 4294901760
          %v952 = vsub.f32 %v354, %v951
          %v953 = vand.u32 %v952, 4294901760
          %v954 = vsub.f32 %v952, %v953
          %v955 = vand.u32 %v954, 4294901760
          %956 = vmatpush.msra.mxu0 %v955
          %v957 = vand.u32 %v352, 4294901760
          %v958 = vsub.f32 %v352, %v957
          %v959 = vand.u32 %v958, 4294901760
          %v960 = vsub.f32 %v958, %v959
          %v961 = vand.u32 %v960, 4294901760
          %962 = vmatpush.msra.mxu0 %v961
          %v963 = vand.u32 %v350, 4294901760
          %v964 = vsub.f32 %v350, %v963
          %v965 = vand.u32 %v964, 4294901760
          %v966 = vsub.f32 %v964, %v965
          %v967 = vand.u32 %v966, 4294901760
          %968 = vmatpush.msra.mxu0 %v967
          %v969 = vand.u32 %v348, 4294901760
          %v970 = vsub.f32 %v348, %v969
          %v971 = vand.u32 %v970, 4294901760
          %v972 = vsub.f32 %v970, %v971
          %v973 = vand.u32 %v972, 4294901760
          %974 = vmatpush.msra.mxu0 %v973
          %v975 = vand.u32 %v302, 4294901760
          %976 = vmatmul.f32.gmra.mxu0 %v975
          %v977 = vpop.f32.mrf.mxu0
          %v978 = vadd.f32 %v853, %v977
          %v979 = vand.u32 %v304, 4294901760
          %980 = vmatmul.f32.gmra.mxu0 %v979
          %v981 = vpop.f32.mrf.mxu0
          %v982 = vadd.f32 %v861, %v981
          %v983 = vand.u32 %v306, 4294901760
          %984 = vmatmul.f32.gmra.mxu0 %v983
          %v985 = vpop.f32.mrf.mxu0
          %v986 = vadd.f32 %v869, %v985
          %v987 = vand.u32 %v308, 4294901760
          %988 = vmatmul.f32.gmra.mxu0 %v987
          %v989 = vpop.f32.mrf.mxu0
          %v990 = vadd.f32 %v877, %v989
          %991 = vdwg.mxu0
          %v992 = vand.u32 %v378, 4294901760
          %v993 = vsub.f32 %v378, %v992
          %994 = vmatpush.msra.mxu0 %v993
          %v995 = vand.u32 %v376, 4294901760
          %v996 = vsub.f32 %v376, %v995
          %997 = vmatpush.msra.mxu0 %v996
          %v998 = vand.u32 %v374, 4294901760
          %v999 = vsub.f32 %v374, %v998
          %1000 = vmatpush.msra.mxu0 %v999
          %v1001 = vand.u32 %v372, 4294901760
          %v1002 = vsub.f32 %v372, %v1001
          %1003 = vmatpush.msra.mxu0 %v1002
          %v1004 = vand.u32 %v370, 4294901760
          %v1005 = vsub.f32 %v370, %v1004
          %1006 = vmatpush.msra.mxu0 %v1005
          %v1007 = vand.u32 %v368, 4294901760
          %v1008 = vsub.f32 %v368, %v1007
          %1009 = vmatpush.msra.mxu0 %v1008
          %v1010 = vand.u32 %v366, 4294901760
          %v1011 = vsub.f32 %v366, %v1010
          %1012 = vmatpush.msra.mxu0 %v1011
          %v1013 = vand.u32 %v364, 4294901760
          %v1014 = vsub.f32 %v364, %v1013
          %1015 = vmatpush.msra.mxu0 %v1014
          %v1016 = vand.u32 %v362, 4294901760
          %v1017 = vsub.f32 %v362, %v1016
          %1018 = vmatpush.msra.mxu0 %v1017
          %v1019 = vand.u32 %v360, 4294901760
          %v1020 = vsub.f32 %v360, %v1019
          %1021 = vmatpush.msra.mxu0 %v1020
          %v1022 = vand.u32 %v358, 4294901760
          %v1023 = vsub.f32 %v358, %v1022
          %1024 = vmatpush.msra.mxu0 %v1023
          %v1025 = vand.u32 %v356, 4294901760
          %v1026 = vsub.f32 %v356, %v1025
          %1027 = vmatpush.msra.mxu0 %v1026
          %v1028 = vand.u32 %v354, 4294901760
          %v1029 = vsub.f32 %v354, %v1028
          %1030 = vmatpush.msra.mxu0 %v1029
          %v1031 = vand.u32 %v352, 4294901760
          %v1032 = vsub.f32 %v352, %v1031
          %1033 = vmatpush.msra.mxu0 %v1032
          %v1034 = vand.u32 %v350, 4294901760
          %v1035 = vsub.f32 %v350, %v1034
          %1036 = vmatpush.msra.mxu0 %v1035
          %v1037 = vand.u32 %v348, 4294901760
          %v1038 = vsub.f32 %v348, %v1037
          %1039 = vmatpush.msra.mxu0 %v1038
          %v1040 = vand.u32 %v302, 4294901760
          %v1041 = vsub.f32 %v302, %v1040
          %1042 = vmatmul.f32.gmra.mxu0 %v1041
          %v1043 = vpop.f32.mrf.mxu0
          %v1044 = vadd.f32 %v978, %v1043
          %v1045 = vand.u32 %v304, 4294901760
          %v1046 = vsub.f32 %v304, %v1045
          %1047 = vmatmul.f32.gmra.mxu0 %v1046
          %v1048 = vpop.f32.mrf.mxu0
          %v1049 = vadd.f32 %v982, %v1048
          %v1050 = vand.u32 %v306, 4294901760
          %v1051 = vsub.f32 %v306, %v1050
          %1052 = vmatmul.f32.gmra.mxu0 %v1051
          %v1053 = vpop.f32.mrf.mxu0
          %v1054 = vadd.f32 %v986, %v1053
          %v1055 = vand.u32 %v308, 4294901760
          %v1056 = vsub.f32 %v308, %v1055
          %1057 = vmatmul.f32.gmra.mxu0 %v1056
          %v1058 = vpop.f32.mrf.mxu0
          %v1059 = vadd.f32 %v990, %v1058
          %1060 = vdwg.mxu0
          %v1061 = vand.u32 %v378, 4294901760
          %1062 = vmatpush.msra.mxu0 %v1061
          %v1063 = vand.u32 %v376, 4294901760
          %1064 = vmatpush.msra.mxu0 %v1063
          %v1065 = vand.u32 %v374, 4294901760
          %1066 = vmatpush.msra.mxu0 %v1065
          %v1067 = vand.u32 %v372, 4294901760
          %1068 = vmatpush.msra.mxu0 %v1067
          %v1069 = vand.u32 %v370, 4294901760
          %1070 = vmatpush.msra.mxu0 %v1069
          %v1071 = vand.u32 %v368, 4294901760
          %1072 = vmatpush.msra.mxu0 %v1071
          %v1073 = vand.u32 %v366, 4294901760
          %1074 = vmatpush.msra.mxu0 %v1073
          %v1075 = vand.u32 %v364, 4294901760
          %1076 = vmatpush.msra.mxu0 %v1075
          %v1077 = vand.u32 %v362, 4294901760
          %1078 = vmatpush.msra.mxu0 %v1077
          %v1079 = vand.u32 %v360, 4294901760
          %1080 = vmatpush.msra.mxu0 %v1079
          %v1081 = vand.u32 %v358, 4294901760
          %1082 = vmatpush.msra.mxu0 %v1081
          %v1083 = vand.u32 %v356, 4294901760
          %1084 = vmatpush.msra.mxu0 %v1083
          %v1085 = vand.u32 %v354, 4294901760
          %1086 = vmatpush.msra.mxu0 %v1085
          %v1087 = vand.u32 %v352, 4294901760
          %1088 = vmatpush.msra.mxu0 %v1087
          %v1089 = vand.u32 %v350, 4294901760
          %1090 = vmatpush.msra.mxu0 %v1089
          %v1091 = vand.u32 %v348, 4294901760
          %1092 = vmatpush.msra.mxu0 %v1091
          %v1093 = vand.u32 %v302, 4294901760
          %v1094 = vsub.f32 %v302, %v1093
          %v1095 = vand.u32 %v1094, 4294901760
          %1096 = vmatmul.f32.gmra.mxu0 %v1095
          %v1097 = vpop.f32.mrf.mxu0
          %v1098 = vadd.f32 %v1044, %v1097
          %v1099 = vand.u32 %v304, 4294901760
          %v1100 = vsub.f32 %v304, %v1099
          %v1101 = vand.u32 %v1100, 4294901760
          %1102 = vmatmul.f32.gmra.mxu0 %v1101
          %v1103 = vpop.f32.mrf.mxu0
          %v1104 = vadd.f32 %v1049, %v1103
          %v1105 = vand.u32 %v306, 4294901760
          %v1106 = vsub.f32 %v306, %v1105
          %v1107 = vand.u32 %v1106, 4294901760
          %1108 = vmatmul.f32.gmra.mxu0 %v1107
          %v1109 = vpop.f32.mrf.mxu0
          %v1110 = vadd.f32 %v1054, %v1109
          %v1111 = vand.u32 %v308, 4294901760
          %v1112 = vsub.f32 %v308, %v1111
          %v1113 = vand.u32 %v1112, 4294901760
          %1114 = vmatmul.f32.gmra.mxu0 %v1113
          %v1115 = vpop.f32.mrf.mxu0
          %v1116 = vadd.f32 %v1059, %v1115
          %1117 = vdwg.mxu0
          %v1118 = vand.u32 %v378, 4294901760
          %v1119 = vsub.f32 %v378, %v1118
          %v1120 = vand.u32 %v1119, 4294901760
          %1121 = vmatpush.msra.mxu0 %v1120
          %v1122 = vand.u32 %v376, 4294901760
          %v1123 = vsub.f32 %v376, %v1122
          %v1124 = vand.u32 %v1123, 4294901760
          %1125 = vmatpush.msra.mxu0 %v1124
          %v1126 = vand.u32 %v374, 4294901760
          %v1127 = vsub.f32 %v374, %v1126
          %v1128 = vand.u32 %v1127, 4294901760
          %1129 = vmatpush.msra.mxu0 %v1128
          %v1130 = vand.u32 %v372, 4294901760
          %v1131 = vsub.f32 %v372, %v1130
          %v1132 = vand.u32 %v1131, 4294901760
          %1133 = vmatpush.msra.mxu0 %v1132
          %v1134 = vand.u32 %v370, 4294901760
          %v1135 = vsub.f32 %v370, %v1134
          %v1136 = vand.u32 %v1135, 4294901760
          %1137 = vmatpush.msra.mxu0 %v1136
          %v1138 = vand.u32 %v368, 4294901760
          %v1139 = vsub.f32 %v368, %v1138
          %v1140 = vand.u32 %v1139, 4294901760
          %1141 = vmatpush.msra.mxu0 %v1140
          %v1142 = vand.u32 %v366, 4294901760
          %v1143 = vsub.f32 %v366, %v1142
          %v1144 = vand.u32 %v1143, 4294901760
          %1145 = vmatpush.msra.mxu0 %v1144
          %v1146 = vand.u32 %v364, 4294901760
          %v1147 = vsub.f32 %v364, %v1146
          %v1148 = vand.u32 %v1147, 4294901760
          %1149 = vmatpush.msra.mxu0 %v1148
          %v1150 = vand.u32 %v362, 4294901760
          %v1151 = vsub.f32 %v362, %v1150
          %v1152 = vand.u32 %v1151, 4294901760
          %1153 = vmatpush.msra.mxu0 %v1152
          %v1154 = vand.u32 %v360, 4294901760
          %v1155 = vsub.f32 %v360, %v1154
          %v1156 = vand.u32 %v1155, 4294901760
          %1157 = vmatpush.msra.mxu0 %v1156
          %v1158 = vand.u32 %v358, 4294901760
          %v1159 = vsub.f32 %v358, %v1158
          %v1160 = vand.u32 %v1159, 4294901760
          %1161 = vmatpush.msra.mxu0 %v1160
          %v1162 = vand.u32 %v356, 4294901760
          %v1163 = vsub.f32 %v356, %v1162
          %v1164 = vand.u32 %v1163, 4294901760
          %1165 = vmatpush.msra.mxu0 %v1164
          %v1166 = vand.u32 %v354, 4294901760
          %v1167 = vsub.f32 %v354, %v1166
          %v1168 = vand.u32 %v1167, 4294901760
          %1169 = vmatpush.msra.mxu0 %v1168
          %v1170 = vand.u32 %v352, 4294901760
          %v1171 = vsub.f32 %v352, %v1170
          %v1172 = vand.u32 %v1171, 4294901760
          %1173 = vmatpush.msra.mxu0 %v1172
          %v1174 = vand.u32 %v350, 4294901760
          %v1175 = vsub.f32 %v350, %v1174
          %v1176 = vand.u32 %v1175, 4294901760
          %1177 = vmatpush.msra.mxu0 %v1176
          %v1178 = vand.u32 %v348, 4294901760
          %v1179 = vsub.f32 %v348, %v1178
          %v1180 = vand.u32 %v1179, 4294901760
          %1181 = vmatpush.msra.mxu0 %v1180
          %v1182 = vand.u32 %v302, 4294901760
          %1183 = vmatmul.f32.gmra.mxu0 %v1182
          %v1184 = vpop.f32.mrf.mxu0
          %v1185 = vadd.f32 %v1098, %v1184
          %v1186 = vand.u32 %v304, 4294901760
          %1187 = vmatmul.f32.gmra.mxu0 %v1186
          %v1188 = vpop.f32.mrf.mxu0
          %v1189 = vadd.f32 %v1104, %v1188
          %v1190 = vand.u32 %v306, 4294901760
          %1191 = vmatmul.f32.gmra.mxu0 %v1190
          %v1192 = vpop.f32.mrf.mxu0
          %v1193 = vadd.f32 %v1110, %v1192
          %v1194 = vand.u32 %v308, 4294901760
          %1195 = vmatmul.f32.gmra.mxu0 %v1194
          %v1196 = vpop.f32.mrf.mxu0
          %v1197 = vadd.f32 %v1116, %v1196
          %1198 = vdwg.mxu0
          %v1199 = vand.u32 %v378, 4294901760
          %1200 = vmatpush.msra.mxu0 %v1199
          %v1201 = vand.u32 %v376, 4294901760
          %1202 = vmatpush.msra.mxu0 %v1201
          %v1203 = vand.u32 %v374, 4294901760
          %1204 = vmatpush.msra.mxu0 %v1203
          %v1205 = vand.u32 %v372, 4294901760
          %1206 = vmatpush.msra.mxu0 %v1205
          %v1207 = vand.u32 %v370, 4294901760
          %1208 = vmatpush.msra.mxu0 %v1207
          %v1209 = vand.u32 %v368, 4294901760
          %1210 = vmatpush.msra.mxu0 %v1209
          %v1211 = vand.u32 %v366, 4294901760
          %1212 = vmatpush.msra.mxu0 %v1211
          %v1213 = vand.u32 %v364, 4294901760
          %1214 = vmatpush.msra.mxu0 %v1213
          %v1215 = vand.u32 %v362, 4294901760
          %1216 = vmatpush.msra.mxu0 %v1215
          %v1217 = vand.u32 %v360, 4294901760
          %1218 = vmatpush.msra.mxu0 %v1217
          %v1219 = vand.u32 %v358, 4294901760
          %1220 = vmatpush.msra.mxu0 %v1219
          %v1221 = vand.u32 %v356, 4294901760
          %1222 = vmatpush.msra.mxu0 %v1221
          %v1223 = vand.u32 %v354, 4294901760
          %1224 = vmatpush.msra.mxu0 %v1223
          %v1225 = vand.u32 %v352, 4294901760
          %1226 = vmatpush.msra.mxu0 %v1225
          %v1227 = vand.u32 %v350, 4294901760
          %1228 = vmatpush.msra.mxu0 %v1227
          %v1229 = vand.u32 %v348, 4294901760
          %1230 = vmatpush.msra.mxu0 %v1229
          %v1231 = vand.u32 %v302, 4294901760
          %1232 = vmatmul.f32.gmra.mxu0 %v1231
          %v1233 = vpop.f32.mrf.mxu0
          %v1234 = vadd.f32 %v1185, %v1233
          %v1235 = vand.u32 %v304, 4294901760
          %1236 = vmatmul.f32.gmra.mxu0 %v1235
          %v1237 = vpop.f32.mrf.mxu0
          %v1238 = vadd.f32 %v1189, %v1237
          %v1239 = vand.u32 %v306, 4294901760
          %1240 = vmatmul.f32.gmra.mxu0 %v1239
          %v1241 = vpop.f32.mrf.mxu0
          %v1242 = vadd.f32 %v1193, %v1241
          %v1243 = vand.u32 %v308, 4294901760
          %1244 = vmatmul.f32.gmra.mxu0 %v1243
          %v1245 = vpop.f32.mrf.mxu0
          %v1246 = vadd.f32 %v1197, %v1245
          %1247 = vdwg.mxu0
          %v1248 = vand.u32 %v347, 4294901760
          %1249 = vmatpush.msra.mxu0 %v1248
          %v1250 = vand.u32 %v345, 4294901760
          %1251 = vmatpush.msra.mxu0 %v1250
          %v1252 = vand.u32 %v343, 4294901760
          %1253 = vmatpush.msra.mxu0 %v1252
          %v1254 = vand.u32 %v341, 4294901760
          %1255 = vmatpush.msra.mxu0 %v1254
          %v1256 = vand.u32 %v339, 4294901760
          %1257 = vmatpush.msra.mxu0 %v1256
          %v1258 = vand.u32 %v337, 4294901760
          %1259 = vmatpush.msra.mxu0 %v1258
          %v1260 = vand.u32 %v335, 4294901760
          %1261 = vmatpush.msra.mxu0 %v1260
          %v1262 = vand.u32 %v333, 4294901760
          %1263 = vmatpush.msra.mxu0 %v1262
          %v1264 = vand.u32 %v331, 4294901760
          %1265 = vmatpush.msra.mxu0 %v1264
          %v1266 = vand.u32 %v329, 4294901760
          %1267 = vmatpush.msra.mxu0 %v1266
          %v1268 = vand.u32 %v327, 4294901760
          %1269 = vmatpush.msra.mxu0 %v1268
          %v1270 = vand.u32 %v325, 4294901760
          %1271 = vmatpush.msra.mxu0 %v1270
          %v1272 = vand.u32 %v323, 4294901760
          %1273 = vmatpush.msra.mxu0 %v1272
          %v1274 = vand.u32 %v321, 4294901760
          %1275 = vmatpush.msra.mxu0 %v1274
          %v1276 = vand.u32 %v319, 4294901760
          %1277 = vmatpush.msra.mxu0 %v1276
          %v1278 = vand.u32 %v317, 4294901760
          %1279 = vmatpush.msra.mxu0 %v1278
          %v1280 = vand.u32 %v301, 4294901760
          %v1281 = vsub.f32 %v301, %v1280
          %v1282 = vand.u32 %v1281, 4294901760
          %v1283 = vsub.f32 %v1281, %v1282
          %v1284 = vand.u32 %v1283, 4294901760
          %1285 = vmatmul.f32.gmra.mxu0 %v1284
          %v1286 = vpop.f32.mrf.mxu0
          %v1287 = vadd.f32 0.0, %v1286
          %v1288 = vand.u32 %v303, 4294901760
          %v1289 = vsub.f32 %v303, %v1288
          %v1290 = vand.u32 %v1289, 4294901760
          %v1291 = vsub.f32 %v1289, %v1290
          %v1292 = vand.u32 %v1291, 4294901760
          %1293 = vmatmul.f32.gmra.mxu0 %v1292
          %v1294 = vpop.f32.mrf.mxu0
          %v1295 = vadd.f32 0.0, %v1294
          %v1296 = vand.u32 %v305, 4294901760
          %v1297 = vsub.f32 %v305, %v1296
          %v1298 = vand.u32 %v1297, 4294901760
          %v1299 = vsub.f32 %v1297, %v1298
          %v1300 = vand.u32 %v1299, 4294901760
          %1301 = vmatmul.f32.gmra.mxu0 %v1300
          %v1302 = vpop.f32.mrf.mxu0
          %v1303 = vadd.f32 0.0, %v1302
          %v1304 = vand.u32 %v307, 4294901760
          %v1305 = vsub.f32 %v307, %v1304
          %v1306 = vand.u32 %v1305, 4294901760
          %v1307 = vsub.f32 %v1305, %v1306
          %v1308 = vand.u32 %v1307, 4294901760
          %1309 = vmatmul.f32.gmra.mxu0 %v1308
          %v1310 = vpop.f32.mrf.mxu0
          %v1311 = vadd.f32 0.0, %v1310
          %1312 = vdwg.mxu0
          %v1313 = vand.u32 %v347, 4294901760
          %v1314 = vsub.f32 %v347, %v1313
          %v1315 = vand.u32 %v1314, 4294901760
          %v1316 = vsub.f32 %v1314, %v1315
          %v1317 = vand.u32 %v1316, 4294901760
          %1318 = vmatpush.msra.mxu0 %v1317
          %v1319 = vand.u32 %v345, 4294901760
          %v1320 = vsub.f32 %v345, %v1319
          %v1321 = vand.u32 %v1320, 4294901760
          %v1322 = vsub.f32 %v1320, %v1321
          %v1323 = vand.u32 %v1322, 4294901760
          %1324 = vmatpush.msra.mxu0 %v1323
          %v1325 = vand.u32 %v343, 4294901760
          %v1326 = vsub.f32 %v343, %v1325
          %v1327 = vand.u32 %v1326, 4294901760
          %v1328 = vsub.f32 %v1326, %v1327
          %v1329 = vand.u32 %v1328, 4294901760
          %1330 = vmatpush.msra.mxu0 %v1329
          %v1331 = vand.u32 %v341, 4294901760
          %v1332 = vsub.f32 %v341, %v1331
          %v1333 = vand.u32 %v1332, 4294901760
          %v1334 = vsub.f32 %v1332, %v1333
          %v1335 = vand.u32 %v1334, 4294901760
          %1336 = vmatpush.msra.mxu0 %v1335
          %v1337 = vand.u32 %v339, 4294901760
          %v1338 = vsub.f32 %v339, %v1337
          %v1339 = vand.u32 %v1338, 4294901760
          %v1340 = vsub.f32 %v1338, %v1339
          %v1341 = vand.u32 %v1340, 4294901760
          %1342 = vmatpush.msra.mxu0 %v1341
          %v1343 = vand.u32 %v337, 4294901760
          %v1344 = vsub.f32 %v337, %v1343
          %v1345 = vand.u32 %v1344, 4294901760
          %v1346 = vsub.f32 %v1344, %v1345
          %v1347 = vand.u32 %v1346, 4294901760
          %1348 = vmatpush.msra.mxu0 %v1347
          %v1349 = vand.u32 %v335, 4294901760
          %v1350 = vsub.f32 %v335, %v1349
          %v1351 = vand.u32 %v1350, 4294901760
          %v1352 = vsub.f32 %v1350, %v1351
          %v1353 = vand.u32 %v1352, 4294901760
          %1354 = vmatpush.msra.mxu0 %v1353
          %v1355 = vand.u32 %v333, 4294901760
          %v1356 = vsub.f32 %v333, %v1355
          %v1357 = vand.u32 %v1356, 4294901760
          %v1358 = vsub.f32 %v1356, %v1357
          %v1359 = vand.u32 %v1358, 4294901760
          %1360 = vmatpush.msra.mxu0 %v1359
          %v1361 = vand.u32 %v331, 4294901760
          %v1362 = vsub.f32 %v331, %v1361
          %v1363 = vand.u32 %v1362, 4294901760
          %v1364 = vsub.f32 %v1362, %v1363
          %v1365 = vand.u32 %v1364, 4294901760
          %1366 = vmatpush.msra.mxu0 %v1365
          %v1367 = vand.u32 %v329, 4294901760
          %v1368 = vsub.f32 %v329, %v1367
          %v1369 = vand.u32 %v1368, 4294901760
          %v1370 = vsub.f32 %v1368, %v1369
          %v1371 = vand.u32 %v1370, 4294901760
          %1372 = vmatpush.msra.mxu0 %v1371
          %v1373 = vand.u32 %v327, 4294901760
          %v1374 = vsub.f32 %v327, %v1373
          %v1375 = vand.u32 %v1374, 4294901760
          %v1376 = vsub.f32 %v1374, %v1375
          %v1377 = vand.u32 %v1376, 4294901760
          %1378 = vmatpush.msra.mxu0 %v1377
          %v1379 = vand.u32 %v325, 4294901760
          %v1380 = vsub.f32 %v325, %v1379
          %v1381 = vand.u32 %v1380, 4294901760
          %v1382 = vsub.f32 %v1380, %v1381
          %v1383 = vand.u32 %v1382, 4294901760
          %1384 = vmatpush.msra.mxu0 %v1383
          %v1385 = vand.u32 %v323, 4294901760
          %v1386 = vsub.f32 %v323, %v1385
          %v1387 = vand.u32 %v1386, 4294901760
          %v1388 = vsub.f32 %v1386, %v1387
          %v1389 = vand.u32 %v1388, 4294901760
          %1390 = vmatpush.msra.mxu0 %v1389
          %v1391 = vand.u32 %v321, 4294901760
          %v1392 = vsub.f32 %v321, %v1391
          %v1393 = vand.u32 %v1392, 4294901760
          %v1394 = vsub.f32 %v1392, %v1393
          %v1395 = vand.u32 %v1394, 4294901760
          %1396 = vmatpush.msra.mxu0 %v1395
          %v1397 = vand.u32 %v319, 4294901760
          %v1398 = vsub.f32 %v319, %v1397
          %v1399 = vand.u32 %v1398, 4294901760
          %v1400 = vsub.f32 %v1398, %v1399
          %v1401 = vand.u32 %v1400, 4294901760
          %1402 = vmatpush.msra.mxu0 %v1401
          %v1403 = vand.u32 %v317, 4294901760
          %v1404 = vsub.f32 %v317, %v1403
          %v1405 = vand.u32 %v1404, 4294901760
          %v1406 = vsub.f32 %v1404, %v1405
          %v1407 = vand.u32 %v1406, 4294901760
          %1408 = vmatpush.msra.mxu0 %v1407
          %v1409 = vand.u32 %v301, 4294901760
          %1410 = vmatmul.f32.gmra.mxu0 %v1409
          %v1411 = vpop.f32.mrf.mxu0
          %v1412 = vadd.f32 %v1287, %v1411
          %v1413 = vand.u32 %v303, 4294901760
          %1414 = vmatmul.f32.gmra.mxu0 %v1413
          %v1415 = vpop.f32.mrf.mxu0
          %v1416 = vadd.f32 %v1295, %v1415
          %v1417 = vand.u32 %v305, 4294901760
          %1418 = vmatmul.f32.gmra.mxu0 %v1417
          %v1419 = vpop.f32.mrf.mxu0
          %v1420 = vadd.f32 %v1303, %v1419
          %v1421 = vand.u32 %v307, 4294901760
          %1422 = vmatmul.f32.gmra.mxu0 %v1421
          %v1423 = vpop.f32.mrf.mxu0
          %v1424 = vadd.f32 %v1311, %v1423
          %1425 = vdwg.mxu0
          %v1426 = vand.u32 %v347, 4294901760
          %v1427 = vsub.f32 %v347, %v1426
          %1428 = vmatpush.msra.mxu0 %v1427
          %v1429 = vand.u32 %v345, 4294901760
          %v1430 = vsub.f32 %v345, %v1429
          %1431 = vmatpush.msra.mxu0 %v1430
          %v1432 = vand.u32 %v343, 4294901760
          %v1433 = vsub.f32 %v343, %v1432
          %1434 = vmatpush.msra.mxu0 %v1433
          %v1435 = vand.u32 %v341, 4294901760
          %v1436 = vsub.f32 %v341, %v1435
          %1437 = vmatpush.msra.mxu0 %v1436
          %v1438 = vand.u32 %v339, 4294901760
          %v1439 = vsub.f32 %v339, %v1438
          %1440 = vmatpush.msra.mxu0 %v1439
          %v1441 = vand.u32 %v337, 4294901760
          %v1442 = vsub.f32 %v337, %v1441
          %1443 = vmatpush.msra.mxu0 %v1442
          %v1444 = vand.u32 %v335, 4294901760
          %v1445 = vsub.f32 %v335, %v1444
          %1446 = vmatpush.msra.mxu0 %v1445
          %v1447 = vand.u32 %v333, 4294901760
          %v1448 = vsub.f32 %v333, %v1447
          %1449 = vmatpush.msra.mxu0 %v1448
          %v1450 = vand.u32 %v331, 4294901760
          %v1451 = vsub.f32 %v331, %v1450
          %1452 = vmatpush.msra.mxu0 %v1451
          %v1453 = vand.u32 %v329, 4294901760
          %v1454 = vsub.f32 %v329, %v1453
          %1455 = vmatpush.msra.mxu0 %v1454
          %v1456 = vand.u32 %v327, 4294901760
          %v1457 = vsub.f32 %v327, %v1456
          %1458 = vmatpush.msra.mxu0 %v1457
          %v1459 = vand.u32 %v325, 4294901760
          %v1460 = vsub.f32 %v325, %v1459
          %1461 = vmatpush.msra.mxu0 %v1460
          %v1462 = vand.u32 %v323, 4294901760
          %v1463 = vsub.f32 %v323, %v1462
          %1464 = vmatpush.msra.mxu0 %v1463
          %v1465 = vand.u32 %v321, 4294901760
          %v1466 = vsub.f32 %v321, %v1465
          %1467 = vmatpush.msra.mxu0 %v1466
          %v1468 = vand.u32 %v319, 4294901760
          %v1469 = vsub.f32 %v319, %v1468
          %1470 = vmatpush.msra.mxu0 %v1469
          %v1471 = vand.u32 %v317, 4294901760
          %v1472 = vsub.f32 %v317, %v1471
          %1473 = vmatpush.msra.mxu0 %v1472
          %v1474 = vand.u32 %v301, 4294901760
          %v1475 = vsub.f32 %v301, %v1474
          %1476 = vmatmul.f32.gmra.mxu0 %v1475
          %v1477 = vpop.f32.mrf.mxu0
          %v1478 = vadd.f32 %v1412, %v1477
          %v1479 = vand.u32 %v303, 4294901760
          %v1480 = vsub.f32 %v303, %v1479
          %1481 = vmatmul.f32.gmra.mxu0 %v1480
          %v1482 = vpop.f32.mrf.mxu0
          %v1483 = vadd.f32 %v1416, %v1482
          %v1484 = vand.u32 %v305, 4294901760
          %v1485 = vsub.f32 %v305, %v1484
          %1486 = vmatmul.f32.gmra.mxu0 %v1485
          %v1487 = vpop.f32.mrf.mxu0
          %v1488 = vadd.f32 %v1420, %v1487
          %v1489 = vand.u32 %v307, 4294901760
          %v1490 = vsub.f32 %v307, %v1489
          %1491 = vmatmul.f32.gmra.mxu0 %v1490
          %v1492 = vpop.f32.mrf.mxu0
          %v1493 = vadd.f32 %v1424, %v1492
          %1494 = vdwg.mxu0
          %v1495 = vand.u32 %v347, 4294901760
          %1496 = vmatpush.msra.mxu0 %v1495
          %v1497 = vand.u32 %v345, 4294901760
          %1498 = vmatpush.msra.mxu0 %v1497
          %v1499 = vand.u32 %v343, 4294901760
          %1500 = vmatpush.msra.mxu0 %v1499
          %v1501 = vand.u32 %v341, 4294901760
          %1502 = vmatpush.msra.mxu0 %v1501
          %v1503 = vand.u32 %v339, 4294901760
          %1504 = vmatpush.msra.mxu0 %v1503
          %v1505 = vand.u32 %v337, 4294901760
          %1506 = vmatpush.msra.mxu0 %v1505
          %v1507 = vand.u32 %v335, 4294901760
          %1508 = vmatpush.msra.mxu0 %v1507
          %v1509 = vand.u32 %v333, 4294901760
          %1510 = vmatpush.msra.mxu0 %v1509
          %v1511 = vand.u32 %v331, 4294901760
          %1512 = vmatpush.msra.mxu0 %v1511
          %v1513 = vand.u32 %v329, 4294901760
          %1514 = vmatpush.msra.mxu0 %v1513
          %v1515 = vand.u32 %v327, 4294901760
          %1516 = vmatpush.msra.mxu0 %v1515
          %v1517 = vand.u32 %v325, 4294901760
          %1518 = vmatpush.msra.mxu0 %v1517
          %v1519 = vand.u32 %v323, 4294901760
          %1520 = vmatpush.msra.mxu0 %v1519
          %v1521 = vand.u32 %v321, 4294901760
          %1522 = vmatpush.msra.mxu0 %v1521
          %v1523 = vand.u32 %v319, 4294901760
          %1524 = vmatpush.msra.mxu0 %v1523
          %v1525 = vand.u32 %v317, 4294901760
          %1526 = vmatpush.msra.mxu0 %v1525
          %v1527 = vand.u32 %v301, 4294901760
          %v1528 = vsub.f32 %v301, %v1527
          %v1529 = vand.u32 %v1528, 4294901760
          %1530 = vmatmul.f32.gmra.mxu0 %v1529
          %v1531 = vpop.f32.mrf.mxu0
          %v1532 = vadd.f32 %v1478, %v1531
          %v1533 = vand.u32 %v303, 4294901760
          %v1534 = vsub.f32 %v303, %v1533
          %v1535 = vand.u32 %v1534, 4294901760
          %1536 = vmatmul.f32.gmra.mxu0 %v1535
          %v1537 = vpop.f32.mrf.mxu0
          %v1538 = vadd.f32 %v1483, %v1537
          %v1539 = vand.u32 %v305, 4294901760
          %v1540 = vsub.f32 %v305, %v1539
          %v1541 = vand.u32 %v1540, 4294901760
          %1542 = vmatmul.f32.gmra.mxu0 %v1541
          %v1543 = vpop.f32.mrf.mxu0
          %v1544 = vadd.f32 %v1488, %v1543
          %v1545 = vand.u32 %v307, 4294901760
          %v1546 = vsub.f32 %v307, %v1545
          %v1547 = vand.u32 %v1546, 4294901760
          %1548 = vmatmul.f32.gmra.mxu0 %v1547
          %v1549 = vpop.f32.mrf.mxu0
          %v1550 = vadd.f32 %v1493, %v1549
          %1551 = vdwg.mxu0
          %v1552 = vand.u32 %v347, 4294901760
          %v1553 = vsub.f32 %v347, %v1552
          %v1554 = vand.u32 %v1553, 4294901760
          %1555 = vmatpush.msra.mxu0 %v1554
          %v1556 = vand.u32 %v345, 4294901760
          %v1557 = vsub.f32 %v345, %v1556
          %v1558 = vand.u32 %v1557, 4294901760
          %1559 = vmatpush.msra.mxu0 %v1558
          %v1560 = vand.u32 %v343, 4294901760
          %v1561 = vsub.f32 %v343, %v1560
          %v1562 = vand.u32 %v1561, 4294901760
          %1563 = vmatpush.msra.mxu0 %v1562
          %v1564 = vand.u32 %v341, 4294901760
          %v1565 = vsub.f32 %v341, %v1564
          %v1566 = vand.u32 %v1565, 4294901760
          %1567 = vmatpush.msra.mxu0 %v1566
          %v1568 = vand.u32 %v339, 4294901760
          %v1569 = vsub.f32 %v339, %v1568
          %v1570 = vand.u32 %v1569, 4294901760
          %1571 = vmatpush.msra.mxu0 %v1570
          %v1572 = vand.u32 %v337, 4294901760
          %v1573 = vsub.f32 %v337, %v1572
          %v1574 = vand.u32 %v1573, 4294901760
          %1575 = vmatpush.msra.mxu0 %v1574
          %v1576 = vand.u32 %v335, 4294901760
          %v1577 = vsub.f32 %v335, %v1576
          %v1578 = vand.u32 %v1577, 4294901760
          %1579 = vmatpush.msra.mxu0 %v1578
          %v1580 = vand.u32 %v333, 4294901760
          %v1581 = vsub.f32 %v333, %v1580
          %v1582 = vand.u32 %v1581, 4294901760
          %1583 = vmatpush.msra.mxu0 %v1582
          %v1584 = vand.u32 %v331, 4294901760
          %v1585 = vsub.f32 %v331, %v1584
          %v1586 = vand.u32 %v1585, 4294901760
          %1587 = vmatpush.msra.mxu0 %v1586
          %v1588 = vand.u32 %v329, 4294901760
          %v1589 = vsub.f32 %v329, %v1588
          %v1590 = vand.u32 %v1589, 4294901760
          %1591 = vmatpush.msra.mxu0 %v1590
          %v1592 = vand.u32 %v327, 4294901760
          %v1593 = vsub.f32 %v327, %v1592
          %v1594 = vand.u32 %v1593, 4294901760
          %1595 = vmatpush.msra.mxu0 %v1594
          %v1596 = vand.u32 %v325, 4294901760
          %v1597 = vsub.f32 %v325, %v1596
          %v1598 = vand.u32 %v1597, 4294901760
          %1599 = vmatpush.msra.mxu0 %v1598
          %v1600 = vand.u32 %v323, 4294901760
          %v1601 = vsub.f32 %v323, %v1600
          %v1602 = vand.u32 %v1601, 4294901760
          %1603 = vmatpush.msra.mxu0 %v1602
          %v1604 = vand.u32 %v321, 4294901760
          %v1605 = vsub.f32 %v321, %v1604
          %v1606 = vand.u32 %v1605, 4294901760
          %1607 = vmatpush.msra.mxu0 %v1606
          %v1608 = vand.u32 %v319, 4294901760
          %v1609 = vsub.f32 %v319, %v1608
          %v1610 = vand.u32 %v1609, 4294901760
          %1611 = vmatpush.msra.mxu0 %v1610
          %v1612 = vand.u32 %v317, 4294901760
          %v1613 = vsub.f32 %v317, %v1612
          %v1614 = vand.u32 %v1613, 4294901760
          %1615 = vmatpush.msra.mxu0 %v1614
          %v1616 = vand.u32 %v301, 4294901760
          %1617 = vmatmul.f32.gmra.mxu0 %v1616
          %v1618 = vpop.f32.mrf.mxu0
          %v1619 = vadd.f32 %v1532, %v1618
          %v1620 = vand.u32 %v303, 4294901760
          %1621 = vmatmul.f32.gmra.mxu0 %v1620
          %v1622 = vpop.f32.mrf.mxu0
          %v1623 = vadd.f32 %v1538, %v1622
          %v1624 = vand.u32 %v305, 4294901760
          %1625 = vmatmul.f32.gmra.mxu0 %v1624
          %v1626 = vpop.f32.mrf.mxu0
          %v1627 = vadd.f32 %v1544, %v1626
          %v1628 = vand.u32 %v307, 4294901760
          %1629 = vmatmul.f32.gmra.mxu0 %v1628
          %v1630 = vpop.f32.mrf.mxu0
          %v1631 = vadd.f32 %v1550, %v1630
          %1632 = vdwg.mxu0
          %v1633 = vand.u32 %v347, 4294901760
          %1634 = vmatpush.msra.mxu0 %v1633
          %v1635 = vand.u32 %v345, 4294901760
          %1636 = vmatpush.msra.mxu0 %v1635
          %v1637 = vand.u32 %v343, 4294901760
          %1638 = vmatpush.msra.mxu0 %v1637
          %v1639 = vand.u32 %v341, 4294901760
          %1640 = vmatpush.msra.mxu0 %v1639
          %v1641 = vand.u32 %v339, 4294901760
          %1642 = vmatpush.msra.mxu0 %v1641
          %v1643 = vand.u32 %v337, 4294901760
          %1644 = vmatpush.msra.mxu0 %v1643
          %v1645 = vand.u32 %v335, 4294901760
          %1646 = vmatpush.msra.mxu0 %v1645
          %v1647 = vand.u32 %v333, 4294901760
          %1648 = vmatpush.msra.mxu0 %v1647
          %v1649 = vand.u32 %v331, 4294901760
          %1650 = vmatpush.msra.mxu0 %v1649
          %v1651 = vand.u32 %v329, 4294901760
          %1652 = vmatpush.msra.mxu0 %v1651
          %v1653 = vand.u32 %v327, 4294901760
          %1654 = vmatpush.msra.mxu0 %v1653
          %v1655 = vand.u32 %v325, 4294901760
          %1656 = vmatpush.msra.mxu0 %v1655
          %v1657 = vand.u32 %v323, 4294901760
          %1658 = vmatpush.msra.mxu0 %v1657
          %v1659 = vand.u32 %v321, 4294901760
          %1660 = vmatpush.msra.mxu0 %v1659
          %v1661 = vand.u32 %v319, 4294901760
          %1662 = vmatpush.msra.mxu0 %v1661
          %v1663 = vand.u32 %v317, 4294901760
          %1664 = vmatpush.msra.mxu0 %v1663
          %v1665 = vand.u32 %v301, 4294901760
          %1666 = vmatmul.f32.gmra.mxu0 %v1665
          %v1667 = vpop.f32.mrf.mxu0
          %v1668 = vadd.f32 %v1619, %v1667
          %v1669 = vand.u32 %v303, 4294901760
          %1670 = vmatmul.f32.gmra.mxu0 %v1669
          %v1671 = vpop.f32.mrf.mxu0
          %v1672 = vadd.f32 %v1623, %v1671
          %v1673 = vand.u32 %v305, 4294901760
          %1674 = vmatmul.f32.gmra.mxu0 %v1673
          %v1675 = vpop.f32.mrf.mxu0
          %v1676 = vadd.f32 %v1627, %v1675
          %v1677 = vand.u32 %v307, 4294901760
          %1678 = vmatmul.f32.gmra.mxu0 %v1677
          %v1679 = vpop.f32.mrf.mxu0
          %v1680 = vadd.f32 %v1631, %v1679
          %1681 = vdwg.mxu0
          %v1682 = vand.u32 %v379, 4294901760
          %1683 = vmatpush.msra.mxu0 %v1682
          %v1684 = vand.u32 %v377, 4294901760
          %1685 = vmatpush.msra.mxu0 %v1684
          %v1686 = vand.u32 %v375, 4294901760
          %1687 = vmatpush.msra.mxu0 %v1686
          %v1688 = vand.u32 %v373, 4294901760
          %1689 = vmatpush.msra.mxu0 %v1688
          %v1690 = vand.u32 %v371, 4294901760
          %1691 = vmatpush.msra.mxu0 %v1690
          %v1692 = vand.u32 %v369, 4294901760
          %1693 = vmatpush.msra.mxu0 %v1692
          %v1694 = vand.u32 %v367, 4294901760
          %1695 = vmatpush.msra.mxu0 %v1694
          %v1696 = vand.u32 %v365, 4294901760
          %1697 = vmatpush.msra.mxu0 %v1696
          %v1698 = vand.u32 %v363, 4294901760
          %1699 = vmatpush.msra.mxu0 %v1698
          %v1700 = vand.u32 %v361, 4294901760
          %1701 = vmatpush.msra.mxu0 %v1700
          %v1702 = vand.u32 %v359, 4294901760
          %1703 = vmatpush.msra.mxu0 %v1702
          %v1704 = vand.u32 %v357, 4294901760
          %1705 = vmatpush.msra.mxu0 %v1704
          %v1706 = vand.u32 %v355, 4294901760
          %1707 = vmatpush.msra.mxu0 %v1706
          %v1708 = vand.u32 %v353, 4294901760
          %1709 = vmatpush.msra.mxu0 %v1708
          %v1710 = vand.u32 %v351, 4294901760
          %1711 = vmatpush.msra.mxu0 %v1710
          %v1712 = vand.u32 %v349, 4294901760
          %1713 = vmatpush.msra.mxu0 %v1712
          %v1714 = vand.u32 %v302, 4294901760
          %v1715 = vsub.f32 %v302, %v1714
          %v1716 = vand.u32 %v1715, 4294901760
          %v1717 = vsub.f32 %v1715, %v1716
          %v1718 = vand.u32 %v1717, 4294901760
          %1719 = vmatmul.f32.gmra.mxu0 %v1718
          %v1720 = vpop.f32.mrf.mxu0
          %v1721 = vadd.f32 %v1668, %v1720
          %v1722 = vand.u32 %v304, 4294901760
          %v1723 = vsub.f32 %v304, %v1722
          %v1724 = vand.u32 %v1723, 4294901760
          %v1725 = vsub.f32 %v1723, %v1724
          %v1726 = vand.u32 %v1725, 4294901760
          %1727 = vmatmul.f32.gmra.mxu0 %v1726
          %v1728 = vpop.f32.mrf.mxu0
          %v1729 = vadd.f32 %v1672, %v1728
          %v1730 = vand.u32 %v306, 4294901760
          %v1731 = vsub.f32 %v306, %v1730
          %v1732 = vand.u32 %v1731, 4294901760
          %v1733 = vsub.f32 %v1731, %v1732
          %v1734 = vand.u32 %v1733, 4294901760
          %1735 = vmatmul.f32.gmra.mxu0 %v1734
          %v1736 = vpop.f32.mrf.mxu0
          %v1737 = vadd.f32 %v1676, %v1736
          %v1738 = vand.u32 %v308, 4294901760
          %v1739 = vsub.f32 %v308, %v1738
          %v1740 = vand.u32 %v1739, 4294901760
          %v1741 = vsub.f32 %v1739, %v1740
          %v1742 = vand.u32 %v1741, 4294901760
          %1743 = vmatmul.f32.gmra.mxu0 %v1742
          %v1744 = vpop.f32.mrf.mxu0
          %v1745 = vadd.f32 %v1680, %v1744
          %1746 = vdwg.mxu0
          %v1747 = vand.u32 %v379, 4294901760
          %v1748 = vsub.f32 %v379, %v1747
          %v1749 = vand.u32 %v1748, 4294901760
          %v1750 = vsub.f32 %v1748, %v1749
          %v1751 = vand.u32 %v1750, 4294901760
          %1752 = vmatpush.msra.mxu0 %v1751
          %v1753 = vand.u32 %v377, 4294901760
          %v1754 = vsub.f32 %v377, %v1753
          %v1755 = vand.u32 %v1754, 4294901760
          %v1756 = vsub.f32 %v1754, %v1755
          %v1757 = vand.u32 %v1756, 4294901760
          %1758 = vmatpush.msra.mxu0 %v1757
          %v1759 = vand.u32 %v375, 4294901760
          %v1760 = vsub.f32 %v375, %v1759
          %v1761 = vand.u32 %v1760, 4294901760
          %v1762 = vsub.f32 %v1760, %v1761
          %v1763 = vand.u32 %v1762, 4294901760
          %1764 = vmatpush.msra.mxu0 %v1763
          %v1765 = vand.u32 %v373, 4294901760
          %v1766 = vsub.f32 %v373, %v1765
          %v1767 = vand.u32 %v1766, 4294901760
          %v1768 = vsub.f32 %v1766, %v1767
          %v1769 = vand.u32 %v1768, 4294901760
          %1770 = vmatpush.msra.mxu0 %v1769
          %v1771 = vand.u32 %v371, 4294901760
          %v1772 = vsub.f32 %v371, %v1771
          %v1773 = vand.u32 %v1772, 4294901760
          %v1774 = vsub.f32 %v1772, %v1773
          %v1775 = vand.u32 %v1774, 4294901760
          %1776 = vmatpush.msra.mxu0 %v1775
          %v1777 = vand.u32 %v369, 4294901760
          %v1778 = vsub.f32 %v369, %v1777
          %v1779 = vand.u32 %v1778, 4294901760
          %v1780 = vsub.f32 %v1778, %v1779
          %v1781 = vand.u32 %v1780, 4294901760
          %1782 = vmatpush.msra.mxu0 %v1781
          %v1783 = vand.u32 %v367, 4294901760
          %v1784 = vsub.f32 %v367, %v1783
          %v1785 = vand.u32 %v1784, 4294901760
          %v1786 = vsub.f32 %v1784, %v1785
          %v1787 = vand.u32 %v1786, 4294901760
          %1788 = vmatpush.msra.mxu0 %v1787
          %v1789 = vand.u32 %v365, 4294901760
          %v1790 = vsub.f32 %v365, %v1789
          %v1791 = vand.u32 %v1790, 4294901760
          %v1792 = vsub.f32 %v1790, %v1791
          %v1793 = vand.u32 %v1792, 4294901760
          %1794 = vmatpush.msra.mxu0 %v1793
          %v1795 = vand.u32 %v363, 4294901760
          %v1796 = vsub.f32 %v363, %v1795
          %v1797 = vand.u32 %v1796, 4294901760
          %v1798 = vsub.f32 %v1796, %v1797
          %v1799 = vand.u32 %v1798, 4294901760
          %1800 = vmatpush.msra.mxu0 %v1799
          %v1801 = vand.u32 %v361, 4294901760
          %v1802 = vsub.f32 %v361, %v1801
          %v1803 = vand.u32 %v1802, 4294901760
          %v1804 = vsub.f32 %v1802, %v1803
          %v1805 = vand.u32 %v1804, 4294901760
          %1806 = vmatpush.msra.mxu0 %v1805
          %v1807 = vand.u32 %v359, 4294901760
          %v1808 = vsub.f32 %v359, %v1807
          %v1809 = vand.u32 %v1808, 4294901760
          %v1810 = vsub.f32 %v1808, %v1809
          %v1811 = vand.u32 %v1810, 4294901760
          %1812 = vmatpush.msra.mxu0 %v1811
          %v1813 = vand.u32 %v357, 4294901760
          %v1814 = vsub.f32 %v357, %v1813
          %v1815 = vand.u32 %v1814, 4294901760
          %v1816 = vsub.f32 %v1814, %v1815
          %v1817 = vand.u32 %v1816, 4294901760
          %1818 = vmatpush.msra.mxu0 %v1817
          %v1819 = vand.u32 %v355, 4294901760
          %v1820 = vsub.f32 %v355, %v1819
          %v1821 = vand.u32 %v1820, 4294901760
          %v1822 = vsub.f32 %v1820, %v1821
          %v1823 = vand.u32 %v1822, 4294901760
          %1824 = vmatpush.msra.mxu0 %v1823
          %v1825 = vand.u32 %v353, 4294901760
          %v1826 = vsub.f32 %v353, %v1825
          %v1827 = vand.u32 %v1826, 4294901760
          %v1828 = vsub.f32 %v1826, %v1827
          %v1829 = vand.u32 %v1828, 4294901760
          %1830 = vmatpush.msra.mxu0 %v1829
          %v1831 = vand.u32 %v351, 4294901760
          %v1832 = vsub.f32 %v351, %v1831
          %v1833 = vand.u32 %v1832, 4294901760
          %v1834 = vsub.f32 %v1832, %v1833
          %v1835 = vand.u32 %v1834, 4294901760
          %1836 = vmatpush.msra.mxu0 %v1835
          %v1837 = vand.u32 %v349, 4294901760
          %v1838 = vsub.f32 %v349, %v1837
          %v1839 = vand.u32 %v1838, 4294901760
          %v1840 = vsub.f32 %v1838, %v1839
          %v1841 = vand.u32 %v1840, 4294901760
          %1842 = vmatpush.msra.mxu0 %v1841
          %v1843 = vand.u32 %v302, 4294901760
          %1844 = vmatmul.f32.gmra.mxu0 %v1843
          %v1845 = vpop.f32.mrf.mxu0
          %v1846 = vadd.f32 %v1721, %v1845
          %v1847 = vand.u32 %v304, 4294901760
          %1848 = vmatmul.f32.gmra.mxu0 %v1847
          %v1849 = vpop.f32.mrf.mxu0
          %v1850 = vadd.f32 %v1729, %v1849
          %v1851 = vand.u32 %v306, 4294901760
          %1852 = vmatmul.f32.gmra.mxu0 %v1851
          %v1853 = vpop.f32.mrf.mxu0
          %v1854 = vadd.f32 %v1737, %v1853
          %v1855 = vand.u32 %v308, 4294901760
          %1856 = vmatmul.f32.gmra.mxu0 %v1855
          %v1857 = vpop.f32.mrf.mxu0
          %v1858 = vadd.f32 %v1745, %v1857
          %1859 = vdwg.mxu0
          %v1860 = vand.u32 %v379, 4294901760
          %v1861 = vsub.f32 %v379, %v1860
          %1862 = vmatpush.msra.mxu0 %v1861
          %v1863 = vand.u32 %v377, 4294901760
          %v1864 = vsub.f32 %v377, %v1863
          %1865 = vmatpush.msra.mxu0 %v1864
          %v1866 = vand.u32 %v375, 4294901760
          %v1867 = vsub.f32 %v375, %v1866
          %1868 = vmatpush.msra.mxu0 %v1867
          %v1869 = vand.u32 %v373, 4294901760
          %v1870 = vsub.f32 %v373, %v1869
          %1871 = vmatpush.msra.mxu0 %v1870
          %v1872 = vand.u32 %v371, 4294901760
          %v1873 = vsub.f32 %v371, %v1872
          %1874 = vmatpush.msra.mxu0 %v1873
          %v1875 = vand.u32 %v369, 4294901760
          %v1876 = vsub.f32 %v369, %v1875
          %1877 = vmatpush.msra.mxu0 %v1876
          %v1878 = vand.u32 %v367, 4294901760
          %v1879 = vsub.f32 %v367, %v1878
          %1880 = vmatpush.msra.mxu0 %v1879
          %v1881 = vand.u32 %v365, 4294901760
          %v1882 = vsub.f32 %v365, %v1881
          %1883 = vmatpush.msra.mxu0 %v1882
          %v1884 = vand.u32 %v363, 4294901760
          %v1885 = vsub.f32 %v363, %v1884
          %1886 = vmatpush.msra.mxu0 %v1885
          %v1887 = vand.u32 %v361, 4294901760
          %v1888 = vsub.f32 %v361, %v1887
          %1889 = vmatpush.msra.mxu0 %v1888
          %v1890 = vand.u32 %v359, 4294901760
          %v1891 = vsub.f32 %v359, %v1890
          %1892 = vmatpush.msra.mxu0 %v1891
          %v1893 = vand.u32 %v357, 4294901760
          %v1894 = vsub.f32 %v357, %v1893
          %1895 = vmatpush.msra.mxu0 %v1894
          %v1896 = vand.u32 %v355, 4294901760
          %v1897 = vsub.f32 %v355, %v1896
          %1898 = vmatpush.msra.mxu0 %v1897
          %v1899 = vand.u32 %v353, 4294901760
          %v1900 = vsub.f32 %v353, %v1899
          %1901 = vmatpush.msra.mxu0 %v1900
          %v1902 = vand.u32 %v351, 4294901760
          %v1903 = vsub.f32 %v351, %v1902
          %1904 = vmatpush.msra.mxu0 %v1903
          %v1905 = vand.u32 %v349, 4294901760
          %v1906 = vsub.f32 %v349, %v1905
          %1907 = vmatpush.msra.mxu0 %v1906
          %v1908 = vand.u32 %v302, 4294901760
          %v1909 = vsub.f32 %v302, %v1908
          %1910 = vmatmul.f32.gmra.mxu0 %v1909
          %v1911 = vpop.f32.mrf.mxu0
          %v1912 = vadd.f32 %v1846, %v1911
          %v1913 = vand.u32 %v304, 4294901760
          %v1914 = vsub.f32 %v304, %v1913
          %1915 = vmatmul.f32.gmra.mxu0 %v1914
          %v1916 = vpop.f32.mrf.mxu0
          %v1917 = vadd.f32 %v1850, %v1916
          %v1918 = vand.u32 %v306, 4294901760
          %v1919 = vsub.f32 %v306, %v1918
          %1920 = vmatmul.f32.gmra.mxu0 %v1919
          %v1921 = vpop.f32.mrf.mxu0
          %v1922 = vadd.f32 %v1854, %v1921
          %v1923 = vand.u32 %v308, 4294901760
          %v1924 = vsub.f32 %v308, %v1923
          %1925 = vmatmul.f32.gmra.mxu0 %v1924
          %v1926 = vpop.f32.mrf.mxu0
          %v1927 = vadd.f32 %v1858, %v1926
          %1928 = vdwg.mxu0
          %v1929 = vand.u32 %v379, 4294901760
          %1930 = vmatpush.msra.mxu0 %v1929
          %v1931 = vand.u32 %v377, 4294901760
          %1932 = vmatpush.msra.mxu0 %v1931
          %v1933 = vand.u32 %v375, 4294901760
          %1934 = vmatpush.msra.mxu0 %v1933
          %v1935 = vand.u32 %v373, 4294901760
          %1936 = vmatpush.msra.mxu0 %v1935
          %v1937 = vand.u32 %v371, 4294901760
          %1938 = vmatpush.msra.mxu0 %v1937
          %v1939 = vand.u32 %v369, 4294901760
          %1940 = vmatpush.msra.mxu0 %v1939
          %v1941 = vand.u32 %v367, 4294901760
          %1942 = vmatpush.msra.mxu0 %v1941
          %v1943 = vand.u32 %v365, 4294901760
          %1944 = vmatpush.msra.mxu0 %v1943
          %v1945 = vand.u32 %v363, 4294901760
          %1946 = vmatpush.msra.mxu0 %v1945
          %v1947 = vand.u32 %v361, 4294901760
          %1948 = vmatpush.msra.mxu0 %v1947
          %v1949 = vand.u32 %v359, 4294901760
          %1950 = vmatpush.msra.mxu0 %v1949
          %v1951 = vand.u32 %v357, 4294901760
          %1952 = vmatpush.msra.mxu0 %v1951
          %v1953 = vand.u32 %v355, 4294901760
          %1954 = vmatpush.msra.mxu0 %v1953
          %v1955 = vand.u32 %v353, 4294901760
          %1956 = vmatpush.msra.mxu0 %v1955
          %v1957 = vand.u32 %v351, 4294901760
          %1958 = vmatpush.msra.mxu0 %v1957
          %v1959 = vand.u32 %v349, 4294901760
          %1960 = vmatpush.msra.mxu0 %v1959
          %v1961 = vand.u32 %v302, 4294901760
          %v1962 = vsub.f32 %v302, %v1961
          %v1963 = vand.u32 %v1962, 4294901760
          %1964 = vmatmul.f32.gmra.mxu0 %v1963
          %v1965 = vpop.f32.mrf.mxu0
          %v1966 = vadd.f32 %v1912, %v1965
          %v1967 = vand.u32 %v304, 4294901760
          %v1968 = vsub.f32 %v304, %v1967
          %v1969 = vand.u32 %v1968, 4294901760
          %1970 = vmatmul.f32.gmra.mxu0 %v1969
          %v1971 = vpop.f32.mrf.mxu0
          %v1972 = vadd.f32 %v1917, %v1971
          %v1973 = vand.u32 %v306, 4294901760
          %v1974 = vsub.f32 %v306, %v1973
          %v1975 = vand.u32 %v1974, 4294901760
          %1976 = vmatmul.f32.gmra.mxu0 %v1975
          %v1977 = vpop.f32.mrf.mxu0
          %v1978 = vadd.f32 %v1922, %v1977
          %v1979 = vand.u32 %v308, 4294901760
          %v1980 = vsub.f32 %v308, %v1979
          %v1981 = vand.u32 %v1980, 4294901760
          %1982 = vmatmul.f32.gmra.mxu0 %v1981
          %v1983 = vpop.f32.mrf.mxu0
          %v1984 = vadd.f32 %v1927, %v1983
          %1985 = vdwg.mxu0
          %v1986 = vand.u32 %v379, 4294901760
          %v1987 = vsub.f32 %v379, %v1986
          %v1988 = vand.u32 %v1987, 4294901760
          %1989 = vmatpush.msra.mxu0 %v1988
          %v1990 = vand.u32 %v377, 4294901760
          %v1991 = vsub.f32 %v377, %v1990
          %v1992 = vand.u32 %v1991, 4294901760
          %1993 = vmatpush.msra.mxu0 %v1992
          %v1994 = vand.u32 %v375, 4294901760
          %v1995 = vsub.f32 %v375, %v1994
          %v1996 = vand.u32 %v1995, 4294901760
          %1997 = vmatpush.msra.mxu0 %v1996
          %v1998 = vand.u32 %v373, 4294901760
          %v1999 = vsub.f32 %v373, %v1998
          %v2000 = vand.u32 %v1999, 4294901760
          %2001 = vmatpush.msra.mxu0 %v2000
          %v2002 = vand.u32 %v371, 4294901760
          %v2003 = vsub.f32 %v371, %v2002
          %v2004 = vand.u32 %v2003, 4294901760
          %2005 = vmatpush.msra.mxu0 %v2004
          %v2006 = vand.u32 %v369, 4294901760
          %v2007 = vsub.f32 %v369, %v2006
          %v2008 = vand.u32 %v2007, 4294901760
          %2009 = vmatpush.msra.mxu0 %v2008
          %v2010 = vand.u32 %v367, 4294901760
          %v2011 = vsub.f32 %v367, %v2010
          %v2012 = vand.u32 %v2011, 4294901760
          %2013 = vmatpush.msra.mxu0 %v2012
          %v2014 = vand.u32 %v365, 4294901760
          %v2015 = vsub.f32 %v365, %v2014
          %v2016 = vand.u32 %v2015, 4294901760
          %2017 = vmatpush.msra.mxu0 %v2016
          %v2018 = vand.u32 %v363, 4294901760
          %v2019 = vsub.f32 %v363, %v2018
          %v2020 = vand.u32 %v2019, 4294901760
          %2021 = vmatpush.msra.mxu0 %v2020
          %v2022 = vand.u32 %v361, 4294901760
          %v2023 = vsub.f32 %v361, %v2022
          %v2024 = vand.u32 %v2023, 4294901760
          %2025 = vmatpush.msra.mxu0 %v2024
          %v2026 = vand.u32 %v359, 4294901760
          %v2027 = vsub.f32 %v359, %v2026
          %v2028 = vand.u32 %v2027, 4294901760
          %2029 = vmatpush.msra.mxu0 %v2028
          %v2030 = vand.u32 %v357, 4294901760
          %v2031 = vsub.f32 %v357, %v2030
          %v2032 = vand.u32 %v2031, 4294901760
          %2033 = vmatpush.msra.mxu0 %v2032
          %v2034 = vand.u32 %v355, 4294901760
          %v2035 = vsub.f32 %v355, %v2034
          %v2036 = vand.u32 %v2035, 4294901760
          %2037 = vmatpush.msra.mxu0 %v2036
          %v2038 = vand.u32 %v353, 4294901760
          %v2039 = vsub.f32 %v353, %v2038
          %v2040 = vand.u32 %v2039, 4294901760
          %2041 = vmatpush.msra.mxu0 %v2040
          %v2042 = vand.u32 %v351, 4294901760
          %v2043 = vsub.f32 %v351, %v2042
          %v2044 = vand.u32 %v2043, 4294901760
          %2045 = vmatpush.msra.mxu0 %v2044
          %v2046 = vand.u32 %v349, 4294901760
          %v2047 = vsub.f32 %v349, %v2046
          %v2048 = vand.u32 %v2047, 4294901760
          %2049 = vmatpush.msra.mxu0 %v2048
          %v2050 = vand.u32 %v302, 4294901760
          %2051 = vmatmul.f32.gmra.mxu0 %v2050
          %v2052 = vpop.f32.mrf.mxu0
          %v2053 = vadd.f32 %v1966, %v2052
          %v2054 = vand.u32 %v304, 4294901760
          %2055 = vmatmul.f32.gmra.mxu0 %v2054
          %v2056 = vpop.f32.mrf.mxu0
          %v2057 = vadd.f32 %v1972, %v2056
          %v2058 = vand.u32 %v306, 4294901760
          %2059 = vmatmul.f32.gmra.mxu0 %v2058
          %v2060 = vpop.f32.mrf.mxu0
          %v2061 = vadd.f32 %v1978, %v2060
          %v2062 = vand.u32 %v308, 4294901760
          %2063 = vmatmul.f32.gmra.mxu0 %v2062
          %v2064 = vpop.f32.mrf.mxu0
          %v2065 = vadd.f32 %v1984, %v2064
          %2066 = vdwg.mxu0
          %v2067 = vand.u32 %v379, 4294901760
          %2068 = vmatpush.msra.mxu0 %v2067
          %v2069 = vand.u32 %v377, 4294901760
          %2070 = vmatpush.msra.mxu0 %v2069
          %v2071 = vand.u32 %v375, 4294901760
          %2072 = vmatpush.msra.mxu0 %v2071
          %v2073 = vand.u32 %v373, 4294901760
          %2074 = vmatpush.msra.mxu0 %v2073
          %v2075 = vand.u32 %v371, 4294901760
          %2076 = vmatpush.msra.mxu0 %v2075
          %v2077 = vand.u32 %v369, 4294901760
          %2078 = vmatpush.msra.mxu0 %v2077
          %v2079 = vand.u32 %v367, 4294901760
          %2080 = vmatpush.msra.mxu0 %v2079
          %v2081 = vand.u32 %v365, 4294901760
          %2082 = vmatpush.msra.mxu0 %v2081
          %v2083 = vand.u32 %v363, 4294901760
          %2084 = vmatpush.msra.mxu0 %v2083
          %v2085 = vand.u32 %v361, 4294901760
          %2086 = vmatpush.msra.mxu0 %v2085
          %v2087 = vand.u32 %v359, 4294901760
          %2088 = vmatpush.msra.mxu0 %v2087
          %v2089 = vand.u32 %v357, 4294901760
          %2090 = vmatpush.msra.mxu0 %v2089
          %v2091 = vand.u32 %v355, 4294901760
          %2092 = vmatpush.msra.mxu0 %v2091
          %v2093 = vand.u32 %v353, 4294901760
          %2094 = vmatpush.msra.mxu0 %v2093
          %v2095 = vand.u32 %v351, 4294901760
          %2096 = vmatpush.msra.mxu0 %v2095
          %v2097 = vand.u32 %v349, 4294901760
          %2098 = vmatpush.msra.mxu0 %v2097
          %v2099 = vand.u32 %v302, 4294901760
          %2100 = vmatmul.f32.gmra.mxu0 %v2099
          %v2101 = vpop.f32.mrf.mxu0
          %v2102 = vadd.f32 %v2053, %v2101
          %v2103 = vand.u32 %v304, 4294901760
          %2104 = vmatmul.f32.gmra.mxu0 %v2103
          %v2105 = vpop.f32.mrf.mxu0
          %v2106 = vadd.f32 %v2057, %v2105
          %v2107 = vand.u32 %v306, 4294901760
          %2108 = vmatmul.f32.gmra.mxu0 %v2107
          %v2109 = vpop.f32.mrf.mxu0
          %v2110 = vadd.f32 %v2061, %v2109
          %v2111 = vand.u32 %v308, 4294901760
          %2112 = vmatmul.f32.gmra.mxu0 %v2111
          %v2113 = vpop.f32.mrf.mxu0
          %v2114 = vadd.f32 %v2065, %v2113
          %2115 = vdwg.mxu0
          %vm2116 = vcmask 261120
          %v2118 = vsel %vm2116, %v309, 0
          %v2121 = vsel %vm2116, %v310, 0
          %v2124 = vsel %vm2116, %v311, 0
          %v2127 = vsel %vm2116, %v312, 0
          %2129 = vmatpush.msra.mxu0 0.0
          %2130 = vmatpush.msra.mxu0 0.0
          %2131 = vmatpush.msra.mxu0 0.0
          %2132 = vmatpush.msra.mxu0 0.0
          %2133 = vmatpush.msra.mxu0 0.0
          %2134 = vmatpush.msra.mxu0 0.0
          %2135 = vmatpush.msra.mxu0 0.0
          %2136 = vmatpush.msra.mxu0 0.0
          %2137 = vmatpush.msra.mxu0 0.0
          %2138 = vmatpush.msra.mxu0 0.0
          %2139 = vmatpush.msra.mxu0 0.0
          %2140 = vmatpush.msra.mxu0 0.0
          %v2141 = vand.u32 %v1246, 4294901760
          %2142 = vmatpush.msra.mxu0 %v2141
          %v2143 = vand.u32 %v1242, 4294901760
          %2144 = vmatpush.msra.mxu0 %v2143
          %v2145 = vand.u32 %v1238, 4294901760
          %2146 = vmatpush.msra.mxu0 %v2145
          %v2147 = vand.u32 %v1234, 4294901760
          %2148 = vmatpush.msra.mxu0 %v2147
          %v2149 = vand.u32 %v2118, 4294901760
          %v2150 = vsub.f32 %v2118, %v2149
          %v2151 = vand.u32 %v2150, 4294901760
          %v2152 = vsub.f32 %v2150, %v2151
          %v2153 = vand.u32 %v2152, 4294901760
          %2154 = vmatmul.f32.gmra.mxu0 %v2153
          %v2155 = vpop.f32.mrf.mxu0
          %v2156 = vadd.f32 0.0, %v2155
          %v2157 = vand.u32 %v2121, 4294901760
          %v2158 = vsub.f32 %v2121, %v2157
          %v2159 = vand.u32 %v2158, 4294901760
          %v2160 = vsub.f32 %v2158, %v2159
          %v2161 = vand.u32 %v2160, 4294901760
          %2162 = vmatmul.f32.gmra.mxu0 %v2161
          %v2163 = vpop.f32.mrf.mxu0
          %v2164 = vadd.f32 0.0, %v2163
          %v2165 = vand.u32 %v2124, 4294901760
          %v2166 = vsub.f32 %v2124, %v2165
          %v2167 = vand.u32 %v2166, 4294901760
          %v2168 = vsub.f32 %v2166, %v2167
          %v2169 = vand.u32 %v2168, 4294901760
          %2170 = vmatmul.f32.gmra.mxu0 %v2169
          %v2171 = vpop.f32.mrf.mxu0
          %v2172 = vadd.f32 0.0, %v2171
          %v2173 = vand.u32 %v2127, 4294901760
          %v2174 = vsub.f32 %v2127, %v2173
          %v2175 = vand.u32 %v2174, 4294901760
          %v2176 = vsub.f32 %v2174, %v2175
          %v2177 = vand.u32 %v2176, 4294901760
          %2178 = vmatmul.f32.gmra.mxu0 %v2177
          %v2179 = vpop.f32.mrf.mxu0
          %v2180 = vadd.f32 0.0, %v2179
          %2181 = vdwg.mxu0
          %2182 = vmatpush.msra.mxu0 0.0
          %2183 = vmatpush.msra.mxu0 0.0
          %2184 = vmatpush.msra.mxu0 0.0
          %2185 = vmatpush.msra.mxu0 0.0
          %2186 = vmatpush.msra.mxu0 0.0
          %2187 = vmatpush.msra.mxu0 0.0
          %2188 = vmatpush.msra.mxu0 0.0
          %2189 = vmatpush.msra.mxu0 0.0
          %2190 = vmatpush.msra.mxu0 0.0
          %2191 = vmatpush.msra.mxu0 0.0
          %2192 = vmatpush.msra.mxu0 0.0
          %2193 = vmatpush.msra.mxu0 0.0
          %v2194 = vand.u32 %v1246, 4294901760
          %v2195 = vsub.f32 %v1246, %v2194
          %v2196 = vand.u32 %v2195, 4294901760
          %v2197 = vsub.f32 %v2195, %v2196
          %v2198 = vand.u32 %v2197, 4294901760
          %2199 = vmatpush.msra.mxu0 %v2198
          %v2200 = vand.u32 %v1242, 4294901760
          %v2201 = vsub.f32 %v1242, %v2200
          %v2202 = vand.u32 %v2201, 4294901760
          %v2203 = vsub.f32 %v2201, %v2202
          %v2204 = vand.u32 %v2203, 4294901760
          %2205 = vmatpush.msra.mxu0 %v2204
          %v2206 = vand.u32 %v1238, 4294901760
          %v2207 = vsub.f32 %v1238, %v2206
          %v2208 = vand.u32 %v2207, 4294901760
          %v2209 = vsub.f32 %v2207, %v2208
          %v2210 = vand.u32 %v2209, 4294901760
          %2211 = vmatpush.msra.mxu0 %v2210
          %v2212 = vand.u32 %v1234, 4294901760
          %v2213 = vsub.f32 %v1234, %v2212
          %v2214 = vand.u32 %v2213, 4294901760
          %v2215 = vsub.f32 %v2213, %v2214
          %v2216 = vand.u32 %v2215, 4294901760
          %2217 = vmatpush.msra.mxu0 %v2216
          %v2218 = vand.u32 %v2118, 4294901760
          %2219 = vmatmul.f32.gmra.mxu0 %v2218
          %v2220 = vpop.f32.mrf.mxu0
          %v2221 = vadd.f32 %v2156, %v2220
          %v2222 = vand.u32 %v2121, 4294901760
          %2223 = vmatmul.f32.gmra.mxu0 %v2222
          %v2224 = vpop.f32.mrf.mxu0
          %v2225 = vadd.f32 %v2164, %v2224
          %v2226 = vand.u32 %v2124, 4294901760
          %2227 = vmatmul.f32.gmra.mxu0 %v2226
          %v2228 = vpop.f32.mrf.mxu0
          %v2229 = vadd.f32 %v2172, %v2228
          %v2230 = vand.u32 %v2127, 4294901760
          %2231 = vmatmul.f32.gmra.mxu0 %v2230
          %v2232 = vpop.f32.mrf.mxu0
          %v2233 = vadd.f32 %v2180, %v2232
          %2234 = vdwg.mxu0
          %2235 = vmatpush.msra.mxu0 0.0
          %2236 = vmatpush.msra.mxu0 0.0
          %2237 = vmatpush.msra.mxu0 0.0
          %2238 = vmatpush.msra.mxu0 0.0
          %2239 = vmatpush.msra.mxu0 0.0
          %2240 = vmatpush.msra.mxu0 0.0
          %2241 = vmatpush.msra.mxu0 0.0
          %2242 = vmatpush.msra.mxu0 0.0
          %2243 = vmatpush.msra.mxu0 0.0
          %2244 = vmatpush.msra.mxu0 0.0
          %2245 = vmatpush.msra.mxu0 0.0
          %2246 = vmatpush.msra.mxu0 0.0
          %v2247 = vand.u32 %v1246, 4294901760
          %v2248 = vsub.f32 %v1246, %v2247
          %2249 = vmatpush.msra.mxu0 %v2248
          %v2250 = vand.u32 %v1242, 4294901760
          %v2251 = vsub.f32 %v1242, %v2250
          %2252 = vmatpush.msra.mxu0 %v2251
          %v2253 = vand.u32 %v1238, 4294901760
          %v2254 = vsub.f32 %v1238, %v2253
          %2255 = vmatpush.msra.mxu0 %v2254
          %v2256 = vand.u32 %v1234, 4294901760
          %v2257 = vsub.f32 %v1234, %v2256
          %2258 = vmatpush.msra.mxu0 %v2257
          %v2259 = vand.u32 %v2118, 4294901760
          %v2260 = vsub.f32 %v2118, %v2259
          %2261 = vmatmul.f32.gmra.mxu0 %v2260
          %v2262 = vpop.f32.mrf.mxu0
          %v2263 = vadd.f32 %v2221, %v2262
          %v2264 = vand.u32 %v2121, 4294901760
          %v2265 = vsub.f32 %v2121, %v2264
          %2266 = vmatmul.f32.gmra.mxu0 %v2265
          %v2267 = vpop.f32.mrf.mxu0
          %v2268 = vadd.f32 %v2225, %v2267
          %v2269 = vand.u32 %v2124, 4294901760
          %v2270 = vsub.f32 %v2124, %v2269
          %2271 = vmatmul.f32.gmra.mxu0 %v2270
          %v2272 = vpop.f32.mrf.mxu0
          %v2273 = vadd.f32 %v2229, %v2272
          %v2274 = vand.u32 %v2127, 4294901760
          %v2275 = vsub.f32 %v2127, %v2274
          %2276 = vmatmul.f32.gmra.mxu0 %v2275
          %v2277 = vpop.f32.mrf.mxu0
          %v2278 = vadd.f32 %v2233, %v2277
          %2279 = vdwg.mxu0
          %2280 = vmatpush.msra.mxu0 0.0
          %2281 = vmatpush.msra.mxu0 0.0
          %2282 = vmatpush.msra.mxu0 0.0
          %2283 = vmatpush.msra.mxu0 0.0
          %2284 = vmatpush.msra.mxu0 0.0
          %2285 = vmatpush.msra.mxu0 0.0
          %2286 = vmatpush.msra.mxu0 0.0
          %2287 = vmatpush.msra.mxu0 0.0
          %2288 = vmatpush.msra.mxu0 0.0
          %2289 = vmatpush.msra.mxu0 0.0
          %2290 = vmatpush.msra.mxu0 0.0
          %2291 = vmatpush.msra.mxu0 0.0
          %v2292 = vand.u32 %v1246, 4294901760
          %2293 = vmatpush.msra.mxu0 %v2292
          %v2294 = vand.u32 %v1242, 4294901760
          %2295 = vmatpush.msra.mxu0 %v2294
          %v2296 = vand.u32 %v1238, 4294901760
          %2297 = vmatpush.msra.mxu0 %v2296
          %v2298 = vand.u32 %v1234, 4294901760
          %2299 = vmatpush.msra.mxu0 %v2298
          %v2300 = vand.u32 %v2118, 4294901760
          %v2301 = vsub.f32 %v2118, %v2300
          %v2302 = vand.u32 %v2301, 4294901760
          %2303 = vmatmul.f32.gmra.mxu0 %v2302
          %v2304 = vpop.f32.mrf.mxu0
          %v2305 = vadd.f32 %v2263, %v2304
          %v2306 = vand.u32 %v2121, 4294901760
          %v2307 = vsub.f32 %v2121, %v2306
          %v2308 = vand.u32 %v2307, 4294901760
          %2309 = vmatmul.f32.gmra.mxu0 %v2308
          %v2310 = vpop.f32.mrf.mxu0
          %v2311 = vadd.f32 %v2268, %v2310
          %v2312 = vand.u32 %v2124, 4294901760
          %v2313 = vsub.f32 %v2124, %v2312
          %v2314 = vand.u32 %v2313, 4294901760
          %2315 = vmatmul.f32.gmra.mxu0 %v2314
          %v2316 = vpop.f32.mrf.mxu0
          %v2317 = vadd.f32 %v2273, %v2316
          %v2318 = vand.u32 %v2127, 4294901760
          %v2319 = vsub.f32 %v2127, %v2318
          %v2320 = vand.u32 %v2319, 4294901760
          %2321 = vmatmul.f32.gmra.mxu0 %v2320
          %v2322 = vpop.f32.mrf.mxu0
          %v2323 = vadd.f32 %v2278, %v2322
          %2324 = vdwg.mxu0
          %2325 = vmatpush.msra.mxu0 0.0
          %2326 = vmatpush.msra.mxu0 0.0
          %2327 = vmatpush.msra.mxu0 0.0
          %2328 = vmatpush.msra.mxu0 0.0
          %2329 = vmatpush.msra.mxu0 0.0
          %2330 = vmatpush.msra.mxu0 0.0
          %2331 = vmatpush.msra.mxu0 0.0
          %2332 = vmatpush.msra.mxu0 0.0
          %2333 = vmatpush.msra.mxu0 0.0
          %2334 = vmatpush.msra.mxu0 0.0
          %2335 = vmatpush.msra.mxu0 0.0
          %2336 = vmatpush.msra.mxu0 0.0
          %v2337 = vand.u32 %v1246, 4294901760
          %v2338 = vsub.f32 %v1246, %v2337
          %v2339 = vand.u32 %v2338, 4294901760
          %2340 = vmatpush.msra.mxu0 %v2339
          %v2341 = vand.u32 %v1242, 4294901760
          %v2342 = vsub.f32 %v1242, %v2341
          %v2343 = vand.u32 %v2342, 4294901760
          %2344 = vmatpush.msra.mxu0 %v2343
          %v2345 = vand.u32 %v1238, 4294901760
          %v2346 = vsub.f32 %v1238, %v2345
          %v2347 = vand.u32 %v2346, 4294901760
          %2348 = vmatpush.msra.mxu0 %v2347
          %v2349 = vand.u32 %v1234, 4294901760
          %v2350 = vsub.f32 %v1234, %v2349
          %v2351 = vand.u32 %v2350, 4294901760
          %2352 = vmatpush.msra.mxu0 %v2351
          %v2353 = vand.u32 %v2118, 4294901760
          %2354 = vmatmul.f32.gmra.mxu0 %v2353
          %v2355 = vpop.f32.mrf.mxu0
          %v2356 = vadd.f32 %v2305, %v2355
          %v2357 = vand.u32 %v2121, 4294901760
          %2358 = vmatmul.f32.gmra.mxu0 %v2357
          %v2359 = vpop.f32.mrf.mxu0
          %v2360 = vadd.f32 %v2311, %v2359
          %v2361 = vand.u32 %v2124, 4294901760
          %2362 = vmatmul.f32.gmra.mxu0 %v2361
          %v2363 = vpop.f32.mrf.mxu0
          %v2364 = vadd.f32 %v2317, %v2363
          %v2365 = vand.u32 %v2127, 4294901760
          %2366 = vmatmul.f32.gmra.mxu0 %v2365
          %v2367 = vpop.f32.mrf.mxu0
          %v2368 = vadd.f32 %v2323, %v2367
          %2369 = vdwg.mxu0
          %2370 = vmatpush.msra.mxu0 0.0
          %2371 = vmatpush.msra.mxu0 0.0
          %2372 = vmatpush.msra.mxu0 0.0
          %2373 = vmatpush.msra.mxu0 0.0
          %2374 = vmatpush.msra.mxu0 0.0
          %2375 = vmatpush.msra.mxu0 0.0
          %2376 = vmatpush.msra.mxu0 0.0
          %2377 = vmatpush.msra.mxu0 0.0
          %2378 = vmatpush.msra.mxu0 0.0
          %2379 = vmatpush.msra.mxu0 0.0
          %2380 = vmatpush.msra.mxu0 0.0
          %2381 = vmatpush.msra.mxu0 0.0
          %v2382 = vand.u32 %v1246, 4294901760
          %2383 = vmatpush.msra.mxu0 %v2382
          %v2384 = vand.u32 %v1242, 4294901760
          %2385 = vmatpush.msra.mxu0 %v2384
          %v2386 = vand.u32 %v1238, 4294901760
          %2387 = vmatpush.msra.mxu0 %v2386
          %v2388 = vand.u32 %v1234, 4294901760
          %2389 = vmatpush.msra.mxu0 %v2388
          %v2390 = vand.u32 %v2118, 4294901760
          %2391 = vmatmul.f32.gmra.mxu0 %v2390
          %v2392 = vpop.f32.mrf.mxu0
          %v2393 = vadd.f32 %v2356, %v2392
          %v2394 = vand.u32 %v2121, 4294901760
          %2395 = vmatmul.f32.gmra.mxu0 %v2394
          %v2396 = vpop.f32.mrf.mxu0
          %v2397 = vadd.f32 %v2360, %v2396
          %v2398 = vand.u32 %v2124, 4294901760
          %2399 = vmatmul.f32.gmra.mxu0 %v2398
          %v2400 = vpop.f32.mrf.mxu0
          %v2401 = vadd.f32 %v2364, %v2400
          %v2402 = vand.u32 %v2127, 4294901760
          %2403 = vmatmul.f32.gmra.mxu0 %v2402
          %v2404 = vpop.f32.mrf.mxu0
          %v2405 = vadd.f32 %v2368, %v2404
          %2406 = vdwg.mxu0
          %2407 = vmatpush.msra.mxu0 0.0
          %2408 = vmatpush.msra.mxu0 0.0
          %2409 = vmatpush.msra.mxu0 0.0
          %2410 = vmatpush.msra.mxu0 0.0
          %2411 = vmatpush.msra.mxu0 0.0
          %2412 = vmatpush.msra.mxu0 0.0
          %2413 = vmatpush.msra.mxu0 0.0
          %2414 = vmatpush.msra.mxu0 0.0
          %2415 = vmatpush.msra.mxu0 0.0
          %2416 = vmatpush.msra.mxu0 0.0
          %2417 = vmatpush.msra.mxu0 0.0
          %2418 = vmatpush.msra.mxu0 0.0
          %v2419 = vand.u32 %v2114, 4294901760
          %2420 = vmatpush.msra.mxu0 %v2419
          %v2421 = vand.u32 %v2110, 4294901760
          %2422 = vmatpush.msra.mxu0 %v2421
          %v2423 = vand.u32 %v2106, 4294901760
          %2424 = vmatpush.msra.mxu0 %v2423
          %v2425 = vand.u32 %v2102, 4294901760
          %2426 = vmatpush.msra.mxu0 %v2425
          %v2427 = vand.u32 %v2118, 4294901760
          %v2428 = vsub.f32 %v2118, %v2427
          %v2429 = vand.u32 %v2428, 4294901760
          %v2430 = vsub.f32 %v2428, %v2429
          %v2431 = vand.u32 %v2430, 4294901760
          %2432 = vmatmul.f32.gmra.mxu0 %v2431
          %v2433 = vpop.f32.mrf.mxu0
          %v2434 = vadd.f32 0.0, %v2433
          %v2435 = vand.u32 %v2121, 4294901760
          %v2436 = vsub.f32 %v2121, %v2435
          %v2437 = vand.u32 %v2436, 4294901760
          %v2438 = vsub.f32 %v2436, %v2437
          %v2439 = vand.u32 %v2438, 4294901760
          %2440 = vmatmul.f32.gmra.mxu0 %v2439
          %v2441 = vpop.f32.mrf.mxu0
          %v2442 = vadd.f32 0.0, %v2441
          %v2443 = vand.u32 %v2124, 4294901760
          %v2444 = vsub.f32 %v2124, %v2443
          %v2445 = vand.u32 %v2444, 4294901760
          %v2446 = vsub.f32 %v2444, %v2445
          %v2447 = vand.u32 %v2446, 4294901760
          %2448 = vmatmul.f32.gmra.mxu0 %v2447
          %v2449 = vpop.f32.mrf.mxu0
          %v2450 = vadd.f32 0.0, %v2449
          %v2451 = vand.u32 %v2127, 4294901760
          %v2452 = vsub.f32 %v2127, %v2451
          %v2453 = vand.u32 %v2452, 4294901760
          %v2454 = vsub.f32 %v2452, %v2453
          %v2455 = vand.u32 %v2454, 4294901760
          %2456 = vmatmul.f32.gmra.mxu0 %v2455
          %v2457 = vpop.f32.mrf.mxu0
          %v2458 = vadd.f32 0.0, %v2457
          %2459 = vdwg.mxu0
          %2460 = vmatpush.msra.mxu0 0.0
          %2461 = vmatpush.msra.mxu0 0.0
          %2462 = vmatpush.msra.mxu0 0.0
          %2463 = vmatpush.msra.mxu0 0.0
          %2464 = vmatpush.msra.mxu0 0.0
          %2465 = vmatpush.msra.mxu0 0.0
          %2466 = vmatpush.msra.mxu0 0.0
          %2467 = vmatpush.msra.mxu0 0.0
          %2468 = vmatpush.msra.mxu0 0.0
          %2469 = vmatpush.msra.mxu0 0.0
          %2470 = vmatpush.msra.mxu0 0.0
          %2471 = vmatpush.msra.mxu0 0.0
          %v2472 = vand.u32 %v2114, 4294901760
          %v2473 = vsub.f32 %v2114, %v2472
          %v2474 = vand.u32 %v2473, 4294901760
          %v2475 = vsub.f32 %v2473, %v2474
          %v2476 = vand.u32 %v2475, 4294901760
          %2477 = vmatpush.msra.mxu0 %v2476
          %v2478 = vand.u32 %v2110, 4294901760
          %v2479 = vsub.f32 %v2110, %v2478
          %v2480 = vand.u32 %v2479, 4294901760
          %v2481 = vsub.f32 %v2479, %v2480
          %v2482 = vand.u32 %v2481, 4294901760
          %2483 = vmatpush.msra.mxu0 %v2482
          %v2484 = vand.u32 %v2106, 4294901760
          %v2485 = vsub.f32 %v2106, %v2484
          %v2486 = vand.u32 %v2485, 4294901760
          %v2487 = vsub.f32 %v2485, %v2486
          %v2488 = vand.u32 %v2487, 4294901760
          %2489 = vmatpush.msra.mxu0 %v2488
          %v2490 = vand.u32 %v2102, 4294901760
          %v2491 = vsub.f32 %v2102, %v2490
          %v2492 = vand.u32 %v2491, 4294901760
          %v2493 = vsub.f32 %v2491, %v2492
          %v2494 = vand.u32 %v2493, 4294901760
          %2495 = vmatpush.msra.mxu0 %v2494
          %v2496 = vand.u32 %v2118, 4294901760
          %2497 = vmatmul.f32.gmra.mxu0 %v2496
          %v2498 = vpop.f32.mrf.mxu0
          %v2499 = vadd.f32 %v2434, %v2498
          %v2500 = vand.u32 %v2121, 4294901760
          %2501 = vmatmul.f32.gmra.mxu0 %v2500
          %v2502 = vpop.f32.mrf.mxu0
          %v2503 = vadd.f32 %v2442, %v2502
          %v2504 = vand.u32 %v2124, 4294901760
          %2505 = vmatmul.f32.gmra.mxu0 %v2504
          %v2506 = vpop.f32.mrf.mxu0
          %v2507 = vadd.f32 %v2450, %v2506
          %v2508 = vand.u32 %v2127, 4294901760
          %2509 = vmatmul.f32.gmra.mxu0 %v2508
          %v2510 = vpop.f32.mrf.mxu0
          %v2511 = vadd.f32 %v2458, %v2510
          %2512 = vdwg.mxu0
          %2513 = vmatpush.msra.mxu0 0.0
          %2514 = vmatpush.msra.mxu0 0.0
          %2515 = vmatpush.msra.mxu0 0.0
          %2516 = vmatpush.msra.mxu0 0.0
          %2517 = vmatpush.msra.mxu0 0.0
          %2518 = vmatpush.msra.mxu0 0.0
          %2519 = vmatpush.msra.mxu0 0.0
          %2520 = vmatpush.msra.mxu0 0.0
          %2521 = vmatpush.msra.mxu0 0.0
          %2522 = vmatpush.msra.mxu0 0.0
          %2523 = vmatpush.msra.mxu0 0.0
          %2524 = vmatpush.msra.mxu0 0.0
          %v2525 = vand.u32 %v2114, 4294901760
          %v2526 = vsub.f32 %v2114, %v2525
          %2527 = vmatpush.msra.mxu0 %v2526
          %v2528 = vand.u32 %v2110, 4294901760
          %v2529 = vsub.f32 %v2110, %v2528
          %2530 = vmatpush.msra.mxu0 %v2529
          %v2531 = vand.u32 %v2106, 4294901760
          %v2532 = vsub.f32 %v2106, %v2531
          %2533 = vmatpush.msra.mxu0 %v2532
          %v2534 = vand.u32 %v2102, 4294901760
          %v2535 = vsub.f32 %v2102, %v2534
          %2536 = vmatpush.msra.mxu0 %v2535
          %v2537 = vand.u32 %v2118, 4294901760
          %v2538 = vsub.f32 %v2118, %v2537
          %2539 = vmatmul.f32.gmra.mxu0 %v2538
          %v2540 = vpop.f32.mrf.mxu0
          %v2541 = vadd.f32 %v2499, %v2540
          %v2542 = vand.u32 %v2121, 4294901760
          %v2543 = vsub.f32 %v2121, %v2542
          %2544 = vmatmul.f32.gmra.mxu0 %v2543
          %v2545 = vpop.f32.mrf.mxu0
          %v2546 = vadd.f32 %v2503, %v2545
          %v2547 = vand.u32 %v2124, 4294901760
          %v2548 = vsub.f32 %v2124, %v2547
          %2549 = vmatmul.f32.gmra.mxu0 %v2548
          %v2550 = vpop.f32.mrf.mxu0
          %v2551 = vadd.f32 %v2507, %v2550
          %v2552 = vand.u32 %v2127, 4294901760
          %v2553 = vsub.f32 %v2127, %v2552
          %2554 = vmatmul.f32.gmra.mxu0 %v2553
          %v2555 = vpop.f32.mrf.mxu0
          %v2556 = vadd.f32 %v2511, %v2555
          %2557 = vdwg.mxu0
          %2558 = vmatpush.msra.mxu0 0.0
          %2559 = vmatpush.msra.mxu0 0.0
          %2560 = vmatpush.msra.mxu0 0.0
          %2561 = vmatpush.msra.mxu0 0.0
          %2562 = vmatpush.msra.mxu0 0.0
          %2563 = vmatpush.msra.mxu0 0.0
          %2564 = vmatpush.msra.mxu0 0.0
          %2565 = vmatpush.msra.mxu0 0.0
          %2566 = vmatpush.msra.mxu0 0.0
          %2567 = vmatpush.msra.mxu0 0.0
          %2568 = vmatpush.msra.mxu0 0.0
          %2569 = vmatpush.msra.mxu0 0.0
          %v2570 = vand.u32 %v2114, 4294901760
          %2571 = vmatpush.msra.mxu0 %v2570
          %v2572 = vand.u32 %v2110, 4294901760
          %2573 = vmatpush.msra.mxu0 %v2572
          %v2574 = vand.u32 %v2106, 4294901760
          %2575 = vmatpush.msra.mxu0 %v2574
          %v2576 = vand.u32 %v2102, 4294901760
          %2577 = vmatpush.msra.mxu0 %v2576
          %v2578 = vand.u32 %v2118, 4294901760
          %v2579 = vsub.f32 %v2118, %v2578
          %v2580 = vand.u32 %v2579, 4294901760
          %2581 = vmatmul.f32.gmra.mxu0 %v2580
          %v2582 = vpop.f32.mrf.mxu0
          %v2583 = vadd.f32 %v2541, %v2582
          %v2584 = vand.u32 %v2121, 4294901760
          %v2585 = vsub.f32 %v2121, %v2584
          %v2586 = vand.u32 %v2585, 4294901760
          %2587 = vmatmul.f32.gmra.mxu0 %v2586
          %v2588 = vpop.f32.mrf.mxu0
          %v2589 = vadd.f32 %v2546, %v2588
          %v2590 = vand.u32 %v2124, 4294901760
          %v2591 = vsub.f32 %v2124, %v2590
          %v2592 = vand.u32 %v2591, 4294901760
          %2593 = vmatmul.f32.gmra.mxu0 %v2592
          %v2594 = vpop.f32.mrf.mxu0
          %v2595 = vadd.f32 %v2551, %v2594
          %v2596 = vand.u32 %v2127, 4294901760
          %v2597 = vsub.f32 %v2127, %v2596
          %v2598 = vand.u32 %v2597, 4294901760
          %2599 = vmatmul.f32.gmra.mxu0 %v2598
          %v2600 = vpop.f32.mrf.mxu0
          %v2601 = vadd.f32 %v2556, %v2600
          %2602 = vdwg.mxu0
          %2603 = vmatpush.msra.mxu0 0.0
          %2604 = vmatpush.msra.mxu0 0.0
          %2605 = vmatpush.msra.mxu0 0.0
          %2606 = vmatpush.msra.mxu0 0.0
          %2607 = vmatpush.msra.mxu0 0.0
          %2608 = vmatpush.msra.mxu0 0.0
          %2609 = vmatpush.msra.mxu0 0.0
          %2610 = vmatpush.msra.mxu0 0.0
          %2611 = vmatpush.msra.mxu0 0.0
          %2612 = vmatpush.msra.mxu0 0.0
          %2613 = vmatpush.msra.mxu0 0.0
          %2614 = vmatpush.msra.mxu0 0.0
          %v2615 = vand.u32 %v2114, 4294901760
          %v2616 = vsub.f32 %v2114, %v2615
          %v2617 = vand.u32 %v2616, 4294901760
          %2618 = vmatpush.msra.mxu0 %v2617
          %v2619 = vand.u32 %v2110, 4294901760
          %v2620 = vsub.f32 %v2110, %v2619
          %v2621 = vand.u32 %v2620, 4294901760
          %2622 = vmatpush.msra.mxu0 %v2621
          %v2623 = vand.u32 %v2106, 4294901760
          %v2624 = vsub.f32 %v2106, %v2623
          %v2625 = vand.u32 %v2624, 4294901760
          %2626 = vmatpush.msra.mxu0 %v2625
          %v2627 = vand.u32 %v2102, 4294901760
          %v2628 = vsub.f32 %v2102, %v2627
          %v2629 = vand.u32 %v2628, 4294901760
          %2630 = vmatpush.msra.mxu0 %v2629
          %v2631 = vand.u32 %v2118, 4294901760
          %2632 = vmatmul.f32.gmra.mxu0 %v2631
          %v2633 = vpop.f32.mrf.mxu0
          %v2634 = vadd.f32 %v2583, %v2633
          %v2635 = vand.u32 %v2121, 4294901760
          %2636 = vmatmul.f32.gmra.mxu0 %v2635
          %v2637 = vpop.f32.mrf.mxu0
          %v2638 = vadd.f32 %v2589, %v2637
          %v2639 = vand.u32 %v2124, 4294901760
          %2640 = vmatmul.f32.gmra.mxu0 %v2639
          %v2641 = vpop.f32.mrf.mxu0
          %v2642 = vadd.f32 %v2595, %v2641
          %v2643 = vand.u32 %v2127, 4294901760
          %2644 = vmatmul.f32.gmra.mxu0 %v2643
          %v2645 = vpop.f32.mrf.mxu0
          %v2646 = vadd.f32 %v2601, %v2645
          %2647 = vdwg.mxu0
          %2648 = vmatpush.msra.mxu0 0.0
          %2649 = vmatpush.msra.mxu0 0.0
          %2650 = vmatpush.msra.mxu0 0.0
          %2651 = vmatpush.msra.mxu0 0.0
          %2652 = vmatpush.msra.mxu0 0.0
          %2653 = vmatpush.msra.mxu0 0.0
          %2654 = vmatpush.msra.mxu0 0.0
          %2655 = vmatpush.msra.mxu0 0.0
          %2656 = vmatpush.msra.mxu0 0.0
          %2657 = vmatpush.msra.mxu0 0.0
          %2658 = vmatpush.msra.mxu0 0.0
          %2659 = vmatpush.msra.mxu0 0.0
          %v2660 = vand.u32 %v2114, 4294901760
          %2661 = vmatpush.msra.mxu0 %v2660
          %v2662 = vand.u32 %v2110, 4294901760
          %2663 = vmatpush.msra.mxu0 %v2662
          %v2664 = vand.u32 %v2106, 4294901760
          %2665 = vmatpush.msra.mxu0 %v2664
          %v2666 = vand.u32 %v2102, 4294901760
          %2667 = vmatpush.msra.mxu0 %v2666
          %v2668 = vand.u32 %v2118, 4294901760
          %2669 = vmatmul.f32.gmra.mxu0 %v2668
          %v2670 = vpop.f32.mrf.mxu0
          %v2671 = vadd.f32 %v2634, %v2670
          %v2672 = vand.u32 %v2121, 4294901760
          %2673 = vmatmul.f32.gmra.mxu0 %v2672
          %v2674 = vpop.f32.mrf.mxu0
          %v2675 = vadd.f32 %v2638, %v2674
          %v2676 = vand.u32 %v2124, 4294901760
          %2677 = vmatmul.f32.gmra.mxu0 %v2676
          %v2678 = vpop.f32.mrf.mxu0
          %v2679 = vadd.f32 %v2642, %v2678
          %v2680 = vand.u32 %v2127, 4294901760
          %2681 = vmatmul.f32.gmra.mxu0 %v2680
          %v2682 = vpop.f32.mrf.mxu0
          %v2683 = vadd.f32 %v2646, %v2682
          %2684 = vdwg.mxu0
          %2685 = vst [vmem:[%s275] sm:$0xff] %v2393
          %2686 = vst [vmem:[%s275 + $0x8] sm:$0xff] %v2671
          %2687 = vst [vmem:[%s275 + $0x10] sm:$0xff] %v2397
          %2688 = vst [vmem:[%s275 + $0x18] sm:$0xff] %v2675
          %2689 = vst [vmem:[%s275 + $0x20] sm:$0xff] %v2401
          %2690 = vst [vmem:[%s275 + $0x28] sm:$0xff] %v2679
          %2691 = vst [vmem:[%s275 + $0x30] sm:$0xff] %v2405
          %2692 = vst [vmem:[%s275 + $0x38] sm:$0xff] %v2683
        $region44: #{branch_1_fun.1} parent=39 // pred_fallthru
          _
        %p2693 = pneg %p300
        // Predicated region
        $region45: #{branch_1_fun.1} parent=39 // pred_check
          _
        $region46: #{branch_1_fun.1} parent=39 // pred_check_branch
          %2695 = sbr.rel (%p300) target = $region48
        $region47: #{branch_1_fun.1} parent=39 // pred_region
          %vm2696 = vcmask 261120
          %v2698 = vsel %vm2696, %v309, 0
          %v2701 = vsel %vm2696, %v310, 0
          %v2704 = vsel %vm2696, %v311, 0
          %v2707 = vsel %vm2696, %v312, 0
          %2709 = vmatpush.msra.mxu0 0.0
          %2710 = vmatpush.msra.mxu0 0.0
          %2711 = vmatpush.msra.mxu0 0.0
          %2712 = vmatpush.msra.mxu0 0.0
          %2713 = vmatpush.msra.mxu0 0.0
          %2714 = vmatpush.msra.mxu0 0.0
          %2715 = vmatpush.msra.mxu0 0.0
          %2716 = vmatpush.msra.mxu0 0.0
          %2717 = vmatpush.msra.mxu0 0.0
          %2718 = vmatpush.msra.mxu0 0.0
          %2719 = vmatpush.msra.mxu0 0.0
          %2720 = vmatpush.msra.mxu0 0.0
          %v2721 = vand.u32 %v307, 4294901760
          %2722 = vmatpush.msra.mxu0 %v2721
          %v2723 = vand.u32 %v305, 4294901760
          %2724 = vmatpush.msra.mxu0 %v2723
          %v2725 = vand.u32 %v303, 4294901760
          %2726 = vmatpush.msra.mxu0 %v2725
          %v2727 = vand.u32 %v301, 4294901760
          %2728 = vmatpush.msra.mxu0 %v2727
          %v2729 = vand.u32 %v2698, 4294901760
          %v2730 = vsub.f32 %v2698, %v2729
          %v2731 = vand.u32 %v2730, 4294901760
          %v2732 = vsub.f32 %v2730, %v2731
          %v2733 = vand.u32 %v2732, 4294901760
          %2734 = vmatmul.f32.gmra.mxu0 %v2733
          %v2735 = vpop.f32.mrf.mxu0
          %v2736 = vadd.f32 0.0, %v2735
          %v2737 = vand.u32 %v2701, 4294901760
          %v2738 = vsub.f32 %v2701, %v2737
          %v2739 = vand.u32 %v2738, 4294901760
          %v2740 = vsub.f32 %v2738, %v2739
          %v2741 = vand.u32 %v2740, 4294901760
          %2742 = vmatmul.f32.gmra.mxu0 %v2741
          %v2743 = vpop.f32.mrf.mxu0
          %v2744 = vadd.f32 0.0, %v2743
          %v2745 = vand.u32 %v2704, 4294901760
          %v2746 = vsub.f32 %v2704, %v2745
          %v2747 = vand.u32 %v2746, 4294901760
          %v2748 = vsub.f32 %v2746, %v2747
          %v2749 = vand.u32 %v2748, 4294901760
          %2750 = vmatmul.f32.gmra.mxu0 %v2749
          %v2751 = vpop.f32.mrf.mxu0
          %v2752 = vadd.f32 0.0, %v2751
          %v2753 = vand.u32 %v2707, 4294901760
          %v2754 = vsub.f32 %v2707, %v2753
          %v2755 = vand.u32 %v2754, 4294901760
          %v2756 = vsub.f32 %v2754, %v2755
          %v2757 = vand.u32 %v2756, 4294901760
          %2758 = vmatmul.f32.gmra.mxu0 %v2757
          %v2759 = vpop.f32.mrf.mxu0
          %v2760 = vadd.f32 0.0, %v2759
          %2761 = vdwg.mxu0
          %2762 = vmatpush.msra.mxu0 0.0
          %2763 = vmatpush.msra.mxu0 0.0
          %2764 = vmatpush.msra.mxu0 0.0
          %2765 = vmatpush.msra.mxu0 0.0
          %2766 = vmatpush.msra.mxu0 0.0
          %2767 = vmatpush.msra.mxu0 0.0
          %2768 = vmatpush.msra.mxu0 0.0
          %2769 = vmatpush.msra.mxu0 0.0
          %2770 = vmatpush.msra.mxu0 0.0
          %2771 = vmatpush.msra.mxu0 0.0
          %2772 = vmatpush.msra.mxu0 0.0
          %2773 = vmatpush.msra.mxu0 0.0
          %v2774 = vand.u32 %v307, 4294901760
          %v2775 = vsub.f32 %v307, %v2774
          %v2776 = vand.u32 %v2775, 4294901760
          %v2777 = vsub.f32 %v2775, %v2776
          %v2778 = vand.u32 %v2777, 4294901760
          %2779 = vmatpush.msra.mxu0 %v2778
          %v2780 = vand.u32 %v305, 4294901760
          %v2781 = vsub.f32 %v305, %v2780
          %v2782 = vand.u32 %v2781, 4294901760
          %v2783 = vsub.f32 %v2781, %v2782
          %v2784 = vand.u32 %v2783, 4294901760
          %2785 = vmatpush.msra.mxu0 %v2784
          %v2786 = vand.u32 %v303, 4294901760
          %v2787 = vsub.f32 %v303, %v2786
          %v2788 = vand.u32 %v2787, 4294901760
          %v2789 = vsub.f32 %v2787, %v2788
          %v2790 = vand.u32 %v2789, 4294901760
          %2791 = vmatpush.msra.mxu0 %v2790
          %v2792 = vand.u32 %v301, 4294901760
          %v2793 = vsub.f32 %v301, %v2792
          %v2794 = vand.u32 %v2793, 4294901760
          %v2795 = vsub.f32 %v2793, %v2794
          %v2796 = vand.u32 %v2795, 4294901760
          %2797 = vmatpush.msra.mxu0 %v2796
          %v2798 = vand.u32 %v2698, 4294901760
          %2799 = vmatmul.f32.gmra.mxu0 %v2798
          %v2800 = vpop.f32.mrf.mxu0
          %v2801 = vadd.f32 %v2736, %v2800
          %v2802 = vand.u32 %v2701, 4294901760
          %2803 = vmatmul.f32.gmra.mxu0 %v2802
          %v2804 = vpop.f32.mrf.mxu0
          %v2805 = vadd.f32 %v2744, %v2804
          %v2806 = vand.u32 %v2704, 4294901760
          %2807 = vmatmul.f32.gmra.mxu0 %v2806
          %v2808 = vpop.f32.mrf.mxu0
          %v2809 = vadd.f32 %v2752, %v2808
          %v2810 = vand.u32 %v2707, 4294901760
          %2811 = vmatmul.f32.gmra.mxu0 %v2810
          %v2812 = vpop.f32.mrf.mxu0
          %v2813 = vadd.f32 %v2760, %v2812
          %2814 = vdwg.mxu0
          %2815 = vmatpush.msra.mxu0 0.0
          %2816 = vmatpush.msra.mxu0 0.0
          %2817 = vmatpush.msra.mxu0 0.0
          %2818 = vmatpush.msra.mxu0 0.0
          %2819 = vmatpush.msra.mxu0 0.0
          %2820 = vmatpush.msra.mxu0 0.0
          %2821 = vmatpush.msra.mxu0 0.0
          %2822 = vmatpush.msra.mxu0 0.0
          %2823 = vmatpush.msra.mxu0 0.0
          %2824 = vmatpush.msra.mxu0 0.0
          %2825 = vmatpush.msra.mxu0 0.0
          %2826 = vmatpush.msra.mxu0 0.0
          %v2827 = vand.u32 %v307, 4294901760
          %v2828 = vsub.f32 %v307, %v2827
          %2829 = vmatpush.msra.mxu0 %v2828
          %v2830 = vand.u32 %v305, 4294901760
          %v2831 = vsub.f32 %v305, %v2830
          %2832 = vmatpush.msra.mxu0 %v2831
          %v2833 = vand.u32 %v303, 4294901760
          %v2834 = vsub.f32 %v303, %v2833
          %2835 = vmatpush.msra.mxu0 %v2834
          %v2836 = vand.u32 %v301, 4294901760
          %v2837 = vsub.f32 %v301, %v2836
          %2838 = vmatpush.msra.mxu0 %v2837
          %v2839 = vand.u32 %v2698, 4294901760
          %v2840 = vsub.f32 %v2698, %v2839
          %2841 = vmatmul.f32.gmra.mxu0 %v2840
          %v2842 = vpop.f32.mrf.mxu0
          %v2843 = vadd.f32 %v2801, %v2842
          %v2844 = vand.u32 %v2701, 4294901760
          %v2845 = vsub.f32 %v2701, %v2844
          %2846 = vmatmul.f32.gmra.mxu0 %v2845
          %v2847 = vpop.f32.mrf.mxu0
          %v2848 = vadd.f32 %v2805, %v2847
          %v2849 = vand.u32 %v2704, 4294901760
          %v2850 = vsub.f32 %v2704, %v2849
          %2851 = vmatmul.f32.gmra.mxu0 %v2850
          %v2852 = vpop.f32.mrf.mxu0
          %v2853 = vadd.f32 %v2809, %v2852
          %v2854 = vand.u32 %v2707, 4294901760
          %v2855 = vsub.f32 %v2707, %v2854
          %2856 = vmatmul.f32.gmra.mxu0 %v2855
          %v2857 = vpop.f32.mrf.mxu0
          %v2858 = vadd.f32 %v2813, %v2857
          %2859 = vdwg.mxu0
          %2860 = vmatpush.msra.mxu0 0.0
          %2861 = vmatpush.msra.mxu0 0.0
          %2862 = vmatpush.msra.mxu0 0.0
          %2863 = vmatpush.msra.mxu0 0.0
          %2864 = vmatpush.msra.mxu0 0.0
          %2865 = vmatpush.msra.mxu0 0.0
          %2866 = vmatpush.msra.mxu0 0.0
          %2867 = vmatpush.msra.mxu0 0.0
          %2868 = vmatpush.msra.mxu0 0.0
          %2869 = vmatpush.msra.mxu0 0.0
          %2870 = vmatpush.msra.mxu0 0.0
          %2871 = vmatpush.msra.mxu0 0.0
          %v2872 = vand.u32 %v307, 4294901760
          %2873 = vmatpush.msra.mxu0 %v2872
          %v2874 = vand.u32 %v305, 4294901760
          %2875 = vmatpush.msra.mxu0 %v2874
          %v2876 = vand.u32 %v303, 4294901760
          %2877 = vmatpush.msra.mxu0 %v2876
          %v2878 = vand.u32 %v301, 4294901760
          %2879 = vmatpush.msra.mxu0 %v2878
          %v2880 = vand.u32 %v2698, 4294901760
          %v2881 = vsub.f32 %v2698, %v2880
          %v2882 = vand.u32 %v2881, 4294901760
          %2883 = vmatmul.f32.gmra.mxu0 %v2882
          %v2884 = vpop.f32.mrf.mxu0
          %v2885 = vadd.f32 %v2843, %v2884
          %v2886 = vand.u32 %v2701, 4294901760
          %v2887 = vsub.f32 %v2701, %v2886
          %v2888 = vand.u32 %v2887, 4294901760
          %2889 = vmatmul.f32.gmra.mxu0 %v2888
          %v2890 = vpop.f32.mrf.mxu0
          %v2891 = vadd.f32 %v2848, %v2890
          %v2892 = vand.u32 %v2704, 4294901760
          %v2893 = vsub.f32 %v2704, %v2892
          %v2894 = vand.u32 %v2893, 4294901760
          %2895 = vmatmul.f32.gmra.mxu0 %v2894
          %v2896 = vpop.f32.mrf.mxu0
          %v2897 = vadd.f32 %v2853, %v2896
          %v2898 = vand.u32 %v2707, 4294901760
          %v2899 = vsub.f32 %v2707, %v2898
          %v2900 = vand.u32 %v2899, 4294901760
          %2901 = vmatmul.f32.gmra.mxu0 %v2900
          %v2902 = vpop.f32.mrf.mxu0
          %v2903 = vadd.f32 %v2858, %v2902
          %2904 = vdwg.mxu0
          %2905 = vmatpush.msra.mxu0 0.0
          %2906 = vmatpush.msra.mxu0 0.0
          %2907 = vmatpush.msra.mxu0 0.0
          %2908 = vmatpush.msra.mxu0 0.0
          %2909 = vmatpush.msra.mxu0 0.0
          %2910 = vmatpush.msra.mxu0 0.0
          %2911 = vmatpush.msra.mxu0 0.0
          %2912 = vmatpush.msra.mxu0 0.0
          %2913 = vmatpush.msra.mxu0 0.0
          %2914 = vmatpush.msra.mxu0 0.0
          %2915 = vmatpush.msra.mxu0 0.0
          %2916 = vmatpush.msra.mxu0 0.0
          %v2917 = vand.u32 %v307, 4294901760
          %v2918 = vsub.f32 %v307, %v2917
          %v2919 = vand.u32 %v2918, 4294901760
          %2920 = vmatpush.msra.mxu0 %v2919
          %v2921 = vand.u32 %v305, 4294901760
          %v2922 = vsub.f32 %v305, %v2921
          %v2923 = vand.u32 %v2922, 4294901760
          %2924 = vmatpush.msra.mxu0 %v2923
          %v2925 = vand.u32 %v303, 4294901760
          %v2926 = vsub.f32 %v303, %v2925
          %v2927 = vand.u32 %v2926, 4294901760
          %2928 = vmatpush.msra.mxu0 %v2927
          %v2929 = vand.u32 %v301, 4294901760
          %v2930 = vsub.f32 %v301, %v2929
          %v2931 = vand.u32 %v2930, 4294901760
          %2932 = vmatpush.msra.mxu0 %v2931
          %v2933 = vand.u32 %v2698, 4294901760
          %2934 = vmatmul.f32.gmra.mxu0 %v2933
          %v2935 = vpop.f32.mrf.mxu0
          %v2936 = vadd.f32 %v2885, %v2935
          %v2937 = vand.u32 %v2701, 4294901760
          %2938 = vmatmul.f32.gmra.mxu0 %v2937
          %v2939 = vpop.f32.mrf.mxu0
          %v2940 = vadd.f32 %v2891, %v2939
          %v2941 = vand.u32 %v2704, 4294901760
          %2942 = vmatmul.f32.gmra.mxu0 %v2941
          %v2943 = vpop.f32.mrf.mxu0
          %v2944 = vadd.f32 %v2897, %v2943
          %v2945 = vand.u32 %v2707, 4294901760
          %2946 = vmatmul.f32.gmra.mxu0 %v2945
          %v2947 = vpop.f32.mrf.mxu0
          %v2948 = vadd.f32 %v2903, %v2947
          %2949 = vdwg.mxu0
          %2950 = vmatpush.msra.mxu0 0.0
          %2951 = vmatpush.msra.mxu0 0.0
          %2952 = vmatpush.msra.mxu0 0.0
          %2953 = vmatpush.msra.mxu0 0.0
          %2954 = vmatpush.msra.mxu0 0.0
          %2955 = vmatpush.msra.mxu0 0.0
          %2956 = vmatpush.msra.mxu0 0.0
          %2957 = vmatpush.msra.mxu0 0.0
          %2958 = vmatpush.msra.mxu0 0.0
          %2959 = vmatpush.msra.mxu0 0.0
          %2960 = vmatpush.msra.mxu0 0.0
          %2961 = vmatpush.msra.mxu0 0.0
          %v2962 = vand.u32 %v307, 4294901760
          %2963 = vmatpush.msra.mxu0 %v2962
          %v2964 = vand.u32 %v305, 4294901760
          %2965 = vmatpush.msra.mxu0 %v2964
          %v2966 = vand.u32 %v303, 4294901760
          %2967 = vmatpush.msra.mxu0 %v2966
          %v2968 = vand.u32 %v301, 4294901760
          %2969 = vmatpush.msra.mxu0 %v2968
          %v2970 = vand.u32 %v2698, 4294901760
          %2971 = vmatmul.f32.gmra.mxu0 %v2970
          %v2972 = vpop.f32.mrf.mxu0
          %v2973 = vadd.f32 %v2936, %v2972
          %v2974 = vand.u32 %v2701, 4294901760
          %2975 = vmatmul.f32.gmra.mxu0 %v2974
          %v2976 = vpop.f32.mrf.mxu0
          %v2977 = vadd.f32 %v2940, %v2976
          %v2978 = vand.u32 %v2704, 4294901760
          %2979 = vmatmul.f32.gmra.mxu0 %v2978
          %v2980 = vpop.f32.mrf.mxu0
          %v2981 = vadd.f32 %v2944, %v2980
          %v2982 = vand.u32 %v2707, 4294901760
          %2983 = vmatmul.f32.gmra.mxu0 %v2982
          %v2984 = vpop.f32.mrf.mxu0
          %v2985 = vadd.f32 %v2948, %v2984
          %2986 = vdwg.mxu0
          %2987 = vmatpush.msra.mxu0 0.0
          %2988 = vmatpush.msra.mxu0 0.0
          %2989 = vmatpush.msra.mxu0 0.0
          %2990 = vmatpush.msra.mxu0 0.0
          %2991 = vmatpush.msra.mxu0 0.0
          %2992 = vmatpush.msra.mxu0 0.0
          %2993 = vmatpush.msra.mxu0 0.0
          %2994 = vmatpush.msra.mxu0 0.0
          %2995 = vmatpush.msra.mxu0 0.0
          %2996 = vmatpush.msra.mxu0 0.0
          %2997 = vmatpush.msra.mxu0 0.0
          %2998 = vmatpush.msra.mxu0 0.0
          %v2999 = vand.u32 %v308, 4294901760
          %3000 = vmatpush.msra.mxu0 %v2999
          %v3001 = vand.u32 %v306, 4294901760
          %3002 = vmatpush.msra.mxu0 %v3001
          %v3003 = vand.u32 %v304, 4294901760
          %3004 = vmatpush.msra.mxu0 %v3003
          %v3005 = vand.u32 %v302, 4294901760
          %3006 = vmatpush.msra.mxu0 %v3005
          %v3007 = vand.u32 %v2698, 4294901760
          %v3008 = vsub.f32 %v2698, %v3007
          %v3009 = vand.u32 %v3008, 4294901760
          %v3010 = vsub.f32 %v3008, %v3009
          %v3011 = vand.u32 %v3010, 4294901760
          %3012 = vmatmul.f32.gmra.mxu0 %v3011
          %v3013 = vpop.f32.mrf.mxu0
          %v3014 = vadd.f32 0.0, %v3013
          %v3015 = vand.u32 %v2701, 4294901760
          %v3016 = vsub.f32 %v2701, %v3015
          %v3017 = vand.u32 %v3016, 4294901760
          %v3018 = vsub.f32 %v3016, %v3017
          %v3019 = vand.u32 %v3018, 4294901760
          %3020 = vmatmul.f32.gmra.mxu0 %v3019
          %v3021 = vpop.f32.mrf.mxu0
          %v3022 = vadd.f32 0.0, %v3021
          %v3023 = vand.u32 %v2704, 4294901760
          %v3024 = vsub.f32 %v2704, %v3023
          %v3025 = vand.u32 %v3024, 4294901760
          %v3026 = vsub.f32 %v3024, %v3025
          %v3027 = vand.u32 %v3026, 4294901760
          %3028 = vmatmul.f32.gmra.mxu0 %v3027
          %v3029 = vpop.f32.mrf.mxu0
          %v3030 = vadd.f32 0.0, %v3029
          %v3031 = vand.u32 %v2707, 4294901760
          %v3032 = vsub.f32 %v2707, %v3031
          %v3033 = vand.u32 %v3032, 4294901760
          %v3034 = vsub.f32 %v3032, %v3033
          %v3035 = vand.u32 %v3034, 4294901760
          %3036 = vmatmul.f32.gmra.mxu0 %v3035
          %v3037 = vpop.f32.mrf.mxu0
          %v3038 = vadd.f32 0.0, %v3037
          %3039 = vdwg.mxu0
          %3040 = vmatpush.msra.mxu0 0.0
          %3041 = vmatpush.msra.mxu0 0.0
          %3042 = vmatpush.msra.mxu0 0.0
          %3043 = vmatpush.msra.mxu0 0.0
          %3044 = vmatpush.msra.mxu0 0.0
          %3045 = vmatpush.msra.mxu0 0.0
          %3046 = vmatpush.msra.mxu0 0.0
          %3047 = vmatpush.msra.mxu0 0.0
          %3048 = vmatpush.msra.mxu0 0.0
          %3049 = vmatpush.msra.mxu0 0.0
          %3050 = vmatpush.msra.mxu0 0.0
          %3051 = vmatpush.msra.mxu0 0.0
          %v3052 = vand.u32 %v308, 4294901760
          %v3053 = vsub.f32 %v308, %v3052
          %v3054 = vand.u32 %v3053, 4294901760
          %v3055 = vsub.f32 %v3053, %v3054
          %v3056 = vand.u32 %v3055, 4294901760
          %3057 = vmatpush.msra.mxu0 %v3056
          %v3058 = vand.u32 %v306, 4294901760
          %v3059 = vsub.f32 %v306, %v3058
          %v3060 = vand.u32 %v3059, 4294901760
          %v3061 = vsub.f32 %v3059, %v3060
          %v3062 = vand.u32 %v3061, 4294901760
          %3063 = vmatpush.msra.mxu0 %v3062
          %v3064 = vand.u32 %v304, 4294901760
          %v3065 = vsub.f32 %v304, %v3064
          %v3066 = vand.u32 %v3065, 4294901760
          %v3067 = vsub.f32 %v3065, %v3066
          %v3068 = vand.u32 %v3067, 4294901760
          %3069 = vmatpush.msra.mxu0 %v3068
          %v3070 = vand.u32 %v302, 4294901760
          %v3071 = vsub.f32 %v302, %v3070
          %v3072 = vand.u32 %v3071, 4294901760
          %v3073 = vsub.f32 %v3071, %v3072
          %v3074 = vand.u32 %v3073, 4294901760
          %3075 = vmatpush.msra.mxu0 %v3074
          %v3076 = vand.u32 %v2698, 4294901760
          %3077 = vmatmul.f32.gmra.mxu0 %v3076
          %v3078 = vpop.f32.mrf.mxu0
          %v3079 = vadd.f32 %v3014, %v3078
          %v3080 = vand.u32 %v2701, 4294901760
          %3081 = vmatmul.f32.gmra.mxu0 %v3080
          %v3082 = vpop.f32.mrf.mxu0
          %v3083 = vadd.f32 %v3022, %v3082
          %v3084 = vand.u32 %v2704, 4294901760
          %3085 = vmatmul.f32.gmra.mxu0 %v3084
          %v3086 = vpop.f32.mrf.mxu0
          %v3087 = vadd.f32 %v3030, %v3086
          %v3088 = vand.u32 %v2707, 4294901760
          %3089 = vmatmul.f32.gmra.mxu0 %v3088
          %v3090 = vpop.f32.mrf.mxu0
          %v3091 = vadd.f32 %v3038, %v3090
          %3092 = vdwg.mxu0
          %3093 = vmatpush.msra.mxu0 0.0
          %3094 = vmatpush.msra.mxu0 0.0
          %3095 = vmatpush.msra.mxu0 0.0
          %3096 = vmatpush.msra.mxu0 0.0
          %3097 = vmatpush.msra.mxu0 0.0
          %3098 = vmatpush.msra.mxu0 0.0
          %3099 = vmatpush.msra.mxu0 0.0
          %3100 = vmatpush.msra.mxu0 0.0
          %3101 = vmatpush.msra.mxu0 0.0
          %3102 = vmatpush.msra.mxu0 0.0
          %3103 = vmatpush.msra.mxu0 0.0
          %3104 = vmatpush.msra.mxu0 0.0
          %v3105 = vand.u32 %v308, 4294901760
          %v3106 = vsub.f32 %v308, %v3105
          %3107 = vmatpush.msra.mxu0 %v3106
          %v3108 = vand.u32 %v306, 4294901760
          %v3109 = vsub.f32 %v306, %v3108
          %3110 = vmatpush.msra.mxu0 %v3109
          %v3111 = vand.u32 %v304, 4294901760
          %v3112 = vsub.f32 %v304, %v3111
          %3113 = vmatpush.msra.mxu0 %v3112
          %v3114 = vand.u32 %v302, 4294901760
          %v3115 = vsub.f32 %v302, %v3114
          %3116 = vmatpush.msra.mxu0 %v3115
          %v3117 = vand.u32 %v2698, 4294901760
          %v3118 = vsub.f32 %v2698, %v3117
          %3119 = vmatmul.f32.gmra.mxu0 %v3118
          %v3120 = vpop.f32.mrf.mxu0
          %v3121 = vadd.f32 %v3079, %v3120
          %v3122 = vand.u32 %v2701, 4294901760
          %v3123 = vsub.f32 %v2701, %v3122
          %3124 = vmatmul.f32.gmra.mxu0 %v3123
          %v3125 = vpop.f32.mrf.mxu0
          %v3126 = vadd.f32 %v3083, %v3125
          %v3127 = vand.u32 %v2704, 4294901760
          %v3128 = vsub.f32 %v2704, %v3127
          %3129 = vmatmul.f32.gmra.mxu0 %v3128
          %v3130 = vpop.f32.mrf.mxu0
          %v3131 = vadd.f32 %v3087, %v3130
          %v3132 = vand.u32 %v2707, 4294901760
          %v3133 = vsub.f32 %v2707, %v3132
          %3134 = vmatmul.f32.gmra.mxu0 %v3133
          %v3135 = vpop.f32.mrf.mxu0
          %v3136 = vadd.f32 %v3091, %v3135
          %3137 = vdwg.mxu0
          %3138 = vmatpush.msra.mxu0 0.0
          %3139 = vmatpush.msra.mxu0 0.0
          %3140 = vmatpush.msra.mxu0 0.0
          %3141 = vmatpush.msra.mxu0 0.0
          %3142 = vmatpush.msra.mxu0 0.0
          %3143 = vmatpush.msra.mxu0 0.0
          %3144 = vmatpush.msra.mxu0 0.0
          %3145 = vmatpush.msra.mxu0 0.0
          %3146 = vmatpush.msra.mxu0 0.0
          %3147 = vmatpush.msra.mxu0 0.0
          %3148 = vmatpush.msra.mxu0 0.0
          %3149 = vmatpush.msra.mxu0 0.0
          %v3150 = vand.u32 %v308, 4294901760
          %3151 = vmatpush.msra.mxu0 %v3150
          %v3152 = vand.u32 %v306, 4294901760
          %3153 = vmatpush.msra.mxu0 %v3152
          %v3154 = vand.u32 %v304, 4294901760
          %3155 = vmatpush.msra.mxu0 %v3154
          %v3156 = vand.u32 %v302, 4294901760
          %3157 = vmatpush.msra.mxu0 %v3156
          %v3158 = vand.u32 %v2698, 4294901760
          %v3159 = vsub.f32 %v2698, %v3158
          %v3160 = vand.u32 %v3159, 4294901760
          %3161 = vmatmul.f32.gmra.mxu0 %v3160
          %v3162 = vpop.f32.mrf.mxu0
          %v3163 = vadd.f32 %v3121, %v3162
          %v3164 = vand.u32 %v2701, 4294901760
          %v3165 = vsub.f32 %v2701, %v3164
          %v3166 = vand.u32 %v3165, 4294901760
          %3167 = vmatmul.f32.gmra.mxu0 %v3166
          %v3168 = vpop.f32.mrf.mxu0
          %v3169 = vadd.f32 %v3126, %v3168
          %v3170 = vand.u32 %v2704, 4294901760
          %v3171 = vsub.f32 %v2704, %v3170
          %v3172 = vand.u32 %v3171, 4294901760
          %3173 = vmatmul.f32.gmra.mxu0 %v3172
          %v3174 = vpop.f32.mrf.mxu0
          %v3175 = vadd.f32 %v3131, %v3174
          %v3176 = vand.u32 %v2707, 4294901760
          %v3177 = vsub.f32 %v2707, %v3176
          %v3178 = vand.u32 %v3177, 4294901760
          %3179 = vmatmul.f32.gmra.mxu0 %v3178
          %v3180 = vpop.f32.mrf.mxu0
          %v3181 = vadd.f32 %v3136, %v3180
          %3182 = vdwg.mxu0
          %3183 = vmatpush.msra.mxu0 0.0
          %3184 = vmatpush.msra.mxu0 0.0
          %3185 = vmatpush.msra.mxu0 0.0
          %3186 = vmatpush.msra.mxu0 0.0
          %3187 = vmatpush.msra.mxu0 0.0
          %3188 = vmatpush.msra.mxu0 0.0
          %3189 = vmatpush.msra.mxu0 0.0
          %3190 = vmatpush.msra.mxu0 0.0
          %3191 = vmatpush.msra.mxu0 0.0
          %3192 = vmatpush.msra.mxu0 0.0
          %3193 = vmatpush.msra.mxu0 0.0
          %3194 = vmatpush.msra.mxu0 0.0
          %v3195 = vand.u32 %v308, 4294901760
          %v3196 = vsub.f32 %v308, %v3195
          %v3197 = vand.u32 %v3196, 4294901760
          %3198 = vmatpush.msra.mxu0 %v3197
          %v3199 = vand.u32 %v306, 4294901760
          %v3200 = vsub.f32 %v306, %v3199
          %v3201 = vand.u32 %v3200, 4294901760
          %3202 = vmatpush.msra.mxu0 %v3201
          %v3203 = vand.u32 %v304, 4294901760
          %v3204 = vsub.f32 %v304, %v3203
          %v3205 = vand.u32 %v3204, 4294901760
          %3206 = vmatpush.msra.mxu0 %v3205
          %v3207 = vand.u32 %v302, 4294901760
          %v3208 = vsub.f32 %v302, %v3207
          %v3209 = vand.u32 %v3208, 4294901760
          %3210 = vmatpush.msra.mxu0 %v3209
          %v3211 = vand.u32 %v2698, 4294901760
          %3212 = vmatmul.f32.gmra.mxu0 %v3211
          %v3213 = vpop.f32.mrf.mxu0
          %v3214 = vadd.f32 %v3163, %v3213
          %v3215 = vand.u32 %v2701, 4294901760
          %3216 = vmatmul.f32.gmra.mxu0 %v3215
          %v3217 = vpop.f32.mrf.mxu0
          %v3218 = vadd.f32 %v3169, %v3217
          %v3219 = vand.u32 %v2704, 4294901760
          %3220 = vmatmul.f32.gmra.mxu0 %v3219
          %v3221 = vpop.f32.mrf.mxu0
          %v3222 = vadd.f32 %v3175, %v3221
          %v3223 = vand.u32 %v2707, 4294901760
          %3224 = vmatmul.f32.gmra.mxu0 %v3223
          %v3225 = vpop.f32.mrf.mxu0
          %v3226 = vadd.f32 %v3181, %v3225
          %3227 = vdwg.mxu0
          %3228 = vmatpush.msra.mxu0 0.0
          %3229 = vmatpush.msra.mxu0 0.0
          %3230 = vmatpush.msra.mxu0 0.0
          %3231 = vmatpush.msra.mxu0 0.0
          %3232 = vmatpush.msra.mxu0 0.0
          %3233 = vmatpush.msra.mxu0 0.0
          %3234 = vmatpush.msra.mxu0 0.0
          %3235 = vmatpush.msra.mxu0 0.0
          %3236 = vmatpush.msra.mxu0 0.0
          %3237 = vmatpush.msra.mxu0 0.0
          %3238 = vmatpush.msra.mxu0 0.0
          %3239 = vmatpush.msra.mxu0 0.0
          %v3240 = vand.u32 %v308, 4294901760
          %3241 = vmatpush.msra.mxu0 %v3240
          %v3242 = vand.u32 %v306, 4294901760
          %3243 = vmatpush.msra.mxu0 %v3242
          %v3244 = vand.u32 %v304, 4294901760
          %3245 = vmatpush.msra.mxu0 %v3244
          %v3246 = vand.u32 %v302, 4294901760
          %3247 = vmatpush.msra.mxu0 %v3246
          %v3248 = vand.u32 %v2698, 4294901760
          %3249 = vmatmul.f32.gmra.mxu0 %v3248
          %v3250 = vpop.f32.mrf.mxu0
          %v3251 = vadd.f32 %v3214, %v3250
          %v3252 = vand.u32 %v2701, 4294901760
          %3253 = vmatmul.f32.gmra.mxu0 %v3252
          %v3254 = vpop.f32.mrf.mxu0
          %v3255 = vadd.f32 %v3218, %v3254
          %v3256 = vand.u32 %v2704, 4294901760
          %3257 = vmatmul.f32.gmra.mxu0 %v3256
          %v3258 = vpop.f32.mrf.mxu0
          %v3259 = vadd.f32 %v3222, %v3258
          %v3260 = vand.u32 %v2707, 4294901760
          %3261 = vmatmul.f32.gmra.mxu0 %v3260
          %v3262 = vpop.f32.mrf.mxu0
          %v3263 = vadd.f32 %v3226, %v3262
          %3264 = vdwg.mxu0
          %3265 = vst [vmem:[%s275] sm:$0xff] %v2973
          %3266 = vst [vmem:[%s275 + $0x8] sm:$0xff] %v3251
          %3267 = vst [vmem:[%s275 + $0x10] sm:$0xff] %v2977
          %3268 = vst [vmem:[%s275 + $0x18] sm:$0xff] %v3255
          %3269 = vst [vmem:[%s275 + $0x20] sm:$0xff] %v2981
          %3270 = vst [vmem:[%s275 + $0x28] sm:$0xff] %v3259
          %3271 = vst [vmem:[%s275 + $0x30] sm:$0xff] %v2985
          %3272 = vst [vmem:[%s275 + $0x38] sm:$0xff] %v3263
        $region48: #{branch_1_fun.1} parent=39 // pred_fallthru
          _
        %v3273 = vld [vmem:[%s294] sm:$0xff]
        %v3274 = vld [vmem:[%s294 + $0x8] sm:$0xff]
        %v3275 = vld [vmem:[%s3] sm:$0xff]
        // Predicated region
        $region49: #{branch_1_fun.1} parent=39 // pred_check
          %p3276 = pneg %p300
        $region50: #{branch_1_fun.1} parent=39 // pred_check_branch
          %3278 = sbr.rel (%p3276) target = $region52
        $region51: #{branch_1_fun.1} parent=39 // pred_region
          %v3279 = vld [vmem:[%s1] sm:$0xff]
          %v3280 = vld [vmem:[%s1 + $0x8] sm:$0xff]
          %v3281 = vld [vmem:[%s1 + $0x10] sm:$0xff]
          %v3282 = vld [vmem:[%s1 + $0x18] sm:$0xff]
          %v3283 = vld [vmem:[%s1 + $0x20] sm:$0xff]
          %v3284 = vld [vmem:[%s1 + $0x28] sm:$0xff]
          %v3285 = vld [vmem:[%s1 + $0x30] sm:$0xff]
          %v3286 = vld [vmem:[%s1 + $0x38] sm:$0xff]
          %v3287 = vld [vmem:[%s1 + $0x40] sm:$0xff]
          %v3288 = vld [vmem:[%s1 + $0x48] sm:$0xff]
          %v3289 = vld [vmem:[%s1 + $0x50] sm:$0xff]
          %v3290 = vld [vmem:[%s1 + $0x58] sm:$0xff]
          %v3291 = vld [vmem:[%s1 + $0x60] sm:$0xff]
          %v3292 = vld [vmem:[%s1 + $0x68] sm:$0xff]
          %v3293 = vld [vmem:[%s1 + $0x70] sm:$0xff]
          %v3294 = vld [vmem:[%s1 + $0x78] sm:$0xff]
          %v3295 = vld [vmem:[%s1 + $0x80] sm:$0xff]
          %v3296 = vld [vmem:[%s1 + $0x88] sm:$0xff]
          %v3297 = vld [vmem:[%s1 + $0x90] sm:$0xff]
          %v3298 = vld [vmem:[%s1 + $0x98] sm:$0xff]
          %v3299 = vld [vmem:[%s1 + $0xa0] sm:$0xff]
          %v3300 = vld [vmem:[%s1 + $0xa8] sm:$0xff]
          %v3301 = vld [vmem:[%s1 + $0xb0] sm:$0xff]
          %v3302 = vld [vmem:[%s1 + $0xb8] sm:$0xff]
          %v3303 = vld [vmem:[%s1 + $0xc0] sm:$0xff]
          %v3304 = vld [vmem:[%s1 + $0xc8] sm:$0xff]
          %v3305 = vld [vmem:[%s1 + $0xd0] sm:$0xff]
          %v3306 = vld [vmem:[%s1 + $0xd8] sm:$0xff]
          %v3307 = vld [vmem:[%s1 + $0xe0] sm:$0xff]
          %v3308 = vld [vmem:[%s1 + $0xe8] sm:$0xff]
          %v3309 = vld [vmem:[%s1 + $0xf0] sm:$0xff]
          %v3310 = vld [vmem:[%s1 + $0xf8] sm:$0xff]
          %v3311 = vld [vmem:[%s1 + $0x100] sm:$0xff]
          %v3312 = vld [vmem:[%s1 + $0x108] sm:$0xff]
          %v3313 = vld [vmem:[%s1 + $0x110] sm:$0xff]
          %v3314 = vld [vmem:[%s1 + $0x118] sm:$0xff]
          %v3315 = vld [vmem:[%s1 + $0x120] sm:$0xff]
          %v3316 = vld [vmem:[%s1 + $0x128] sm:$0xff]
          %v3317 = vld [vmem:[%s1 + $0x130] sm:$0xff]
          %v3318 = vld [vmem:[%s1 + $0x138] sm:$0xff]
          %v3319 = vld [vmem:[%s1 + $0x140] sm:$0xff]
          %v3320 = vld [vmem:[%s1 + $0x148] sm:$0xff]
          %v3321 = vld [vmem:[%s1 + $0x150] sm:$0xff]
          %v3322 = vld [vmem:[%s1 + $0x158] sm:$0xff]
          %v3323 = vld [vmem:[%s1 + $0x160] sm:$0xff]
          %v3324 = vld [vmem:[%s1 + $0x168] sm:$0xff]
          %v3325 = vld [vmem:[%s1 + $0x170] sm:$0xff]
          %v3326 = vld [vmem:[%s1 + $0x178] sm:$0xff]
          %v3327 = vld [vmem:[%s1 + $0x180] sm:$0xff]
          %v3328 = vld [vmem:[%s1 + $0x188] sm:$0xff]
          %v3329 = vld [vmem:[%s1 + $0x190] sm:$0xff]
          %v3330 = vld [vmem:[%s1 + $0x198] sm:$0xff]
          %v3331 = vld [vmem:[%s1 + $0x1a0] sm:$0xff]
          %v3332 = vld [vmem:[%s1 + $0x1a8] sm:$0xff]
          %v3333 = vld [vmem:[%s1 + $0x1b0] sm:$0xff]
          %v3334 = vld [vmem:[%s1 + $0x1b8] sm:$0xff]
          %v3335 = vld [vmem:[%s1 + $0x1c0] sm:$0xff]
          %v3336 = vld [vmem:[%s1 + $0x1c8] sm:$0xff]
          %v3337 = vld [vmem:[%s1 + $0x1d0] sm:$0xff]
          %v3338 = vld [vmem:[%s1 + $0x1d8] sm:$0xff]
          %v3339 = vld [vmem:[%s1 + $0x1e0] sm:$0xff]
          %v3340 = vld [vmem:[%s1 + $0x1e8] sm:$0xff]
          %v3341 = vld [vmem:[%s1 + $0x1f0] sm:$0xff]
          %v3342 = vld [vmem:[%s1 + $0x1f8] sm:$0xff]
          %v3343 = vand.u32 %v3309, 4294901760
          %3344 = vmatpush.msra.mxu0 %v3343
          %v3345 = vand.u32 %v3307, 4294901760
          %3346 = vmatpush.msra.mxu0 %v3345
          %v3347 = vand.u32 %v3305, 4294901760
          %3348 = vmatpush.msra.mxu0 %v3347
          %v3349 = vand.u32 %v3303, 4294901760
          %3350 = vmatpush.msra.mxu0 %v3349
          %v3351 = vand.u32 %v3301, 4294901760
          %3352 = vmatpush.msra.mxu0 %v3351
          %v3353 = vand.u32 %v3299, 4294901760
          %3354 = vmatpush.msra.mxu0 %v3353
          %v3355 = vand.u32 %v3297, 4294901760
          %3356 = vmatpush.msra.mxu0 %v3355
          %v3357 = vand.u32 %v3295, 4294901760
          %3358 = vmatpush.msra.mxu0 %v3357
          %v3359 = vand.u32 %v3293, 4294901760
          %3360 = vmatpush.msra.mxu0 %v3359
          %v3361 = vand.u32 %v3291, 4294901760
          %3362 = vmatpush.msra.mxu0 %v3361
          %v3363 = vand.u32 %v3289, 4294901760
          %3364 = vmatpush.msra.mxu0 %v3363
          %v3365 = vand.u32 %v3287, 4294901760
          %3366 = vmatpush.msra.mxu0 %v3365
          %v3367 = vand.u32 %v3285, 4294901760
          %3368 = vmatpush.msra.mxu0 %v3367
          %v3369 = vand.u32 %v3283, 4294901760
          %3370 = vmatpush.msra.mxu0 %v3369
          %v3371 = vand.u32 %v3281, 4294901760
          %3372 = vmatpush.msra.mxu0 %v3371
          %v3373 = vand.u32 %v3279, 4294901760
          %3374 = vmatpush.msra.mxu0 %v3373
          %v3375 = vand.u32 %v3273, 4294901760
          %v3376 = vsub.f32 %v3273, %v3375
          %v3377 = vand.u32 %v3376, 4294901760
          %v3378 = vsub.f32 %v3376, %v3377
          %v3379 = vand.u32 %v3378, 4294901760
          %3380 = vmatmul.f32.gmra.mxu0 %v3379
          %v3381 = vpop.f32.mrf.mxu0
          %v3382 = vadd.f32 0.0, %v3381
          %3383 = vdwg.mxu0
          %v3384 = vand.u32 %v3309, 4294901760
          %v3385 = vsub.f32 %v3309, %v3384
          %v3386 = vand.u32 %v3385, 4294901760
          %v3387 = vsub.f32 %v3385, %v3386
          %v3388 = vand.u32 %v3387, 4294901760
          %3389 = vmatpush.msra.mxu0 %v3388
          %v3390 = vand.u32 %v3307, 4294901760
          %v3391 = vsub.f32 %v3307, %v3390
          %v3392 = vand.u32 %v3391, 4294901760
          %v3393 = vsub.f32 %v3391, %v3392
          %v3394 = vand.u32 %v3393, 4294901760
          %3395 = vmatpush.msra.mxu0 %v3394
          %v3396 = vand.u32 %v3305, 4294901760
          %v3397 = vsub.f32 %v3305, %v3396
          %v3398 = vand.u32 %v3397, 4294901760
          %v3399 = vsub.f32 %v3397, %v3398
          %v3400 = vand.u32 %v3399, 4294901760
          %3401 = vmatpush.msra.mxu0 %v3400
          %v3402 = vand.u32 %v3303, 4294901760
          %v3403 = vsub.f32 %v3303, %v3402
          %v3404 = vand.u32 %v3403, 4294901760
          %v3405 = vsub.f32 %v3403, %v3404
          %v3406 = vand.u32 %v3405, 4294901760
          %3407 = vmatpush.msra.mxu0 %v3406
          %v3408 = vand.u32 %v3301, 4294901760
          %v3409 = vsub.f32 %v3301, %v3408
          %v3410 = vand.u32 %v3409, 4294901760
          %v3411 = vsub.f32 %v3409, %v3410
          %v3412 = vand.u32 %v3411, 4294901760
          %3413 = vmatpush.msra.mxu0 %v3412
          %v3414 = vand.u32 %v3299, 4294901760
          %v3415 = vsub.f32 %v3299, %v3414
          %v3416 = vand.u32 %v3415, 4294901760
          %v3417 = vsub.f32 %v3415, %v3416
          %v3418 = vand.u32 %v3417, 4294901760
          %3419 = vmatpush.msra.mxu0 %v3418
          %v3420 = vand.u32 %v3297, 4294901760
          %v3421 = vsub.f32 %v3297, %v3420
          %v3422 = vand.u32 %v3421, 4294901760
          %v3423 = vsub.f32 %v3421, %v3422
          %v3424 = vand.u32 %v3423, 4294901760
          %3425 = vmatpush.msra.mxu0 %v3424
          %v3426 = vand.u32 %v3295, 4294901760
          %v3427 = vsub.f32 %v3295, %v3426
          %v3428 = vand.u32 %v3427, 4294901760
          %v3429 = vsub.f32 %v3427, %v3428
          %v3430 = vand.u32 %v3429, 4294901760
          %3431 = vmatpush.msra.mxu0 %v3430
          %v3432 = vand.u32 %v3293, 4294901760
          %v3433 = vsub.f32 %v3293, %v3432
          %v3434 = vand.u32 %v3433, 4294901760
          %v3435 = vsub.f32 %v3433, %v3434
          %v3436 = vand.u32 %v3435, 4294901760
          %3437 = vmatpush.msra.mxu0 %v3436
          %v3438 = vand.u32 %v3291, 4294901760
          %v3439 = vsub.f32 %v3291, %v3438
          %v3440 = vand.u32 %v3439, 4294901760
          %v3441 = vsub.f32 %v3439, %v3440
          %v3442 = vand.u32 %v3441, 4294901760
          %3443 = vmatpush.msra.mxu0 %v3442
          %v3444 = vand.u32 %v3289, 4294901760
          %v3445 = vsub.f32 %v3289, %v3444
          %v3446 = vand.u32 %v3445, 4294901760
          %v3447 = vsub.f32 %v3445, %v3446
          %v3448 = vand.u32 %v3447, 4294901760
          %3449 = vmatpush.msra.mxu0 %v3448
          %v3450 = vand.u32 %v3287, 4294901760
          %v3451 = vsub.f32 %v3287, %v3450
          %v3452 = vand.u32 %v3451, 4294901760
          %v3453 = vsub.f32 %v3451, %v3452
          %v3454 = vand.u32 %v3453, 4294901760
          %3455 = vmatpush.msra.mxu0 %v3454
          %v3456 = vand.u32 %v3285, 4294901760
          %v3457 = vsub.f32 %v3285, %v3456
          %v3458 = vand.u32 %v3457, 4294901760
          %v3459 = vsub.f32 %v3457, %v3458
          %v3460 = vand.u32 %v3459, 4294901760
          %3461 = vmatpush.msra.mxu0 %v3460
          %v3462 = vand.u32 %v3283, 4294901760
          %v3463 = vsub.f32 %v3283, %v3462
          %v3464 = vand.u32 %v3463, 4294901760
          %v3465 = vsub.f32 %v3463, %v3464
          %v3466 = vand.u32 %v3465, 4294901760
          %3467 = vmatpush.msra.mxu0 %v3466
          %v3468 = vand.u32 %v3281, 4294901760
          %v3469 = vsub.f32 %v3281, %v3468
          %v3470 = vand.u32 %v3469, 4294901760
          %v3471 = vsub.f32 %v3469, %v3470
          %v3472 = vand.u32 %v3471, 4294901760
          %3473 = vmatpush.msra.mxu0 %v3472
          %v3474 = vand.u32 %v3279, 4294901760
          %v3475 = vsub.f32 %v3279, %v3474
          %v3476 = vand.u32 %v3475, 4294901760
          %v3477 = vsub.f32 %v3475, %v3476
          %v3478 = vand.u32 %v3477, 4294901760
          %3479 = vmatpush.msra.mxu0 %v3478
          %v3480 = vand.u32 %v3273, 4294901760
          %3481 = vmatmul.f32.gmra.mxu0 %v3480
          %v3482 = vpop.f32.mrf.mxu0
          %v3483 = vadd.f32 %v3382, %v3482
          %3484 = vdwg.mxu0
          %v3485 = vand.u32 %v3309, 4294901760
          %v3486 = vsub.f32 %v3309, %v3485
          %3487 = vmatpush.msra.mxu0 %v3486
          %v3488 = vand.u32 %v3307, 4294901760
          %v3489 = vsub.f32 %v3307, %v3488
          %3490 = vmatpush.msra.mxu0 %v3489
          %v3491 = vand.u32 %v3305, 4294901760
          %v3492 = vsub.f32 %v3305, %v3491
          %3493 = vmatpush.msra.mxu0 %v3492
          %v3494 = vand.u32 %v3303, 4294901760
          %v3495 = vsub.f32 %v3303, %v3494
          %3496 = vmatpush.msra.mxu0 %v3495
          %v3497 = vand.u32 %v3301, 4294901760
          %v3498 = vsub.f32 %v3301, %v3497
          %3499 = vmatpush.msra.mxu0 %v3498
          %v3500 = vand.u32 %v3299, 4294901760
          %v3501 = vsub.f32 %v3299, %v3500
          %3502 = vmatpush.msra.mxu0 %v3501
          %v3503 = vand.u32 %v3297, 4294901760
          %v3504 = vsub.f32 %v3297, %v3503
          %3505 = vmatpush.msra.mxu0 %v3504
          %v3506 = vand.u32 %v3295, 4294901760
          %v3507 = vsub.f32 %v3295, %v3506
          %3508 = vmatpush.msra.mxu0 %v3507
          %v3509 = vand.u32 %v3293, 4294901760
          %v3510 = vsub.f32 %v3293, %v3509
          %3511 = vmatpush.msra.mxu0 %v3510
          %v3512 = vand.u32 %v3291, 4294901760
          %v3513 = vsub.f32 %v3291, %v3512
          %3514 = vmatpush.msra.mxu0 %v3513
          %v3515 = vand.u32 %v3289, 4294901760
          %v3516 = vsub.f32 %v3289, %v3515
          %3517 = vmatpush.msra.mxu0 %v3516
          %v3518 = vand.u32 %v3287, 4294901760
          %v3519 = vsub.f32 %v3287, %v3518
          %3520 = vmatpush.msra.mxu0 %v3519
          %v3521 = vand.u32 %v3285, 4294901760
          %v3522 = vsub.f32 %v3285, %v3521
          %3523 = vmatpush.msra.mxu0 %v3522
          %v3524 = vand.u32 %v3283, 4294901760
          %v3525 = vsub.f32 %v3283, %v3524
          %3526 = vmatpush.msra.mxu0 %v3525
          %v3527 = vand.u32 %v3281, 4294901760
          %v3528 = vsub.f32 %v3281, %v3527
          %3529 = vmatpush.msra.mxu0 %v3528
          %v3530 = vand.u32 %v3279, 4294901760
          %v3531 = vsub.f32 %v3279, %v3530
          %3532 = vmatpush.msra.mxu0 %v3531
          %v3533 = vand.u32 %v3273, 4294901760
          %v3534 = vsub.f32 %v3273, %v3533
          %3535 = vmatmul.f32.gmra.mxu0 %v3534
          %v3536 = vpop.f32.mrf.mxu0
          %v3537 = vadd.f32 %v3483, %v3536
          %3538 = vdwg.mxu0
          %v3539 = vand.u32 %v3309, 4294901760
          %3540 = vmatpush.msra.mxu0 %v3539
          %v3541 = vand.u32 %v3307, 4294901760
          %3542 = vmatpush.msra.mxu0 %v3541
          %v3543 = vand.u32 %v3305, 4294901760
          %3544 = vmatpush.msra.mxu0 %v3543
          %v3545 = vand.u32 %v3303, 4294901760
          %3546 = vmatpush.msra.mxu0 %v3545
          %v3547 = vand.u32 %v3301, 4294901760
          %3548 = vmatpush.msra.mxu0 %v3547
          %v3549 = vand.u32 %v3299, 4294901760
          %3550 = vmatpush.msra.mxu0 %v3549
          %v3551 = vand.u32 %v3297, 4294901760
          %3552 = vmatpush.msra.mxu0 %v3551
          %v3553 = vand.u32 %v3295, 4294901760
          %3554 = vmatpush.msra.mxu0 %v3553
          %v3555 = vand.u32 %v3293, 4294901760
          %3556 = vmatpush.msra.mxu0 %v3555
          %v3557 = vand.u32 %v3291, 4294901760
          %3558 = vmatpush.msra.mxu0 %v3557
          %v3559 = vand.u32 %v3289, 4294901760
          %3560 = vmatpush.msra.mxu0 %v3559
          %v3561 = vand.u32 %v3287, 4294901760
          %3562 = vmatpush.msra.mxu0 %v3561
          %v3563 = vand.u32 %v3285, 4294901760
          %3564 = vmatpush.msra.mxu0 %v3563
          %v3565 = vand.u32 %v3283, 4294901760
          %3566 = vmatpush.msra.mxu0 %v3565
          %v3567 = vand.u32 %v3281, 4294901760
          %3568 = vmatpush.msra.mxu0 %v3567
          %v3569 = vand.u32 %v3279, 4294901760
          %3570 = vmatpush.msra.mxu0 %v3569
          %v3571 = vand.u32 %v3273, 4294901760
          %v3572 = vsub.f32 %v3273, %v3571
          %v3573 = vand.u32 %v3572, 4294901760
          %3574 = vmatmul.f32.gmra.mxu0 %v3573
          %v3575 = vpop.f32.mrf.mxu0
          %v3576 = vadd.f32 %v3537, %v3575
          %3577 = vdwg.mxu0
          %v3578 = vand.u32 %v3309, 4294901760
          %v3579 = vsub.f32 %v3309, %v3578
          %v3580 = vand.u32 %v3579, 4294901760
          %3581 = vmatpush.msra.mxu0 %v3580
          %v3582 = vand.u32 %v3307, 4294901760
          %v3583 = vsub.f32 %v3307, %v3582
          %v3584 = vand.u32 %v3583, 4294901760
          %3585 = vmatpush.msra.mxu0 %v3584
          %v3586 = vand.u32 %v3305, 4294901760
          %v3587 = vsub.f32 %v3305, %v3586
          %v3588 = vand.u32 %v3587, 4294901760
          %3589 = vmatpush.msra.mxu0 %v3588
          %v3590 = vand.u32 %v3303, 4294901760
          %v3591 = vsub.f32 %v3303, %v3590
          %v3592 = vand.u32 %v3591, 4294901760
          %3593 = vmatpush.msra.mxu0 %v3592
          %v3594 = vand.u32 %v3301, 4294901760
          %v3595 = vsub.f32 %v3301, %v3594
          %v3596 = vand.u32 %v3595, 4294901760
          %3597 = vmatpush.msra.mxu0 %v3596
          %v3598 = vand.u32 %v3299, 4294901760
          %v3599 = vsub.f32 %v3299, %v3598
          %v3600 = vand.u32 %v3599, 4294901760
          %3601 = vmatpush.msra.mxu0 %v3600
          %v3602 = vand.u32 %v3297, 4294901760
          %v3603 = vsub.f32 %v3297, %v3602
          %v3604 = vand.u32 %v3603, 4294901760
          %3605 = vmatpush.msra.mxu0 %v3604
          %v3606 = vand.u32 %v3295, 4294901760
          %v3607 = vsub.f32 %v3295, %v3606
          %v3608 = vand.u32 %v3607, 4294901760
          %3609 = vmatpush.msra.mxu0 %v3608
          %v3610 = vand.u32 %v3293, 4294901760
          %v3611 = vsub.f32 %v3293, %v3610
          %v3612 = vand.u32 %v3611, 4294901760
          %3613 = vmatpush.msra.mxu0 %v3612
          %v3614 = vand.u32 %v3291, 4294901760
          %v3615 = vsub.f32 %v3291, %v3614
          %v3616 = vand.u32 %v3615, 4294901760
          %3617 = vmatpush.msra.mxu0 %v3616
          %v3618 = vand.u32 %v3289, 4294901760
          %v3619 = vsub.f32 %v3289, %v3618
          %v3620 = vand.u32 %v3619, 4294901760
          %3621 = vmatpush.msra.mxu0 %v3620
          %v3622 = vand.u32 %v3287, 4294901760
          %v3623 = vsub.f32 %v3287, %v3622
          %v3624 = vand.u32 %v3623, 4294901760
          %3625 = vmatpush.msra.mxu0 %v3624
          %v3626 = vand.u32 %v3285, 4294901760
          %v3627 = vsub.f32 %v3285, %v3626
          %v3628 = vand.u32 %v3627, 4294901760
          %3629 = vmatpush.msra.mxu0 %v3628
          %v3630 = vand.u32 %v3283, 4294901760
          %v3631 = vsub.f32 %v3283, %v3630
          %v3632 = vand.u32 %v3631, 4294901760
          %3633 = vmatpush.msra.mxu0 %v3632
          %v3634 = vand.u32 %v3281, 4294901760
          %v3635 = vsub.f32 %v3281, %v3634
          %v3636 = vand.u32 %v3635, 4294901760
          %3637 = vmatpush.msra.mxu0 %v3636
          %v3638 = vand.u32 %v3279, 4294901760
          %v3639 = vsub.f32 %v3279, %v3638
          %v3640 = vand.u32 %v3639, 4294901760
          %3641 = vmatpush.msra.mxu0 %v3640
          %v3642 = vand.u32 %v3273, 4294901760
          %3643 = vmatmul.f32.gmra.mxu0 %v3642
          %v3644 = vpop.f32.mrf.mxu0
          %v3645 = vadd.f32 %v3576, %v3644
          %3646 = vdwg.mxu0
          %v3647 = vand.u32 %v3309, 4294901760
          %3648 = vmatpush.msra.mxu0 %v3647
          %v3649 = vand.u32 %v3307, 4294901760
          %3650 = vmatpush.msra.mxu0 %v3649
          %v3651 = vand.u32 %v3305, 4294901760
          %3652 = vmatpush.msra.mxu0 %v3651
          %v3653 = vand.u32 %v3303, 4294901760
          %3654 = vmatpush.msra.mxu0 %v3653
          %v3655 = vand.u32 %v3301, 4294901760
          %3656 = vmatpush.msra.mxu0 %v3655
          %v3657 = vand.u32 %v3299, 4294901760
          %3658 = vmatpush.msra.mxu0 %v3657
          %v3659 = vand.u32 %v3297, 4294901760
          %3660 = vmatpush.msra.mxu0 %v3659
          %v3661 = vand.u32 %v3295, 4294901760
          %3662 = vmatpush.msra.mxu0 %v3661
          %v3663 = vand.u32 %v3293, 4294901760
          %3664 = vmatpush.msra.mxu0 %v3663
          %v3665 = vand.u32 %v3291, 4294901760
          %3666 = vmatpush.msra.mxu0 %v3665
          %v3667 = vand.u32 %v3289, 4294901760
          %3668 = vmatpush.msra.mxu0 %v3667
          %v3669 = vand.u32 %v3287, 4294901760
          %3670 = vmatpush.msra.mxu0 %v3669
          %v3671 = vand.u32 %v3285, 4294901760
          %3672 = vmatpush.msra.mxu0 %v3671
          %v3673 = vand.u32 %v3283, 4294901760
          %3674 = vmatpush.msra.mxu0 %v3673
          %v3675 = vand.u32 %v3281, 4294901760
          %3676 = vmatpush.msra.mxu0 %v3675
          %v3677 = vand.u32 %v3279, 4294901760
          %3678 = vmatpush.msra.mxu0 %v3677
          %v3679 = vand.u32 %v3273, 4294901760
          %3680 = vmatmul.f32.gmra.mxu0 %v3679
          %v3681 = vpop.f32.mrf.mxu0
          %v3682 = vadd.f32 %v3645, %v3681
          %3683 = vdwg.mxu0
          %v3684 = vand.u32 %v3341, 4294901760
          %3685 = vmatpush.msra.mxu0 %v3684
          %v3686 = vand.u32 %v3339, 4294901760
          %3687 = vmatpush.msra.mxu0 %v3686
          %v3688 = vand.u32 %v3337, 4294901760
          %3689 = vmatpush.msra.mxu0 %v3688
          %v3690 = vand.u32 %v3335, 4294901760
          %3691 = vmatpush.msra.mxu0 %v3690
          %v3692 = vand.u32 %v3333, 4294901760
          %3693 = vmatpush.msra.mxu0 %v3692
          %v3694 = vand.u32 %v3331, 4294901760
          %3695 = vmatpush.msra.mxu0 %v3694
          %v3696 = vand.u32 %v3329, 4294901760
          %3697 = vmatpush.msra.mxu0 %v3696
          %v3698 = vand.u32 %v3327, 4294901760
          %3699 = vmatpush.msra.mxu0 %v3698
          %v3700 = vand.u32 %v3325, 4294901760
          %3701 = vmatpush.msra.mxu0 %v3700
          %v3702 = vand.u32 %v3323, 4294901760
          %3703 = vmatpush.msra.mxu0 %v3702
          %v3704 = vand.u32 %v3321, 4294901760
          %3705 = vmatpush.msra.mxu0 %v3704
          %v3706 = vand.u32 %v3319, 4294901760
          %3707 = vmatpush.msra.mxu0 %v3706
          %v3708 = vand.u32 %v3317, 4294901760
          %3709 = vmatpush.msra.mxu0 %v3708
          %v3710 = vand.u32 %v3315, 4294901760
          %3711 = vmatpush.msra.mxu0 %v3710
          %v3712 = vand.u32 %v3313, 4294901760
          %3713 = vmatpush.msra.mxu0 %v3712
          %v3714 = vand.u32 %v3311, 4294901760
          %3715 = vmatpush.msra.mxu0 %v3714
          %v3716 = vand.u32 %v3274, 4294901760
          %v3717 = vsub.f32 %v3274, %v3716
          %v3718 = vand.u32 %v3717, 4294901760
          %v3719 = vsub.f32 %v3717, %v3718
          %v3720 = vand.u32 %v3719, 4294901760
          %3721 = vmatmul.f32.gmra.mxu0 %v3720
          %v3722 = vpop.f32.mrf.mxu0
          %v3723 = vadd.f32 %v3682, %v3722
          %3724 = vdwg.mxu0
          %v3725 = vand.u32 %v3341, 4294901760
          %v3726 = vsub.f32 %v3341, %v3725
          %v3727 = vand.u32 %v3726, 4294901760
          %v3728 = vsub.f32 %v3726, %v3727
          %v3729 = vand.u32 %v3728, 4294901760
          %3730 = vmatpush.msra.mxu0 %v3729
          %v3731 = vand.u32 %v3339, 4294901760
          %v3732 = vsub.f32 %v3339, %v3731
          %v3733 = vand.u32 %v3732, 4294901760
          %v3734 = vsub.f32 %v3732, %v3733
          %v3735 = vand.u32 %v3734, 4294901760
          %3736 = vmatpush.msra.mxu0 %v3735
          %v3737 = vand.u32 %v3337, 4294901760
          %v3738 = vsub.f32 %v3337, %v3737
          %v3739 = vand.u32 %v3738, 4294901760
          %v3740 = vsub.f32 %v3738, %v3739
          %v3741 = vand.u32 %v3740, 4294901760
          %3742 = vmatpush.msra.mxu0 %v3741
          %v3743 = vand.u32 %v3335, 4294901760
          %v3744 = vsub.f32 %v3335, %v3743
          %v3745 = vand.u32 %v3744, 4294901760
          %v3746 = vsub.f32 %v3744, %v3745
          %v3747 = vand.u32 %v3746, 4294901760
          %3748 = vmatpush.msra.mxu0 %v3747
          %v3749 = vand.u32 %v3333, 4294901760
          %v3750 = vsub.f32 %v3333, %v3749
          %v3751 = vand.u32 %v3750, 4294901760
          %v3752 = vsub.f32 %v3750, %v3751
          %v3753 = vand.u32 %v3752, 4294901760
          %3754 = vmatpush.msra.mxu0 %v3753
          %v3755 = vand.u32 %v3331, 4294901760
          %v3756 = vsub.f32 %v3331, %v3755
          %v3757 = vand.u32 %v3756, 4294901760
          %v3758 = vsub.f32 %v3756, %v3757
          %v3759 = vand.u32 %v3758, 4294901760
          %3760 = vmatpush.msra.mxu0 %v3759
          %v3761 = vand.u32 %v3329, 4294901760
          %v3762 = vsub.f32 %v3329, %v3761
          %v3763 = vand.u32 %v3762, 4294901760
          %v3764 = vsub.f32 %v3762, %v3763
          %v3765 = vand.u32 %v3764, 4294901760
          %3766 = vmatpush.msra.mxu0 %v3765
          %v3767 = vand.u32 %v3327, 4294901760
          %v3768 = vsub.f32 %v3327, %v3767
          %v3769 = vand.u32 %v3768, 4294901760
          %v3770 = vsub.f32 %v3768, %v3769
          %v3771 = vand.u32 %v3770, 4294901760
          %3772 = vmatpush.msra.mxu0 %v3771
          %v3773 = vand.u32 %v3325, 4294901760
          %v3774 = vsub.f32 %v3325, %v3773
          %v3775 = vand.u32 %v3774, 4294901760
          %v3776 = vsub.f32 %v3774, %v3775
          %v3777 = vand.u32 %v3776, 4294901760
          %3778 = vmatpush.msra.mxu0 %v3777
          %v3779 = vand.u32 %v3323, 4294901760
          %v3780 = vsub.f32 %v3323, %v3779
          %v3781 = vand.u32 %v3780, 4294901760
          %v3782 = vsub.f32 %v3780, %v3781
          %v3783 = vand.u32 %v3782, 4294901760
          %3784 = vmatpush.msra.mxu0 %v3783
          %v3785 = vand.u32 %v3321, 4294901760
          %v3786 = vsub.f32 %v3321, %v3785
          %v3787 = vand.u32 %v3786, 4294901760
          %v3788 = vsub.f32 %v3786, %v3787
          %v3789 = vand.u32 %v3788, 4294901760
          %3790 = vmatpush.msra.mxu0 %v3789
          %v3791 = vand.u32 %v3319, 4294901760
          %v3792 = vsub.f32 %v3319, %v3791
          %v3793 = vand.u32 %v3792, 4294901760
          %v3794 = vsub.f32 %v3792, %v3793
          %v3795 = vand.u32 %v3794, 4294901760
          %3796 = vmatpush.msra.mxu0 %v3795
          %v3797 = vand.u32 %v3317, 4294901760
          %v3798 = vsub.f32 %v3317, %v3797
          %v3799 = vand.u32 %v3798, 4294901760
          %v3800 = vsub.f32 %v3798, %v3799
          %v3801 = vand.u32 %v3800, 4294901760
          %3802 = vmatpush.msra.mxu0 %v3801
          %v3803 = vand.u32 %v3315, 4294901760
          %v3804 = vsub.f32 %v3315, %v3803
          %v3805 = vand.u32 %v3804, 4294901760
          %v3806 = vsub.f32 %v3804, %v3805
          %v3807 = vand.u32 %v3806, 4294901760
          %3808 = vmatpush.msra.mxu0 %v3807
          %v3809 = vand.u32 %v3313, 4294901760
          %v3810 = vsub.f32 %v3313, %v3809
          %v3811 = vand.u32 %v3810, 4294901760
          %v3812 = vsub.f32 %v3810, %v3811
          %v3813 = vand.u32 %v3812, 4294901760
          %3814 = vmatpush.msra.mxu0 %v3813
          %v3815 = vand.u32 %v3311, 4294901760
          %v3816 = vsub.f32 %v3311, %v3815
          %v3817 = vand.u32 %v3816, 4294901760
          %v3818 = vsub.f32 %v3816, %v3817
          %v3819 = vand.u32 %v3818, 4294901760
          %3820 = vmatpush.msra.mxu0 %v3819
          %v3821 = vand.u32 %v3274, 4294901760
          %3822 = vmatmul.f32.gmra.mxu0 %v3821
          %v3823 = vpop.f32.mrf.mxu0
          %v3824 = vadd.f32 %v3723, %v3823
          %3825 = vdwg.mxu0
          %v3826 = vand.u32 %v3341, 4294901760
          %v3827 = vsub.f32 %v3341, %v3826
          %3828 = vmatpush.msra.mxu0 %v3827
          %v3829 = vand.u32 %v3339, 4294901760
          %v3830 = vsub.f32 %v3339, %v3829
          %3831 = vmatpush.msra.mxu0 %v3830
          %v3832 = vand.u32 %v3337, 4294901760
          %v3833 = vsub.f32 %v3337, %v3832
          %3834 = vmatpush.msra.mxu0 %v3833
          %v3835 = vand.u32 %v3335, 4294901760
          %v3836 = vsub.f32 %v3335, %v3835
          %3837 = vmatpush.msra.mxu0 %v3836
          %v3838 = vand.u32 %v3333, 4294901760
          %v3839 = vsub.f32 %v3333, %v3838
          %3840 = vmatpush.msra.mxu0 %v3839
          %v3841 = vand.u32 %v3331, 4294901760
          %v3842 = vsub.f32 %v3331, %v3841
          %3843 = vmatpush.msra.mxu0 %v3842
          %v3844 = vand.u32 %v3329, 4294901760
          %v3845 = vsub.f32 %v3329, %v3844
          %3846 = vmatpush.msra.mxu0 %v3845
          %v3847 = vand.u32 %v3327, 4294901760
          %v3848 = vsub.f32 %v3327, %v3847
          %3849 = vmatpush.msra.mxu0 %v3848
          %v3850 = vand.u32 %v3325, 4294901760
          %v3851 = vsub.f32 %v3325, %v3850
          %3852 = vmatpush.msra.mxu0 %v3851
          %v3853 = vand.u32 %v3323, 4294901760
          %v3854 = vsub.f32 %v3323, %v3853
          %3855 = vmatpush.msra.mxu0 %v3854
          %v3856 = vand.u32 %v3321, 4294901760
          %v3857 = vsub.f32 %v3321, %v3856
          %3858 = vmatpush.msra.mxu0 %v3857
          %v3859 = vand.u32 %v3319, 4294901760
          %v3860 = vsub.f32 %v3319, %v3859
          %3861 = vmatpush.msra.mxu0 %v3860
          %v3862 = vand.u32 %v3317, 4294901760
          %v3863 = vsub.f32 %v3317, %v3862
          %3864 = vmatpush.msra.mxu0 %v3863
          %v3865 = vand.u32 %v3315, 4294901760
          %v3866 = vsub.f32 %v3315, %v3865
          %3867 = vmatpush.msra.mxu0 %v3866
          %v3868 = vand.u32 %v3313, 4294901760
          %v3869 = vsub.f32 %v3313, %v3868
          %3870 = vmatpush.msra.mxu0 %v3869
          %v3871 = vand.u32 %v3311, 4294901760
          %v3872 = vsub.f32 %v3311, %v3871
          %3873 = vmatpush.msra.mxu0 %v3872
          %v3874 = vand.u32 %v3274, 4294901760
          %v3875 = vsub.f32 %v3274, %v3874
          %3876 = vmatmul.f32.gmra.mxu0 %v3875
          %v3877 = vpop.f32.mrf.mxu0
          %v3878 = vadd.f32 %v3824, %v3877
          %3879 = vdwg.mxu0
          %v3880 = vand.u32 %v3341, 4294901760
          %3881 = vmatpush.msra.mxu0 %v3880
          %v3882 = vand.u32 %v3339, 4294901760
          %3883 = vmatpush.msra.mxu0 %v3882
          %v3884 = vand.u32 %v3337, 4294901760
          %3885 = vmatpush.msra.mxu0 %v3884
          %v3886 = vand.u32 %v3335, 4294901760
          %3887 = vmatpush.msra.mxu0 %v3886
          %v3888 = vand.u32 %v3333, 4294901760
          %3889 = vmatpush.msra.mxu0 %v3888
          %v3890 = vand.u32 %v3331, 4294901760
          %3891 = vmatpush.msra.mxu0 %v3890
          %v3892 = vand.u32 %v3329, 4294901760
          %3893 = vmatpush.msra.mxu0 %v3892
          %v3894 = vand.u32 %v3327, 4294901760
          %3895 = vmatpush.msra.mxu0 %v3894
          %v3896 = vand.u32 %v3325, 4294901760
          %3897 = vmatpush.msra.mxu0 %v3896
          %v3898 = vand.u32 %v3323, 4294901760
          %3899 = vmatpush.msra.mxu0 %v3898
          %v3900 = vand.u32 %v3321, 4294901760
          %3901 = vmatpush.msra.mxu0 %v3900
          %v3902 = vand.u32 %v3319, 4294901760
          %3903 = vmatpush.msra.mxu0 %v3902
          %v3904 = vand.u32 %v3317, 4294901760
          %3905 = vmatpush.msra.mxu0 %v3904
          %v3906 = vand.u32 %v3315, 4294901760
          %3907 = vmatpush.msra.mxu0 %v3906
          %v3908 = vand.u32 %v3313, 4294901760
          %3909 = vmatpush.msra.mxu0 %v3908
          %v3910 = vand.u32 %v3311, 4294901760
          %3911 = vmatpush.msra.mxu0 %v3910
          %v3912 = vand.u32 %v3274, 4294901760
          %v3913 = vsub.f32 %v3274, %v3912
          %v3914 = vand.u32 %v3913, 4294901760
          %3915 = vmatmul.f32.gmra.mxu0 %v3914
          %v3916 = vpop.f32.mrf.mxu0
          %v3917 = vadd.f32 %v3878, %v3916
          %3918 = vdwg.mxu0
          %v3919 = vand.u32 %v3341, 4294901760
          %v3920 = vsub.f32 %v3341, %v3919
          %v3921 = vand.u32 %v3920, 4294901760
          %3922 = vmatpush.msra.mxu0 %v3921
          %v3923 = vand.u32 %v3339, 4294901760
          %v3924 = vsub.f32 %v3339, %v3923
          %v3925 = vand.u32 %v3924, 4294901760
          %3926 = vmatpush.msra.mxu0 %v3925
          %v3927 = vand.u32 %v3337, 4294901760
          %v3928 = vsub.f32 %v3337, %v3927
          %v3929 = vand.u32 %v3928, 4294901760
          %3930 = vmatpush.msra.mxu0 %v3929
          %v3931 = vand.u32 %v3335, 4294901760
          %v3932 = vsub.f32 %v3335, %v3931
          %v3933 = vand.u32 %v3932, 4294901760
          %3934 = vmatpush.msra.mxu0 %v3933
          %v3935 = vand.u32 %v3333, 4294901760
          %v3936 = vsub.f32 %v3333, %v3935
          %v3937 = vand.u32 %v3936, 4294901760
          %3938 = vmatpush.msra.mxu0 %v3937
          %v3939 = vand.u32 %v3331, 4294901760
          %v3940 = vsub.f32 %v3331, %v3939
          %v3941 = vand.u32 %v3940, 4294901760
          %3942 = vmatpush.msra.mxu0 %v3941
          %v3943 = vand.u32 %v3329, 4294901760
          %v3944 = vsub.f32 %v3329, %v3943
          %v3945 = vand.u32 %v3944, 4294901760
          %3946 = vmatpush.msra.mxu0 %v3945
          %v3947 = vand.u32 %v3327, 4294901760
          %v3948 = vsub.f32 %v3327, %v3947
          %v3949 = vand.u32 %v3948, 4294901760
          %3950 = vmatpush.msra.mxu0 %v3949
          %v3951 = vand.u32 %v3325, 4294901760
          %v3952 = vsub.f32 %v3325, %v3951
          %v3953 = vand.u32 %v3952, 4294901760
          %3954 = vmatpush.msra.mxu0 %v3953
          %v3955 = vand.u32 %v3323, 4294901760
          %v3956 = vsub.f32 %v3323, %v3955
          %v3957 = vand.u32 %v3956, 4294901760
          %3958 = vmatpush.msra.mxu0 %v3957
          %v3959 = vand.u32 %v3321, 4294901760
          %v3960 = vsub.f32 %v3321, %v3959
          %v3961 = vand.u32 %v3960, 4294901760
          %3962 = vmatpush.msra.mxu0 %v3961
          %v3963 = vand.u32 %v3319, 4294901760
          %v3964 = vsub.f32 %v3319, %v3963
          %v3965 = vand.u32 %v3964, 4294901760
          %3966 = vmatpush.msra.mxu0 %v3965
          %v3967 = vand.u32 %v3317, 4294901760
          %v3968 = vsub.f32 %v3317, %v3967
          %v3969 = vand.u32 %v3968, 4294901760
          %3970 = vmatpush.msra.mxu0 %v3969
          %v3971 = vand.u32 %v3315, 4294901760
          %v3972 = vsub.f32 %v3315, %v3971
          %v3973 = vand.u32 %v3972, 4294901760
          %3974 = vmatpush.msra.mxu0 %v3973
          %v3975 = vand.u32 %v3313, 4294901760
          %v3976 = vsub.f32 %v3313, %v3975
          %v3977 = vand.u32 %v3976, 4294901760
          %3978 = vmatpush.msra.mxu0 %v3977
          %v3979 = vand.u32 %v3311, 4294901760
          %v3980 = vsub.f32 %v3311, %v3979
          %v3981 = vand.u32 %v3980, 4294901760
          %3982 = vmatpush.msra.mxu0 %v3981
          %v3983 = vand.u32 %v3274, 4294901760
          %3984 = vmatmul.f32.gmra.mxu0 %v3983
          %v3985 = vpop.f32.mrf.mxu0
          %v3986 = vadd.f32 %v3917, %v3985
          %3987 = vdwg.mxu0
          %v3988 = vand.u32 %v3341, 4294901760
          %3989 = vmatpush.msra.mxu0 %v3988
          %v3990 = vand.u32 %v3339, 4294901760
          %3991 = vmatpush.msra.mxu0 %v3990
          %v3992 = vand.u32 %v3337, 4294901760
          %3993 = vmatpush.msra.mxu0 %v3992
          %v3994 = vand.u32 %v3335, 4294901760
          %3995 = vmatpush.msra.mxu0 %v3994
          %v3996 = vand.u32 %v3333, 4294901760
          %3997 = vmatpush.msra.mxu0 %v3996
          %v3998 = vand.u32 %v3331, 4294901760
          %3999 = vmatpush.msra.mxu0 %v3998
          %v4000 = vand.u32 %v3329, 4294901760
          %4001 = vmatpush.msra.mxu0 %v4000
          %v4002 = vand.u32 %v3327, 4294901760
          %4003 = vmatpush.msra.mxu0 %v4002
          %v4004 = vand.u32 %v3325, 4294901760
          %4005 = vmatpush.msra.mxu0 %v4004
          %v4006 = vand.u32 %v3323, 4294901760
          %4007 = vmatpush.msra.mxu0 %v4006
          %v4008 = vand.u32 %v3321, 4294901760
          %4009 = vmatpush.msra.mxu0 %v4008
          %v4010 = vand.u32 %v3319, 4294901760
          %4011 = vmatpush.msra.mxu0 %v4010
          %v4012 = vand.u32 %v3317, 4294901760
          %4013 = vmatpush.msra.mxu0 %v4012
          %v4014 = vand.u32 %v3315, 4294901760
          %4015 = vmatpush.msra.mxu0 %v4014
          %v4016 = vand.u32 %v3313, 4294901760
          %4017 = vmatpush.msra.mxu0 %v4016
          %v4018 = vand.u32 %v3311, 4294901760
          %4019 = vmatpush.msra.mxu0 %v4018
          %v4020 = vand.u32 %v3274, 4294901760
          %4021 = vmatmul.f32.gmra.mxu0 %v4020
          %v4022 = vpop.f32.mrf.mxu0
          %v4023 = vadd.f32 %v3986, %v4022
          %4024 = vdwg.mxu0
          %v4025 = vand.u32 %v3310, 4294901760
          %4026 = vmatpush.msra.mxu0 %v4025
          %v4027 = vand.u32 %v3308, 4294901760
          %4028 = vmatpush.msra.mxu0 %v4027
          %v4029 = vand.u32 %v3306, 4294901760
          %4030 = vmatpush.msra.mxu0 %v4029
          %v4031 = vand.u32 %v3304, 4294901760
          %4032 = vmatpush.msra.mxu0 %v4031
          %v4033 = vand.u32 %v3302, 4294901760
          %4034 = vmatpush.msra.mxu0 %v4033
          %v4035 = vand.u32 %v3300, 4294901760
          %4036 = vmatpush.msra.mxu0 %v4035
          %v4037 = vand.u32 %v3298, 4294901760
          %4038 = vmatpush.msra.mxu0 %v4037
          %v4039 = vand.u32 %v3296, 4294901760
          %4040 = vmatpush.msra.mxu0 %v4039
          %v4041 = vand.u32 %v3294, 4294901760
          %4042 = vmatpush.msra.mxu0 %v4041
          %v4043 = vand.u32 %v3292, 4294901760
          %4044 = vmatpush.msra.mxu0 %v4043
          %v4045 = vand.u32 %v3290, 4294901760
          %4046 = vmatpush.msra.mxu0 %v4045
          %v4047 = vand.u32 %v3288, 4294901760
          %4048 = vmatpush.msra.mxu0 %v4047
          %v4049 = vand.u32 %v3286, 4294901760
          %4050 = vmatpush.msra.mxu0 %v4049
          %v4051 = vand.u32 %v3284, 4294901760
          %4052 = vmatpush.msra.mxu0 %v4051
          %v4053 = vand.u32 %v3282, 4294901760
          %4054 = vmatpush.msra.mxu0 %v4053
          %v4055 = vand.u32 %v3280, 4294901760
          %4056 = vmatpush.msra.mxu0 %v4055
          %v4057 = vand.u32 %v3273, 4294901760
          %v4058 = vsub.f32 %v3273, %v4057
          %v4059 = vand.u32 %v4058, 4294901760
          %v4060 = vsub.f32 %v4058, %v4059
          %v4061 = vand.u32 %v4060, 4294901760
          %4062 = vmatmul.f32.gmra.mxu0 %v4061
          %v4063 = vpop.f32.mrf.mxu0
          %v4064 = vadd.f32 0.0, %v4063
          %4065 = vdwg.mxu0
          %v4066 = vand.u32 %v3310, 4294901760
          %v4067 = vsub.f32 %v3310, %v4066
          %v4068 = vand.u32 %v4067, 4294901760
          %v4069 = vsub.f32 %v4067, %v4068
          %v4070 = vand.u32 %v4069, 4294901760
          %4071 = vmatpush.msra.mxu0 %v4070
          %v4072 = vand.u32 %v3308, 4294901760
          %v4073 = vsub.f32 %v3308, %v4072
          %v4074 = vand.u32 %v4073, 4294901760
          %v4075 = vsub.f32 %v4073, %v4074
          %v4076 = vand.u32 %v4075, 4294901760
          %4077 = vmatpush.msra.mxu0 %v4076
          %v4078 = vand.u32 %v3306, 4294901760
          %v4079 = vsub.f32 %v3306, %v4078
          %v4080 = vand.u32 %v4079, 4294901760
          %v4081 = vsub.f32 %v4079, %v4080
          %v4082 = vand.u32 %v4081, 4294901760
          %4083 = vmatpush.msra.mxu0 %v4082
          %v4084 = vand.u32 %v3304, 4294901760
          %v4085 = vsub.f32 %v3304, %v4084
          %v4086 = vand.u32 %v4085, 4294901760
          %v4087 = vsub.f32 %v4085, %v4086
          %v4088 = vand.u32 %v4087, 4294901760
          %4089 = vmatpush.msra.mxu0 %v4088
          %v4090 = vand.u32 %v3302, 4294901760
          %v4091 = vsub.f32 %v3302, %v4090
          %v4092 = vand.u32 %v4091, 4294901760
          %v4093 = vsub.f32 %v4091, %v4092
          %v4094 = vand.u32 %v4093, 4294901760
          %4095 = vmatpush.msra.mxu0 %v4094
          %v4096 = vand.u32 %v3300, 4294901760
          %v4097 = vsub.f32 %v3300, %v4096
          %v4098 = vand.u32 %v4097, 4294901760
          %v4099 = vsub.f32 %v4097, %v4098
          %v4100 = vand.u32 %v4099, 4294901760
          %4101 = vmatpush.msra.mxu0 %v4100
          %v4102 = vand.u32 %v3298, 4294901760
          %v4103 = vsub.f32 %v3298, %v4102
          %v4104 = vand.u32 %v4103, 4294901760
          %v4105 = vsub.f32 %v4103, %v4104
          %v4106 = vand.u32 %v4105, 4294901760
          %4107 = vmatpush.msra.mxu0 %v4106
          %v4108 = vand.u32 %v3296, 4294901760
          %v4109 = vsub.f32 %v3296, %v4108
          %v4110 = vand.u32 %v4109, 4294901760
          %v4111 = vsub.f32 %v4109, %v4110
          %v4112 = vand.u32 %v4111, 4294901760
          %4113 = vmatpush.msra.mxu0 %v4112
          %v4114 = vand.u32 %v3294, 4294901760
          %v4115 = vsub.f32 %v3294, %v4114
          %v4116 = vand.u32 %v4115, 4294901760
          %v4117 = vsub.f32 %v4115, %v4116
          %v4118 = vand.u32 %v4117, 4294901760
          %4119 = vmatpush.msra.mxu0 %v4118
          %v4120 = vand.u32 %v3292, 4294901760
          %v4121 = vsub.f32 %v3292, %v4120
          %v4122 = vand.u32 %v4121, 4294901760
          %v4123 = vsub.f32 %v4121, %v4122
          %v4124 = vand.u32 %v4123, 4294901760
          %4125 = vmatpush.msra.mxu0 %v4124
          %v4126 = vand.u32 %v3290, 4294901760
          %v4127 = vsub.f32 %v3290, %v4126
          %v4128 = vand.u32 %v4127, 4294901760
          %v4129 = vsub.f32 %v4127, %v4128
          %v4130 = vand.u32 %v4129, 4294901760
          %4131 = vmatpush.msra.mxu0 %v4130
          %v4132 = vand.u32 %v3288, 4294901760
          %v4133 = vsub.f32 %v3288, %v4132
          %v4134 = vand.u32 %v4133, 4294901760
          %v4135 = vsub.f32 %v4133, %v4134
          %v4136 = vand.u32 %v4135, 4294901760
          %4137 = vmatpush.msra.mxu0 %v4136
          %v4138 = vand.u32 %v3286, 4294901760
          %v4139 = vsub.f32 %v3286, %v4138
          %v4140 = vand.u32 %v4139, 4294901760
          %v4141 = vsub.f32 %v4139, %v4140
          %v4142 = vand.u32 %v4141, 4294901760
          %4143 = vmatpush.msra.mxu0 %v4142
          %v4144 = vand.u32 %v3284, 4294901760
          %v4145 = vsub.f32 %v3284, %v4144
          %v4146 = vand.u32 %v4145, 4294901760
          %v4147 = vsub.f32 %v4145, %v4146
          %v4148 = vand.u32 %v4147, 4294901760
          %4149 = vmatpush.msra.mxu0 %v4148
          %v4150 = vand.u32 %v3282, 4294901760
          %v4151 = vsub.f32 %v3282, %v4150
          %v4152 = vand.u32 %v4151, 4294901760
          %v4153 = vsub.f32 %v4151, %v4152
          %v4154 = vand.u32 %v4153, 4294901760
          %4155 = vmatpush.msra.mxu0 %v4154
          %v4156 = vand.u32 %v3280, 4294901760
          %v4157 = vsub.f32 %v3280, %v4156
          %v4158 = vand.u32 %v4157, 4294901760
          %v4159 = vsub.f32 %v4157, %v4158
          %v4160 = vand.u32 %v4159, 4294901760
          %4161 = vmatpush.msra.mxu0 %v4160
          %v4162 = vand.u32 %v3273, 4294901760
          %4163 = vmatmul.f32.gmra.mxu0 %v4162
          %v4164 = vpop.f32.mrf.mxu0
          %v4165 = vadd.f32 %v4064, %v4164
          %4166 = vdwg.mxu0
          %v4167 = vand.u32 %v3310, 4294901760
          %v4168 = vsub.f32 %v3310, %v4167
          %4169 = vmatpush.msra.mxu0 %v4168
          %v4170 = vand.u32 %v3308, 4294901760
          %v4171 = vsub.f32 %v3308, %v4170
          %4172 = vmatpush.msra.mxu0 %v4171
          %v4173 = vand.u32 %v3306, 4294901760
          %v4174 = vsub.f32 %v3306, %v4173
          %4175 = vmatpush.msra.mxu0 %v4174
          %v4176 = vand.u32 %v3304, 4294901760
          %v4177 = vsub.f32 %v3304, %v4176
          %4178 = vmatpush.msra.mxu0 %v4177
          %v4179 = vand.u32 %v3302, 4294901760
          %v4180 = vsub.f32 %v3302, %v4179
          %4181 = vmatpush.msra.mxu0 %v4180
          %v4182 = vand.u32 %v3300, 4294901760
          %v4183 = vsub.f32 %v3300, %v4182
          %4184 = vmatpush.msra.mxu0 %v4183
          %v4185 = vand.u32 %v3298, 4294901760
          %v4186 = vsub.f32 %v3298, %v4185
          %4187 = vmatpush.msra.mxu0 %v4186
          %v4188 = vand.u32 %v3296, 4294901760
          %v4189 = vsub.f32 %v3296, %v4188
          %4190 = vmatpush.msra.mxu0 %v4189
          %v4191 = vand.u32 %v3294, 4294901760
          %v4192 = vsub.f32 %v3294, %v4191
          %4193 = vmatpush.msra.mxu0 %v4192
          %v4194 = vand.u32 %v3292, 4294901760
          %v4195 = vsub.f32 %v3292, %v4194
          %4196 = vmatpush.msra.mxu0 %v4195
          %v4197 = vand.u32 %v3290, 4294901760
          %v4198 = vsub.f32 %v3290, %v4197
          %4199 = vmatpush.msra.mxu0 %v4198
          %v4200 = vand.u32 %v3288, 4294901760
          %v4201 = vsub.f32 %v3288, %v4200
          %4202 = vmatpush.msra.mxu0 %v4201
          %v4203 = vand.u32 %v3286, 4294901760
          %v4204 = vsub.f32 %v3286, %v4203
          %4205 = vmatpush.msra.mxu0 %v4204
          %v4206 = vand.u32 %v3284, 4294901760
          %v4207 = vsub.f32 %v3284, %v4206
          %4208 = vmatpush.msra.mxu0 %v4207
          %v4209 = vand.u32 %v3282, 4294901760
          %v4210 = vsub.f32 %v3282, %v4209
          %4211 = vmatpush.msra.mxu0 %v4210
          %v4212 = vand.u32 %v3280, 4294901760
          %v4213 = vsub.f32 %v3280, %v4212
          %4214 = vmatpush.msra.mxu0 %v4213
          %v4215 = vand.u32 %v3273, 4294901760
          %v4216 = vsub.f32 %v3273, %v4215
          %4217 = vmatmul.f32.gmra.mxu0 %v4216
          %v4218 = vpop.f32.mrf.mxu0
          %v4219 = vadd.f32 %v4165, %v4218
          %4220 = vdwg.mxu0
          %v4221 = vand.u32 %v3310, 4294901760
          %4222 = vmatpush.msra.mxu0 %v4221
          %v4223 = vand.u32 %v3308, 4294901760
          %4224 = vmatpush.msra.mxu0 %v4223
          %v4225 = vand.u32 %v3306, 4294901760
          %4226 = vmatpush.msra.mxu0 %v4225
          %v4227 = vand.u32 %v3304, 4294901760
          %4228 = vmatpush.msra.mxu0 %v4227
          %v4229 = vand.u32 %v3302, 4294901760
          %4230 = vmatpush.msra.mxu0 %v4229
          %v4231 = vand.u32 %v3300, 4294901760
          %4232 = vmatpush.msra.mxu0 %v4231
          %v4233 = vand.u32 %v3298, 4294901760
          %4234 = vmatpush.msra.mxu0 %v4233
          %v4235 = vand.u32 %v3296, 4294901760
          %4236 = vmatpush.msra.mxu0 %v4235
          %v4237 = vand.u32 %v3294, 4294901760
          %4238 = vmatpush.msra.mxu0 %v4237
          %v4239 = vand.u32 %v3292, 4294901760
          %4240 = vmatpush.msra.mxu0 %v4239
          %v4241 = vand.u32 %v3290, 4294901760
          %4242 = vmatpush.msra.mxu0 %v4241
          %v4243 = vand.u32 %v3288, 4294901760
          %4244 = vmatpush.msra.mxu0 %v4243
          %v4245 = vand.u32 %v3286, 4294901760
          %4246 = vmatpush.msra.mxu0 %v4245
          %v4247 = vand.u32 %v3284, 4294901760
          %4248 = vmatpush.msra.mxu0 %v4247
          %v4249 = vand.u32 %v3282, 4294901760
          %4250 = vmatpush.msra.mxu0 %v4249
          %v4251 = vand.u32 %v3280, 4294901760
          %4252 = vmatpush.msra.mxu0 %v4251
          %v4253 = vand.u32 %v3273, 4294901760
          %v4254 = vsub.f32 %v3273, %v4253
          %v4255 = vand.u32 %v4254, 4294901760
          %4256 = vmatmul.f32.gmra.mxu0 %v4255
          %v4257 = vpop.f32.mrf.mxu0
          %v4258 = vadd.f32 %v4219, %v4257
          %4259 = vdwg.mxu0
          %v4260 = vand.u32 %v3310, 4294901760
          %v4261 = vsub.f32 %v3310, %v4260
          %v4262 = vand.u32 %v4261, 4294901760
          %4263 = vmatpush.msra.mxu0 %v4262
          %v4264 = vand.u32 %v3308, 4294901760
          %v4265 = vsub.f32 %v3308, %v4264
          %v4266 = vand.u32 %v4265, 4294901760
          %4267 = vmatpush.msra.mxu0 %v4266
          %v4268 = vand.u32 %v3306, 4294901760
          %v4269 = vsub.f32 %v3306, %v4268
          %v4270 = vand.u32 %v4269, 4294901760
          %4271 = vmatpush.msra.mxu0 %v4270
          %v4272 = vand.u32 %v3304, 4294901760
          %v4273 = vsub.f32 %v3304, %v4272
          %v4274 = vand.u32 %v4273, 4294901760
          %4275 = vmatpush.msra.mxu0 %v4274
          %v4276 = vand.u32 %v3302, 4294901760
          %v4277 = vsub.f32 %v3302, %v4276
          %v4278 = vand.u32 %v4277, 4294901760
          %4279 = vmatpush.msra.mxu0 %v4278
          %v4280 = vand.u32 %v3300, 4294901760
          %v4281 = vsub.f32 %v3300, %v4280
          %v4282 = vand.u32 %v4281, 4294901760
          %4283 = vmatpush.msra.mxu0 %v4282
          %v4284 = vand.u32 %v3298, 4294901760
          %v4285 = vsub.f32 %v3298, %v4284
          %v4286 = vand.u32 %v4285, 4294901760
          %4287 = vmatpush.msra.mxu0 %v4286
          %v4288 = vand.u32 %v3296, 4294901760
          %v4289 = vsub.f32 %v3296, %v4288
          %v4290 = vand.u32 %v4289, 4294901760
          %4291 = vmatpush.msra.mxu0 %v4290
          %v4292 = vand.u32 %v3294, 4294901760
          %v4293 = vsub.f32 %v3294, %v4292
          %v4294 = vand.u32 %v4293, 4294901760
          %4295 = vmatpush.msra.mxu0 %v4294
          %v4296 = vand.u32 %v3292, 4294901760
          %v4297 = vsub.f32 %v3292, %v4296
          %v4298 = vand.u32 %v4297, 4294901760
          %4299 = vmatpush.msra.mxu0 %v4298
          %v4300 = vand.u32 %v3290, 4294901760
          %v4301 = vsub.f32 %v3290, %v4300
          %v4302 = vand.u32 %v4301, 4294901760
          %4303 = vmatpush.msra.mxu0 %v4302
          %v4304 = vand.u32 %v3288, 4294901760
          %v4305 = vsub.f32 %v3288, %v4304
          %v4306 = vand.u32 %v4305, 4294901760
          %4307 = vmatpush.msra.mxu0 %v4306
          %v4308 = vand.u32 %v3286, 4294901760
          %v4309 = vsub.f32 %v3286, %v4308
          %v4310 = vand.u32 %v4309, 4294901760
          %4311 = vmatpush.msra.mxu0 %v4310
          %v4312 = vand.u32 %v3284, 4294901760
          %v4313 = vsub.f32 %v3284, %v4312
          %v4314 = vand.u32 %v4313, 4294901760
          %4315 = vmatpush.msra.mxu0 %v4314
          %v4316 = vand.u32 %v3282, 4294901760
          %v4317 = vsub.f32 %v3282, %v4316
          %v4318 = vand.u32 %v4317, 4294901760
          %4319 = vmatpush.msra.mxu0 %v4318
          %v4320 = vand.u32 %v3280, 4294901760
          %v4321 = vsub.f32 %v3280, %v4320
          %v4322 = vand.u32 %v4321, 4294901760
          %4323 = vmatpush.msra.mxu0 %v4322
          %v4324 = vand.u32 %v3273, 4294901760
          %4325 = vmatmul.f32.gmra.mxu0 %v4324
          %v4326 = vpop.f32.mrf.mxu0
          %v4327 = vadd.f32 %v4258, %v4326
          %4328 = vdwg.mxu0
          %v4329 = vand.u32 %v3310, 4294901760
          %4330 = vmatpush.msra.mxu0 %v4329
          %v4331 = vand.u32 %v3308, 4294901760
          %4332 = vmatpush.msra.mxu0 %v4331
          %v4333 = vand.u32 %v3306, 4294901760
          %4334 = vmatpush.msra.mxu0 %v4333
          %v4335 = vand.u32 %v3304, 4294901760
          %4336 = vmatpush.msra.mxu0 %v4335
          %v4337 = vand.u32 %v3302, 4294901760
          %4338 = vmatpush.msra.mxu0 %v4337
          %v4339 = vand.u32 %v3300, 4294901760
          %4340 = vmatpush.msra.mxu0 %v4339
          %v4341 = vand.u32 %v3298, 4294901760
          %4342 = vmatpush.msra.mxu0 %v4341
          %v4343 = vand.u32 %v3296, 4294901760
          %4344 = vmatpush.msra.mxu0 %v4343
          %v4345 = vand.u32 %v3294, 4294901760
          %4346 = vmatpush.msra.mxu0 %v4345
          %v4347 = vand.u32 %v3292, 4294901760
          %4348 = vmatpush.msra.mxu0 %v4347
          %v4349 = vand.u32 %v3290, 4294901760
          %4350 = vmatpush.msra.mxu0 %v4349
          %v4351 = vand.u32 %v3288, 4294901760
          %4352 = vmatpush.msra.mxu0 %v4351
          %v4353 = vand.u32 %v3286, 4294901760
          %4354 = vmatpush.msra.mxu0 %v4353
          %v4355 = vand.u32 %v3284, 4294901760
          %4356 = vmatpush.msra.mxu0 %v4355
          %v4357 = vand.u32 %v3282, 4294901760
          %4358 = vmatpush.msra.mxu0 %v4357
          %v4359 = vand.u32 %v3280, 4294901760
          %4360 = vmatpush.msra.mxu0 %v4359
          %v4361 = vand.u32 %v3273, 4294901760
          %4362 = vmatmul.f32.gmra.mxu0 %v4361
          %v4363 = vpop.f32.mrf.mxu0
          %v4364 = vadd.f32 %v4327, %v4363
          %4365 = vdwg.mxu0
          %v4366 = vand.u32 %v3342, 4294901760
          %4367 = vmatpush.msra.mxu0 %v4366
          %v4368 = vand.u32 %v3340, 4294901760
          %4369 = vmatpush.msra.mxu0 %v4368
          %v4370 = vand.u32 %v3338, 4294901760
          %4371 = vmatpush.msra.mxu0 %v4370
          %v4372 = vand.u32 %v3336, 4294901760
          %4373 = vmatpush.msra.mxu0 %v4372
          %v4374 = vand.u32 %v3334, 4294901760
          %4375 = vmatpush.msra.mxu0 %v4374
          %v4376 = vand.u32 %v3332, 4294901760
          %4377 = vmatpush.msra.mxu0 %v4376
          %v4378 = vand.u32 %v3330, 4294901760
          %4379 = vmatpush.msra.mxu0 %v4378
          %v4380 = vand.u32 %v3328, 4294901760
          %4381 = vmatpush.msra.mxu0 %v4380
          %v4382 = vand.u32 %v3326, 4294901760
          %4383 = vmatpush.msra.mxu0 %v4382
          %v4384 = vand.u32 %v3324, 4294901760
          %4385 = vmatpush.msra.mxu0 %v4384
          %v4386 = vand.u32 %v3322, 4294901760
          %4387 = vmatpush.msra.mxu0 %v4386
          %v4388 = vand.u32 %v3320, 4294901760
          %4389 = vmatpush.msra.mxu0 %v4388
          %v4390 = vand.u32 %v3318, 4294901760
          %4391 = vmatpush.msra.mxu0 %v4390
          %v4392 = vand.u32 %v3316, 4294901760
          %4393 = vmatpush.msra.mxu0 %v4392
          %v4394 = vand.u32 %v3314, 4294901760
          %4395 = vmatpush.msra.mxu0 %v4394
          %v4396 = vand.u32 %v3312, 4294901760
          %4397 = vmatpush.msra.mxu0 %v4396
          %v4398 = vand.u32 %v3274, 4294901760
          %v4399 = vsub.f32 %v3274, %v4398
          %v4400 = vand.u32 %v4399, 4294901760
          %v4401 = vsub.f32 %v4399, %v4400
          %v4402 = vand.u32 %v4401, 4294901760
          %4403 = vmatmul.f32.gmra.mxu0 %v4402
          %v4404 = vpop.f32.mrf.mxu0
          %v4405 = vadd.f32 %v4364, %v4404
          %4406 = vdwg.mxu0
          %v4407 = vand.u32 %v3342, 4294901760
          %v4408 = vsub.f32 %v3342, %v4407
          %v4409 = vand.u32 %v4408, 4294901760
          %v4410 = vsub.f32 %v4408, %v4409
          %v4411 = vand.u32 %v4410, 4294901760
          %4412 = vmatpush.msra.mxu0 %v4411
          %v4413 = vand.u32 %v3340, 4294901760
          %v4414 = vsub.f32 %v3340, %v4413
          %v4415 = vand.u32 %v4414, 4294901760
          %v4416 = vsub.f32 %v4414, %v4415
          %v4417 = vand.u32 %v4416, 4294901760
          %4418 = vmatpush.msra.mxu0 %v4417
          %v4419 = vand.u32 %v3338, 4294901760
          %v4420 = vsub.f32 %v3338, %v4419
          %v4421 = vand.u32 %v4420, 4294901760
          %v4422 = vsub.f32 %v4420, %v4421
          %v4423 = vand.u32 %v4422, 4294901760
          %4424 = vmatpush.msra.mxu0 %v4423
          %v4425 = vand.u32 %v3336, 4294901760
          %v4426 = vsub.f32 %v3336, %v4425
          %v4427 = vand.u32 %v4426, 4294901760
          %v4428 = vsub.f32 %v4426, %v4427
          %v4429 = vand.u32 %v4428, 4294901760
          %4430 = vmatpush.msra.mxu0 %v4429
          %v4431 = vand.u32 %v3334, 4294901760
          %v4432 = vsub.f32 %v3334, %v4431
          %v4433 = vand.u32 %v4432, 4294901760
          %v4434 = vsub.f32 %v4432, %v4433
          %v4435 = vand.u32 %v4434, 4294901760
          %4436 = vmatpush.msra.mxu0 %v4435
          %v4437 = vand.u32 %v3332, 4294901760
          %v4438 = vsub.f32 %v3332, %v4437
          %v4439 = vand.u32 %v4438, 4294901760
          %v4440 = vsub.f32 %v4438, %v4439
          %v4441 = vand.u32 %v4440, 4294901760
          %4442 = vmatpush.msra.mxu0 %v4441
          %v4443 = vand.u32 %v3330, 4294901760
          %v4444 = vsub.f32 %v3330, %v4443
          %v4445 = vand.u32 %v4444, 4294901760
          %v4446 = vsub.f32 %v4444, %v4445
          %v4447 = vand.u32 %v4446, 4294901760
          %4448 = vmatpush.msra.mxu0 %v4447
          %v4449 = vand.u32 %v3328, 4294901760
          %v4450 = vsub.f32 %v3328, %v4449
          %v4451 = vand.u32 %v4450, 4294901760
          %v4452 = vsub.f32 %v4450, %v4451
          %v4453 = vand.u32 %v4452, 4294901760
          %4454 = vmatpush.msra.mxu0 %v4453
          %v4455 = vand.u32 %v3326, 4294901760
          %v4456 = vsub.f32 %v3326, %v4455
          %v4457 = vand.u32 %v4456, 4294901760
          %v4458 = vsub.f32 %v4456, %v4457
          %v4459 = vand.u32 %v4458, 4294901760
          %4460 = vmatpush.msra.mxu0 %v4459
          %v4461 = vand.u32 %v3324, 4294901760
          %v4462 = vsub.f32 %v3324, %v4461
          %v4463 = vand.u32 %v4462, 4294901760
          %v4464 = vsub.f32 %v4462, %v4463
          %v4465 = vand.u32 %v4464, 4294901760
          %4466 = vmatpush.msra.mxu0 %v4465
          %v4467 = vand.u32 %v3322, 4294901760
          %v4468 = vsub.f32 %v3322, %v4467
          %v4469 = vand.u32 %v4468, 4294901760
          %v4470 = vsub.f32 %v4468, %v4469
          %v4471 = vand.u32 %v4470, 4294901760
          %4472 = vmatpush.msra.mxu0 %v4471
          %v4473 = vand.u32 %v3320, 4294901760
          %v4474 = vsub.f32 %v3320, %v4473
          %v4475 = vand.u32 %v4474, 4294901760
          %v4476 = vsub.f32 %v4474, %v4475
          %v4477 = vand.u32 %v4476, 4294901760
          %4478 = vmatpush.msra.mxu0 %v4477
          %v4479 = vand.u32 %v3318, 4294901760
          %v4480 = vsub.f32 %v3318, %v4479
          %v4481 = vand.u32 %v4480, 4294901760
          %v4482 = vsub.f32 %v4480, %v4481
          %v4483 = vand.u32 %v4482, 4294901760
          %4484 = vmatpush.msra.mxu0 %v4483
          %v4485 = vand.u32 %v3316, 4294901760
          %v4486 = vsub.f32 %v3316, %v4485
          %v4487 = vand.u32 %v4486, 4294901760
          %v4488 = vsub.f32 %v4486, %v4487
          %v4489 = vand.u32 %v4488, 4294901760
          %4490 = vmatpush.msra.mxu0 %v4489
          %v4491 = vand.u32 %v3314, 4294901760
          %v4492 = vsub.f32 %v3314, %v4491
          %v4493 = vand.u32 %v4492, 4294901760
          %v4494 = vsub.f32 %v4492, %v4493
          %v4495 = vand.u32 %v4494, 4294901760
          %4496 = vmatpush.msra.mxu0 %v4495
          %v4497 = vand.u32 %v3312, 4294901760
          %v4498 = vsub.f32 %v3312, %v4497
          %v4499 = vand.u32 %v4498, 4294901760
          %v4500 = vsub.f32 %v4498, %v4499
          %v4501 = vand.u32 %v4500, 4294901760
          %4502 = vmatpush.msra.mxu0 %v4501
          %v4503 = vand.u32 %v3274, 4294901760
          %4504 = vmatmul.f32.gmra.mxu0 %v4503
          %v4505 = vpop.f32.mrf.mxu0
          %v4506 = vadd.f32 %v4405, %v4505
          %4507 = vdwg.mxu0
          %v4508 = vand.u32 %v3342, 4294901760
          %v4509 = vsub.f32 %v3342, %v4508
          %4510 = vmatpush.msra.mxu0 %v4509
          %v4511 = vand.u32 %v3340, 4294901760
          %v4512 = vsub.f32 %v3340, %v4511
          %4513 = vmatpush.msra.mxu0 %v4512
          %v4514 = vand.u32 %v3338, 4294901760
          %v4515 = vsub.f32 %v3338, %v4514
          %4516 = vmatpush.msra.mxu0 %v4515
          %v4517 = vand.u32 %v3336, 4294901760
          %v4518 = vsub.f32 %v3336, %v4517
          %4519 = vmatpush.msra.mxu0 %v4518
          %v4520 = vand.u32 %v3334, 4294901760
          %v4521 = vsub.f32 %v3334, %v4520
          %4522 = vmatpush.msra.mxu0 %v4521
          %v4523 = vand.u32 %v3332, 4294901760
          %v4524 = vsub.f32 %v3332, %v4523
          %4525 = vmatpush.msra.mxu0 %v4524
          %v4526 = vand.u32 %v3330, 4294901760
          %v4527 = vsub.f32 %v3330, %v4526
          %4528 = vmatpush.msra.mxu0 %v4527
          %v4529 = vand.u32 %v3328, 4294901760
          %v4530 = vsub.f32 %v3328, %v4529
          %4531 = vmatpush.msra.mxu0 %v4530
          %v4532 = vand.u32 %v3326, 4294901760
          %v4533 = vsub.f32 %v3326, %v4532
          %4534 = vmatpush.msra.mxu0 %v4533
          %v4535 = vand.u32 %v3324, 4294901760
          %v4536 = vsub.f32 %v3324, %v4535
          %4537 = vmatpush.msra.mxu0 %v4536
          %v4538 = vand.u32 %v3322, 4294901760
          %v4539 = vsub.f32 %v3322, %v4538
          %4540 = vmatpush.msra.mxu0 %v4539
          %v4541 = vand.u32 %v3320, 4294901760
          %v4542 = vsub.f32 %v3320, %v4541
          %4543 = vmatpush.msra.mxu0 %v4542
          %v4544 = vand.u32 %v3318, 4294901760
          %v4545 = vsub.f32 %v3318, %v4544
          %4546 = vmatpush.msra.mxu0 %v4545
          %v4547 = vand.u32 %v3316, 4294901760
          %v4548 = vsub.f32 %v3316, %v4547
          %4549 = vmatpush.msra.mxu0 %v4548
          %v4550 = vand.u32 %v3314, 4294901760
          %v4551 = vsub.f32 %v3314, %v4550
          %4552 = vmatpush.msra.mxu0 %v4551
          %v4553 = vand.u32 %v3312, 4294901760
          %v4554 = vsub.f32 %v3312, %v4553
          %4555 = vmatpush.msra.mxu0 %v4554
          %v4556 = vand.u32 %v3274, 4294901760
          %v4557 = vsub.f32 %v3274, %v4556
          %4558 = vmatmul.f32.gmra.mxu0 %v4557
          %v4559 = vpop.f32.mrf.mxu0
          %v4560 = vadd.f32 %v4506, %v4559
          %4561 = vdwg.mxu0
          %v4562 = vand.u32 %v3342, 4294901760
          %4563 = vmatpush.msra.mxu0 %v4562
          %v4564 = vand.u32 %v3340, 4294901760
          %4565 = vmatpush.msra.mxu0 %v4564
          %v4566 = vand.u32 %v3338, 4294901760
          %4567 = vmatpush.msra.mxu0 %v4566
          %v4568 = vand.u32 %v3336, 4294901760
          %4569 = vmatpush.msra.mxu0 %v4568
          %v4570 = vand.u32 %v3334, 4294901760
          %4571 = vmatpush.msra.mxu0 %v4570
          %v4572 = vand.u32 %v3332, 4294901760
          %4573 = vmatpush.msra.mxu0 %v4572
          %v4574 = vand.u32 %v3330, 4294901760
          %4575 = vmatpush.msra.mxu0 %v4574
          %v4576 = vand.u32 %v3328, 4294901760
          %4577 = vmatpush.msra.mxu0 %v4576
          %v4578 = vand.u32 %v3326, 4294901760
          %4579 = vmatpush.msra.mxu0 %v4578
          %v4580 = vand.u32 %v3324, 4294901760
          %4581 = vmatpush.msra.mxu0 %v4580
          %v4582 = vand.u32 %v3322, 4294901760
          %4583 = vmatpush.msra.mxu0 %v4582
          %v4584 = vand.u32 %v3320, 4294901760
          %4585 = vmatpush.msra.mxu0 %v4584
          %v4586 = vand.u32 %v3318, 4294901760
          %4587 = vmatpush.msra.mxu0 %v4586
          %v4588 = vand.u32 %v3316, 4294901760
          %4589 = vmatpush.msra.mxu0 %v4588
          %v4590 = vand.u32 %v3314, 4294901760
          %4591 = vmatpush.msra.mxu0 %v4590
          %v4592 = vand.u32 %v3312, 4294901760
          %4593 = vmatpush.msra.mxu0 %v4592
          %v4594 = vand.u32 %v3274, 4294901760
          %v4595 = vsub.f32 %v3274, %v4594
          %v4596 = vand.u32 %v4595, 4294901760
          %4597 = vmatmul.f32.gmra.mxu0 %v4596
          %v4598 = vpop.f32.mrf.mxu0
          %v4599 = vadd.f32 %v4560, %v4598
          %4600 = vdwg.mxu0
          %v4601 = vand.u32 %v3342, 4294901760
          %v4602 = vsub.f32 %v3342, %v4601
          %v4603 = vand.u32 %v4602, 4294901760
          %4604 = vmatpush.msra.mxu0 %v4603
          %v4605 = vand.u32 %v3340, 4294901760
          %v4606 = vsub.f32 %v3340, %v4605
          %v4607 = vand.u32 %v4606, 4294901760
          %4608 = vmatpush.msra.mxu0 %v4607
          %v4609 = vand.u32 %v3338, 4294901760
          %v4610 = vsub.f32 %v3338, %v4609
          %v4611 = vand.u32 %v4610, 4294901760
          %4612 = vmatpush.msra.mxu0 %v4611
          %v4613 = vand.u32 %v3336, 4294901760
          %v4614 = vsub.f32 %v3336, %v4613
          %v4615 = vand.u32 %v4614, 4294901760
          %4616 = vmatpush.msra.mxu0 %v4615
          %v4617 = vand.u32 %v3334, 4294901760
          %v4618 = vsub.f32 %v3334, %v4617
          %v4619 = vand.u32 %v4618, 4294901760
          %4620 = vmatpush.msra.mxu0 %v4619
          %v4621 = vand.u32 %v3332, 4294901760
          %v4622 = vsub.f32 %v3332, %v4621
          %v4623 = vand.u32 %v4622, 4294901760
          %4624 = vmatpush.msra.mxu0 %v4623
          %v4625 = vand.u32 %v3330, 4294901760
          %v4626 = vsub.f32 %v3330, %v4625
          %v4627 = vand.u32 %v4626, 4294901760
          %4628 = vmatpush.msra.mxu0 %v4627
          %v4629 = vand.u32 %v3328, 4294901760
          %v4630 = vsub.f32 %v3328, %v4629
          %v4631 = vand.u32 %v4630, 4294901760
          %4632 = vmatpush.msra.mxu0 %v4631
          %v4633 = vand.u32 %v3326, 4294901760
          %v4634 = vsub.f32 %v3326, %v4633
          %v4635 = vand.u32 %v4634, 4294901760
          %4636 = vmatpush.msra.mxu0 %v4635
          %v4637 = vand.u32 %v3324, 4294901760
          %v4638 = vsub.f32 %v3324, %v4637
          %v4639 = vand.u32 %v4638, 4294901760
          %4640 = vmatpush.msra.mxu0 %v4639
          %v4641 = vand.u32 %v3322, 4294901760
          %v4642 = vsub.f32 %v3322, %v4641
          %v4643 = vand.u32 %v4642, 4294901760
          %4644 = vmatpush.msra.mxu0 %v4643
          %v4645 = vand.u32 %v3320, 4294901760
          %v4646 = vsub.f32 %v3320, %v4645
          %v4647 = vand.u32 %v4646, 4294901760
          %4648 = vmatpush.msra.mxu0 %v4647
          %v4649 = vand.u32 %v3318, 4294901760
          %v4650 = vsub.f32 %v3318, %v4649
          %v4651 = vand.u32 %v4650, 4294901760
          %4652 = vmatpush.msra.mxu0 %v4651
          %v4653 = vand.u32 %v3316, 4294901760
          %v4654 = vsub.f32 %v3316, %v4653
          %v4655 = vand.u32 %v4654, 4294901760
          %4656 = vmatpush.msra.mxu0 %v4655
          %v4657 = vand.u32 %v3314, 4294901760
          %v4658 = vsub.f32 %v3314, %v4657
          %v4659 = vand.u32 %v4658, 4294901760
          %4660 = vmatpush.msra.mxu0 %v4659
          %v4661 = vand.u32 %v3312, 4294901760
          %v4662 = vsub.f32 %v3312, %v4661
          %v4663 = vand.u32 %v4662, 4294901760
          %4664 = vmatpush.msra.mxu0 %v4663
          %v4665 = vand.u32 %v3274, 4294901760
          %4666 = vmatmul.f32.gmra.mxu0 %v4665
          %v4667 = vpop.f32.mrf.mxu0
          %v4668 = vadd.f32 %v4599, %v4667
          %4669 = vdwg.mxu0
          %v4670 = vand.u32 %v3342, 4294901760
          %4671 = vmatpush.msra.mxu0 %v4670
          %v4672 = vand.u32 %v3340, 4294901760
          %4673 = vmatpush.msra.mxu0 %v4672
          %v4674 = vand.u32 %v3338, 4294901760
          %4675 = vmatpush.msra.mxu0 %v4674
          %v4676 = vand.u32 %v3336, 4294901760
          %4677 = vmatpush.msra.mxu0 %v4676
          %v4678 = vand.u32 %v3334, 4294901760
          %4679 = vmatpush.msra.mxu0 %v4678
          %v4680 = vand.u32 %v3332, 4294901760
          %4681 = vmatpush.msra.mxu0 %v4680
          %v4682 = vand.u32 %v3330, 4294901760
          %4683 = vmatpush.msra.mxu0 %v4682
          %v4684 = vand.u32 %v3328, 4294901760
          %4685 = vmatpush.msra.mxu0 %v4684
          %v4686 = vand.u32 %v3326, 4294901760
          %4687 = vmatpush.msra.mxu0 %v4686
          %v4688 = vand.u32 %v3324, 4294901760
          %4689 = vmatpush.msra.mxu0 %v4688
          %v4690 = vand.u32 %v3322, 4294901760
          %4691 = vmatpush.msra.mxu0 %v4690
          %v4692 = vand.u32 %v3320, 4294901760
          %4693 = vmatpush.msra.mxu0 %v4692
          %v4694 = vand.u32 %v3318, 4294901760
          %4695 = vmatpush.msra.mxu0 %v4694
          %v4696 = vand.u32 %v3316, 4294901760
          %4697 = vmatpush.msra.mxu0 %v4696
          %v4698 = vand.u32 %v3314, 4294901760
          %4699 = vmatpush.msra.mxu0 %v4698
          %v4700 = vand.u32 %v3312, 4294901760
          %4701 = vmatpush.msra.mxu0 %v4700
          %v4702 = vand.u32 %v3274, 4294901760
          %4703 = vmatmul.f32.gmra.mxu0 %v4702
          %v4704 = vpop.f32.mrf.mxu0
          %v4705 = vadd.f32 %v4668, %v4704
          %4706 = vdwg.mxu0
          %vm4707 = vcmask 64512
          %v4709 = vsel %vm4707, %v3275, 0
          %4711 = vmatpush.msra.mxu0 0.0
          %4712 = vmatpush.msra.mxu0 0.0
          %4713 = vmatpush.msra.mxu0 0.0
          %4714 = vmatpush.msra.mxu0 0.0
          %4715 = vmatpush.msra.mxu0 0.0
          %4716 = vmatpush.msra.mxu0 0.0
          %4717 = vmatpush.msra.mxu0 0.0
          %4718 = vmatpush.msra.mxu0 0.0
          %4719 = vmatpush.msra.mxu0 0.0
          %4720 = vmatpush.msra.mxu0 0.0
          %4721 = vmatpush.msra.mxu0 0.0
          %4722 = vmatpush.msra.mxu0 0.0
          %4723 = vmatpush.msra.mxu0 0.0
          %4724 = vmatpush.msra.mxu0 0.0
          %4725 = vmatpush.msra.mxu0 0.0
          %v4726 = vand.u32 %v4023, 4294901760
          %4727 = vmatpush.msra.mxu0 %v4726
          %v4728 = vand.u32 %v4709, 4294901760
          %v4729 = vsub.f32 %v4709, %v4728
          %v4730 = vand.u32 %v4729, 4294901760
          %v4731 = vsub.f32 %v4729, %v4730
          %v4732 = vand.u32 %v4731, 4294901760
          %4733 = vmatmul.f32.gmra.mxu0 %v4732
          %v4734 = vpop.f32.mrf.mxu0
          %v4735 = vadd.f32 0.0, %v4734
          %4736 = vdwg.mxu0
          %4737 = vmatpush.msra.mxu0 0.0
          %4738 = vmatpush.msra.mxu0 0.0
          %4739 = vmatpush.msra.mxu0 0.0
          %4740 = vmatpush.msra.mxu0 0.0
          %4741 = vmatpush.msra.mxu0 0.0
          %4742 = vmatpush.msra.mxu0 0.0
          %4743 = vmatpush.msra.mxu0 0.0
          %4744 = vmatpush.msra.mxu0 0.0
          %4745 = vmatpush.msra.mxu0 0.0
          %4746 = vmatpush.msra.mxu0 0.0
          %4747 = vmatpush.msra.mxu0 0.0
          %4748 = vmatpush.msra.mxu0 0.0
          %4749 = vmatpush.msra.mxu0 0.0
          %4750 = vmatpush.msra.mxu0 0.0
          %4751 = vmatpush.msra.mxu0 0.0
          %v4752 = vand.u32 %v4023, 4294901760
          %v4753 = vsub.f32 %v4023, %v4752
          %v4754 = vand.u32 %v4753, 4294901760
          %v4755 = vsub.f32 %v4753, %v4754
          %v4756 = vand.u32 %v4755, 4294901760
          %4757 = vmatpush.msra.mxu0 %v4756
          %v4758 = vand.u32 %v4709, 4294901760
          %4759 = vmatmul.f32.gmra.mxu0 %v4758
          %v4760 = vpop.f32.mrf.mxu0
          %v4761 = vadd.f32 %v4735, %v4760
          %4762 = vdwg.mxu0
          %4763 = vmatpush.msra.mxu0 0.0
          %4764 = vmatpush.msra.mxu0 0.0
          %4765 = vmatpush.msra.mxu0 0.0
          %4766 = vmatpush.msra.mxu0 0.0
          %4767 = vmatpush.msra.mxu0 0.0
          %4768 = vmatpush.msra.mxu0 0.0
          %4769 = vmatpush.msra.mxu0 0.0
          %4770 = vmatpush.msra.mxu0 0.0
          %4771 = vmatpush.msra.mxu0 0.0
          %4772 = vmatpush.msra.mxu0 0.0
          %4773 = vmatpush.msra.mxu0 0.0
          %4774 = vmatpush.msra.mxu0 0.0
          %4775 = vmatpush.msra.mxu0 0.0
          %4776 = vmatpush.msra.mxu0 0.0
          %4777 = vmatpush.msra.mxu0 0.0
          %v4778 = vand.u32 %v4023, 4294901760
          %v4779 = vsub.f32 %v4023, %v4778
          %4780 = vmatpush.msra.mxu0 %v4779
          %v4781 = vand.u32 %v4709, 4294901760
          %v4782 = vsub.f32 %v4709, %v4781
          %4783 = vmatmul.f32.gmra.mxu0 %v4782
          %v4784 = vpop.f32.mrf.mxu0
          %v4785 = vadd.f32 %v4761, %v4784
          %4786 = vdwg.mxu0
          %4787 = vmatpush.msra.mxu0 0.0
          %4788 = vmatpush.msra.mxu0 0.0
          %4789 = vmatpush.msra.mxu0 0.0
          %4790 = vmatpush.msra.mxu0 0.0
          %4791 = vmatpush.msra.mxu0 0.0
          %4792 = vmatpush.msra.mxu0 0.0
          %4793 = vmatpush.msra.mxu0 0.0
          %4794 = vmatpush.msra.mxu0 0.0
          %4795 = vmatpush.msra.mxu0 0.0
          %4796 = vmatpush.msra.mxu0 0.0
          %4797 = vmatpush.msra.mxu0 0.0
          %4798 = vmatpush.msra.mxu0 0.0
          %4799 = vmatpush.msra.mxu0 0.0
          %4800 = vmatpush.msra.mxu0 0.0
          %4801 = vmatpush.msra.mxu0 0.0
          %v4802 = vand.u32 %v4023, 4294901760
          %4803 = vmatpush.msra.mxu0 %v4802
          %v4804 = vand.u32 %v4709, 4294901760
          %v4805 = vsub.f32 %v4709, %v4804
          %v4806 = vand.u32 %v4805, 4294901760
          %4807 = vmatmul.f32.gmra.mxu0 %v4806
          %v4808 = vpop.f32.mrf.mxu0
          %v4809 = vadd.f32 %v4785, %v4808
          %4810 = vdwg.mxu0
          %4811 = vmatpush.msra.mxu0 0.0
          %4812 = vmatpush.msra.mxu0 0.0
          %4813 = vmatpush.msra.mxu0 0.0
          %4814 = vmatpush.msra.mxu0 0.0
          %4815 = vmatpush.msra.mxu0 0.0
          %4816 = vmatpush.msra.mxu0 0.0
          %4817 = vmatpush.msra.mxu0 0.0
          %4818 = vmatpush.msra.mxu0 0.0
          %4819 = vmatpush.msra.mxu0 0.0
          %4820 = vmatpush.msra.mxu0 0.0
          %4821 = vmatpush.msra.mxu0 0.0
          %4822 = vmatpush.msra.mxu0 0.0
          %4823 = vmatpush.msra.mxu0 0.0
          %4824 = vmatpush.msra.mxu0 0.0
          %4825 = vmatpush.msra.mxu0 0.0
          %v4826 = vand.u32 %v4023, 4294901760
          %v4827 = vsub.f32 %v4023, %v4826
          %v4828 = vand.u32 %v4827, 4294901760
          %4829 = vmatpush.msra.mxu0 %v4828
          %v4830 = vand.u32 %v4709, 4294901760
          %4831 = vmatmul.f32.gmra.mxu0 %v4830
          %v4832 = vpop.f32.mrf.mxu0
          %v4833 = vadd.f32 %v4809, %v4832
          %4834 = vdwg.mxu0
          %4835 = vmatpush.msra.mxu0 0.0
          %4836 = vmatpush.msra.mxu0 0.0
          %4837 = vmatpush.msra.mxu0 0.0
          %4838 = vmatpush.msra.mxu0 0.0
          %4839 = vmatpush.msra.mxu0 0.0
          %4840 = vmatpush.msra.mxu0 0.0
          %4841 = vmatpush.msra.mxu0 0.0
          %4842 = vmatpush.msra.mxu0 0.0
          %4843 = vmatpush.msra.mxu0 0.0
          %4844 = vmatpush.msra.mxu0 0.0
          %4845 = vmatpush.msra.mxu0 0.0
          %4846 = vmatpush.msra.mxu0 0.0
          %4847 = vmatpush.msra.mxu0 0.0
          %4848 = vmatpush.msra.mxu0 0.0
          %4849 = vmatpush.msra.mxu0 0.0
          %v4850 = vand.u32 %v4023, 4294901760
          %4851 = vmatpush.msra.mxu0 %v4850
          %v4852 = vand.u32 %v4709, 4294901760
          %4853 = vmatmul.f32.gmra.mxu0 %v4852
          %v4854 = vpop.f32.mrf.mxu0
          %v4855 = vadd.f32 %v4833, %v4854
          %4856 = vdwg.mxu0
          %4857 = vmatpush.msra.mxu0 0.0
          %4858 = vmatpush.msra.mxu0 0.0
          %4859 = vmatpush.msra.mxu0 0.0
          %4860 = vmatpush.msra.mxu0 0.0
          %4861 = vmatpush.msra.mxu0 0.0
          %4862 = vmatpush.msra.mxu0 0.0
          %4863 = vmatpush.msra.mxu0 0.0
          %4864 = vmatpush.msra.mxu0 0.0
          %4865 = vmatpush.msra.mxu0 0.0
          %4866 = vmatpush.msra.mxu0 0.0
          %4867 = vmatpush.msra.mxu0 0.0
          %4868 = vmatpush.msra.mxu0 0.0
          %4869 = vmatpush.msra.mxu0 0.0
          %4870 = vmatpush.msra.mxu0 0.0
          %4871 = vmatpush.msra.mxu0 0.0
          %v4872 = vand.u32 %v4705, 4294901760
          %4873 = vmatpush.msra.mxu0 %v4872
          %v4874 = vand.u32 %v4709, 4294901760
          %v4875 = vsub.f32 %v4709, %v4874
          %v4876 = vand.u32 %v4875, 4294901760
          %v4877 = vsub.f32 %v4875, %v4876
          %v4878 = vand.u32 %v4877, 4294901760
          %4879 = vmatmul.f32.gmra.mxu0 %v4878
          %v4880 = vpop.f32.mrf.mxu0
          %v4881 = vadd.f32 0.0, %v4880
          %4882 = vdwg.mxu0
          %4883 = vmatpush.msra.mxu0 0.0
          %4884 = vmatpush.msra.mxu0 0.0
          %4885 = vmatpush.msra.mxu0 0.0
          %4886 = vmatpush.msra.mxu0 0.0
          %4887 = vmatpush.msra.mxu0 0.0
          %4888 = vmatpush.msra.mxu0 0.0
          %4889 = vmatpush.msra.mxu0 0.0
          %4890 = vmatpush.msra.mxu0 0.0
          %4891 = vmatpush.msra.mxu0 0.0
          %4892 = vmatpush.msra.mxu0 0.0
          %4893 = vmatpush.msra.mxu0 0.0
          %4894 = vmatpush.msra.mxu0 0.0
          %4895 = vmatpush.msra.mxu0 0.0
          %4896 = vmatpush.msra.mxu0 0.0
          %4897 = vmatpush.msra.mxu0 0.0
          %v4898 = vand.u32 %v4705, 4294901760
          %v4899 = vsub.f32 %v4705, %v4898
          %v4900 = vand.u32 %v4899, 4294901760
          %v4901 = vsub.f32 %v4899, %v4900
          %v4902 = vand.u32 %v4901, 4294901760
          %4903 = vmatpush.msra.mxu0 %v4902
          %v4904 = vand.u32 %v4709, 4294901760
          %4905 = vmatmul.f32.gmra.mxu0 %v4904
          %v4906 = vpop.f32.mrf.mxu0
          %v4907 = vadd.f32 %v4881, %v4906
          %4908 = vdwg.mxu0
          %4909 = vmatpush.msra.mxu0 0.0
          %4910 = vmatpush.msra.mxu0 0.0
          %4911 = vmatpush.msra.mxu0 0.0
          %4912 = vmatpush.msra.mxu0 0.0
          %4913 = vmatpush.msra.mxu0 0.0
          %4914 = vmatpush.msra.mxu0 0.0
          %4915 = vmatpush.msra.mxu0 0.0
          %4916 = vmatpush.msra.mxu0 0.0
          %4917 = vmatpush.msra.mxu0 0.0
          %4918 = vmatpush.msra.mxu0 0.0
          %4919 = vmatpush.msra.mxu0 0.0
          %4920 = vmatpush.msra.mxu0 0.0
          %4921 = vmatpush.msra.mxu0 0.0
          %4922 = vmatpush.msra.mxu0 0.0
          %4923 = vmatpush.msra.mxu0 0.0
          %v4924 = vand.u32 %v4705, 4294901760
          %v4925 = vsub.f32 %v4705, %v4924
          %4926 = vmatpush.msra.mxu0 %v4925
          %v4927 = vand.u32 %v4709, 4294901760
          %v4928 = vsub.f32 %v4709, %v4927
          %4929 = vmatmul.f32.gmra.mxu0 %v4928
          %v4930 = vpop.f32.mrf.mxu0
          %v4931 = vadd.f32 %v4907, %v4930
          %4932 = vdwg.mxu0
          %4933 = vmatpush.msra.mxu0 0.0
          %4934 = vmatpush.msra.mxu0 0.0
          %4935 = vmatpush.msra.mxu0 0.0
          %4936 = vmatpush.msra.mxu0 0.0
          %4937 = vmatpush.msra.mxu0 0.0
          %4938 = vmatpush.msra.mxu0 0.0
          %4939 = vmatpush.msra.mxu0 0.0
          %4940 = vmatpush.msra.mxu0 0.0
          %4941 = vmatpush.msra.mxu0 0.0
          %4942 = vmatpush.msra.mxu0 0.0
          %4943 = vmatpush.msra.mxu0 0.0
          %4944 = vmatpush.msra.mxu0 0.0
          %4945 = vmatpush.msra.mxu0 0.0
          %4946 = vmatpush.msra.mxu0 0.0
          %4947 = vmatpush.msra.mxu0 0.0
          %v4948 = vand.u32 %v4705, 4294901760
          %4949 = vmatpush.msra.mxu0 %v4948
          %v4950 = vand.u32 %v4709, 4294901760
          %v4951 = vsub.f32 %v4709, %v4950
          %v4952 = vand.u32 %v4951, 4294901760
          %4953 = vmatmul.f32.gmra.mxu0 %v4952
          %v4954 = vpop.f32.mrf.mxu0
          %v4955 = vadd.f32 %v4931, %v4954
          %4956 = vdwg.mxu0
          %4957 = vmatpush.msra.mxu0 0.0
          %4958 = vmatpush.msra.mxu0 0.0
          %4959 = vmatpush.msra.mxu0 0.0
          %4960 = vmatpush.msra.mxu0 0.0
          %4961 = vmatpush.msra.mxu0 0.0
          %4962 = vmatpush.msra.mxu0 0.0
          %4963 = vmatpush.msra.mxu0 0.0
          %4964 = vmatpush.msra.mxu0 0.0
          %4965 = vmatpush.msra.mxu0 0.0
          %4966 = vmatpush.msra.mxu0 0.0
          %4967 = vmatpush.msra.mxu0 0.0
          %4968 = vmatpush.msra.mxu0 0.0
          %4969 = vmatpush.msra.mxu0 0.0
          %4970 = vmatpush.msra.mxu0 0.0
          %4971 = vmatpush.msra.mxu0 0.0
          %v4972 = vand.u32 %v4705, 4294901760
          %v4973 = vsub.f32 %v4705, %v4972
          %v4974 = vand.u32 %v4973, 4294901760
          %4975 = vmatpush.msra.mxu0 %v4974
          %v4976 = vand.u32 %v4709, 4294901760
          %4977 = vmatmul.f32.gmra.mxu0 %v4976
          %v4978 = vpop.f32.mrf.mxu0
          %v4979 = vadd.f32 %v4955, %v4978
          %4980 = vdwg.mxu0
          %4981 = vmatpush.msra.mxu0 0.0
          %4982 = vmatpush.msra.mxu0 0.0
          %4983 = vmatpush.msra.mxu0 0.0
          %4984 = vmatpush.msra.mxu0 0.0
          %4985 = vmatpush.msra.mxu0 0.0
          %4986 = vmatpush.msra.mxu0 0.0
          %4987 = vmatpush.msra.mxu0 0.0
          %4988 = vmatpush.msra.mxu0 0.0
          %4989 = vmatpush.msra.mxu0 0.0
          %4990 = vmatpush.msra.mxu0 0.0
          %4991 = vmatpush.msra.mxu0 0.0
          %4992 = vmatpush.msra.mxu0 0.0
          %4993 = vmatpush.msra.mxu0 0.0
          %4994 = vmatpush.msra.mxu0 0.0
          %4995 = vmatpush.msra.mxu0 0.0
          %v4996 = vand.u32 %v4705, 4294901760
          %4997 = vmatpush.msra.mxu0 %v4996
          %v4998 = vand.u32 %v4709, 4294901760
          %4999 = vmatmul.f32.gmra.mxu0 %v4998
          %v5000 = vpop.f32.mrf.mxu0
          %v5001 = vadd.f32 %v4979, %v5000
          %5002 = vdwg.mxu0
          %5003 = vst [vmem:[%s282] sm:$0xff] %v4855
          %5004 = vst [vmem:[%s282 + $0x8] sm:$0xff] %v5001
        $region52: #{branch_1_fun.1} parent=39 // pred_fallthru
          _
        %p5005 = pneg %p300
        // Predicated region
        $region53: #{branch_1_fun.1} parent=39 // pred_check
          _
        $region54: #{branch_1_fun.1} parent=39 // pred_check_branch
          %5007 = sbr.rel (%p300) target = $region56
        $region55: #{branch_1_fun.1} parent=39 // pred_region
          %vm5008 = vcmask 64512
          %v5010 = vsel %vm5008, %v3275, 0
          %5012 = vmatpush.msra.mxu0 0.0
          %5013 = vmatpush.msra.mxu0 0.0
          %5014 = vmatpush.msra.mxu0 0.0
          %5015 = vmatpush.msra.mxu0 0.0
          %5016 = vmatpush.msra.mxu0 0.0
          %5017 = vmatpush.msra.mxu0 0.0
          %5018 = vmatpush.msra.mxu0 0.0
          %5019 = vmatpush.msra.mxu0 0.0
          %5020 = vmatpush.msra.mxu0 0.0
          %5021 = vmatpush.msra.mxu0 0.0
          %5022 = vmatpush.msra.mxu0 0.0
          %5023 = vmatpush.msra.mxu0 0.0
          %5024 = vmatpush.msra.mxu0 0.0
          %5025 = vmatpush.msra.mxu0 0.0
          %5026 = vmatpush.msra.mxu0 0.0
          %v5027 = vand.u32 %v3273, 4294901760
          %5028 = vmatpush.msra.mxu0 %v5027
          %v5029 = vand.u32 %v5010, 4294901760
          %v5030 = vsub.f32 %v5010, %v5029
          %v5031 = vand.u32 %v5030, 4294901760
          %v5032 = vsub.f32 %v5030, %v5031
          %v5033 = vand.u32 %v5032, 4294901760
          %5034 = vmatmul.f32.gmra.mxu0 %v5033
          %v5035 = vpop.f32.mrf.mxu0
          %v5036 = vadd.f32 0.0, %v5035
          %5037 = vdwg.mxu0
          %5038 = vmatpush.msra.mxu0 0.0
          %5039 = vmatpush.msra.mxu0 0.0
          %5040 = vmatpush.msra.mxu0 0.0
          %5041 = vmatpush.msra.mxu0 0.0
          %5042 = vmatpush.msra.mxu0 0.0
          %5043 = vmatpush.msra.mxu0 0.0
          %5044 = vmatpush.msra.mxu0 0.0
          %5045 = vmatpush.msra.mxu0 0.0
          %5046 = vmatpush.msra.mxu0 0.0
          %5047 = vmatpush.msra.mxu0 0.0
          %5048 = vmatpush.msra.mxu0 0.0
          %5049 = vmatpush.msra.mxu0 0.0
          %5050 = vmatpush.msra.mxu0 0.0
          %5051 = vmatpush.msra.mxu0 0.0
          %5052 = vmatpush.msra.mxu0 0.0
          %v5053 = vand.u32 %v3273, 4294901760
          %v5054 = vsub.f32 %v3273, %v5053
          %v5055 = vand.u32 %v5054, 4294901760
          %v5056 = vsub.f32 %v5054, %v5055
          %v5057 = vand.u32 %v5056, 4294901760
          %5058 = vmatpush.msra.mxu0 %v5057
          %v5059 = vand.u32 %v5010, 4294901760
          %5060 = vmatmul.f32.gmra.mxu0 %v5059
          %v5061 = vpop.f32.mrf.mxu0
          %v5062 = vadd.f32 %v5036, %v5061
          %5063 = vdwg.mxu0
          %5064 = vmatpush.msra.mxu0 0.0
          %5065 = vmatpush.msra.mxu0 0.0
          %5066 = vmatpush.msra.mxu0 0.0
          %5067 = vmatpush.msra.mxu0 0.0
          %5068 = vmatpush.msra.mxu0 0.0
          %5069 = vmatpush.msra.mxu0 0.0
          %5070 = vmatpush.msra.mxu0 0.0
          %5071 = vmatpush.msra.mxu0 0.0
          %5072 = vmatpush.msra.mxu0 0.0
          %5073 = vmatpush.msra.mxu0 0.0
          %5074 = vmatpush.msra.mxu0 0.0
          %5075 = vmatpush.msra.mxu0 0.0
          %5076 = vmatpush.msra.mxu0 0.0
          %5077 = vmatpush.msra.mxu0 0.0
          %5078 = vmatpush.msra.mxu0 0.0
          %v5079 = vand.u32 %v3273, 4294901760
          %v5080 = vsub.f32 %v3273, %v5079
          %5081 = vmatpush.msra.mxu0 %v5080
          %v5082 = vand.u32 %v5010, 4294901760
          %v5083 = vsub.f32 %v5010, %v5082
          %5084 = vmatmul.f32.gmra.mxu0 %v5083
          %v5085 = vpop.f32.mrf.mxu0
          %v5086 = vadd.f32 %v5062, %v5085
          %5087 = vdwg.mxu0
          %5088 = vmatpush.msra.mxu0 0.0
          %5089 = vmatpush.msra.mxu0 0.0
          %5090 = vmatpush.msra.mxu0 0.0
          %5091 = vmatpush.msra.mxu0 0.0
          %5092 = vmatpush.msra.mxu0 0.0
          %5093 = vmatpush.msra.mxu0 0.0
          %5094 = vmatpush.msra.mxu0 0.0
          %5095 = vmatpush.msra.mxu0 0.0
          %5096 = vmatpush.msra.mxu0 0.0
          %5097 = vmatpush.msra.mxu0 0.0
          %5098 = vmatpush.msra.mxu0 0.0
          %5099 = vmatpush.msra.mxu0 0.0
          %5100 = vmatpush.msra.mxu0 0.0
          %5101 = vmatpush.msra.mxu0 0.0
          %5102 = vmatpush.msra.mxu0 0.0
          %v5103 = vand.u32 %v3273, 4294901760
          %5104 = vmatpush.msra.mxu0 %v5103
          %v5105 = vand.u32 %v5010, 4294901760
          %v5106 = vsub.f32 %v5010, %v5105
          %v5107 = vand.u32 %v5106, 4294901760
          %5108 = vmatmul.f32.gmra.mxu0 %v5107
          %v5109 = vpop.f32.mrf.mxu0
          %v5110 = vadd.f32 %v5086, %v5109
          %5111 = vdwg.mxu0
          %5112 = vmatpush.msra.mxu0 0.0
          %5113 = vmatpush.msra.mxu0 0.0
          %5114 = vmatpush.msra.mxu0 0.0
          %5115 = vmatpush.msra.mxu0 0.0
          %5116 = vmatpush.msra.mxu0 0.0
          %5117 = vmatpush.msra.mxu0 0.0
          %5118 = vmatpush.msra.mxu0 0.0
          %5119 = vmatpush.msra.mxu0 0.0
          %5120 = vmatpush.msra.mxu0 0.0
          %5121 = vmatpush.msra.mxu0 0.0
          %5122 = vmatpush.msra.mxu0 0.0
          %5123 = vmatpush.msra.mxu0 0.0
          %5124 = vmatpush.msra.mxu0 0.0
          %5125 = vmatpush.msra.mxu0 0.0
          %5126 = vmatpush.msra.mxu0 0.0
          %v5127 = vand.u32 %v3273, 4294901760
          %v5128 = vsub.f32 %v3273, %v5127
          %v5129 = vand.u32 %v5128, 4294901760
          %5130 = vmatpush.msra.mxu0 %v5129
          %v5131 = vand.u32 %v5010, 4294901760
          %5132 = vmatmul.f32.gmra.mxu0 %v5131
          %v5133 = vpop.f32.mrf.mxu0
          %v5134 = vadd.f32 %v5110, %v5133
          %5135 = vdwg.mxu0
          %5136 = vmatpush.msra.mxu0 0.0
          %5137 = vmatpush.msra.mxu0 0.0
          %5138 = vmatpush.msra.mxu0 0.0
          %5139 = vmatpush.msra.mxu0 0.0
          %5140 = vmatpush.msra.mxu0 0.0
          %5141 = vmatpush.msra.mxu0 0.0
          %5142 = vmatpush.msra.mxu0 0.0
          %5143 = vmatpush.msra.mxu0 0.0
          %5144 = vmatpush.msra.mxu0 0.0
          %5145 = vmatpush.msra.mxu0 0.0
          %5146 = vmatpush.msra.mxu0 0.0
          %5147 = vmatpush.msra.mxu0 0.0
          %5148 = vmatpush.msra.mxu0 0.0
          %5149 = vmatpush.msra.mxu0 0.0
          %5150 = vmatpush.msra.mxu0 0.0
          %v5151 = vand.u32 %v3273, 4294901760
          %5152 = vmatpush.msra.mxu0 %v5151
          %v5153 = vand.u32 %v5010, 4294901760
          %5154 = vmatmul.f32.gmra.mxu0 %v5153
          %v5155 = vpop.f32.mrf.mxu0
          %v5156 = vadd.f32 %v5134, %v5155
          %5157 = vdwg.mxu0
          %5158 = vmatpush.msra.mxu0 0.0
          %5159 = vmatpush.msra.mxu0 0.0
          %5160 = vmatpush.msra.mxu0 0.0
          %5161 = vmatpush.msra.mxu0 0.0
          %5162 = vmatpush.msra.mxu0 0.0
          %5163 = vmatpush.msra.mxu0 0.0
          %5164 = vmatpush.msra.mxu0 0.0
          %5165 = vmatpush.msra.mxu0 0.0
          %5166 = vmatpush.msra.mxu0 0.0
          %5167 = vmatpush.msra.mxu0 0.0
          %5168 = vmatpush.msra.mxu0 0.0
          %5169 = vmatpush.msra.mxu0 0.0
          %5170 = vmatpush.msra.mxu0 0.0
          %5171 = vmatpush.msra.mxu0 0.0
          %5172 = vmatpush.msra.mxu0 0.0
          %v5173 = vand.u32 %v3274, 4294901760
          %5174 = vmatpush.msra.mxu0 %v5173
          %v5175 = vand.u32 %v5010, 4294901760
          %v5176 = vsub.f32 %v5010, %v5175
          %v5177 = vand.u32 %v5176, 4294901760
          %v5178 = vsub.f32 %v5176, %v5177
          %v5179 = vand.u32 %v5178, 4294901760
          %5180 = vmatmul.f32.gmra.mxu0 %v5179
          %v5181 = vpop.f32.mrf.mxu0
          %v5182 = vadd.f32 0.0, %v5181
          %5183 = vdwg.mxu0
          %5184 = vmatpush.msra.mxu0 0.0
          %5185 = vmatpush.msra.mxu0 0.0
          %5186 = vmatpush.msra.mxu0 0.0
          %5187 = vmatpush.msra.mxu0 0.0
          %5188 = vmatpush.msra.mxu0 0.0
          %5189 = vmatpush.msra.mxu0 0.0
          %5190 = vmatpush.msra.mxu0 0.0
          %5191 = vmatpush.msra.mxu0 0.0
          %5192 = vmatpush.msra.mxu0 0.0
          %5193 = vmatpush.msra.mxu0 0.0
          %5194 = vmatpush.msra.mxu0 0.0
          %5195 = vmatpush.msra.mxu0 0.0
          %5196 = vmatpush.msra.mxu0 0.0
          %5197 = vmatpush.msra.mxu0 0.0
          %5198 = vmatpush.msra.mxu0 0.0
          %v5199 = vand.u32 %v3274, 4294901760
          %v5200 = vsub.f32 %v3274, %v5199
          %v5201 = vand.u32 %v5200, 4294901760
          %v5202 = vsub.f32 %v5200, %v5201
          %v5203 = vand.u32 %v5202, 4294901760
          %5204 = vmatpush.msra.mxu0 %v5203
          %v5205 = vand.u32 %v5010, 4294901760
          %5206 = vmatmul.f32.gmra.mxu0 %v5205
          %v5207 = vpop.f32.mrf.mxu0
          %v5208 = vadd.f32 %v5182, %v5207
          %5209 = vdwg.mxu0
          %5210 = vmatpush.msra.mxu0 0.0
          %5211 = vmatpush.msra.mxu0 0.0
          %5212 = vmatpush.msra.mxu0 0.0
          %5213 = vmatpush.msra.mxu0 0.0
          %5214 = vmatpush.msra.mxu0 0.0
          %5215 = vmatpush.msra.mxu0 0.0
          %5216 = vmatpush.msra.mxu0 0.0
          %5217 = vmatpush.msra.mxu0 0.0
          %5218 = vmatpush.msra.mxu0 0.0
          %5219 = vmatpush.msra.mxu0 0.0
          %5220 = vmatpush.msra.mxu0 0.0
          %5221 = vmatpush.msra.mxu0 0.0
          %5222 = vmatpush.msra.mxu0 0.0
          %5223 = vmatpush.msra.mxu0 0.0
          %5224 = vmatpush.msra.mxu0 0.0
          %v5225 = vand.u32 %v3274, 4294901760
          %v5226 = vsub.f32 %v3274, %v5225
          %5227 = vmatpush.msra.mxu0 %v5226
          %v5228 = vand.u32 %v5010, 4294901760
          %v5229 = vsub.f32 %v5010, %v5228
          %5230 = vmatmul.f32.gmra.mxu0 %v5229
          %v5231 = vpop.f32.mrf.mxu0
          %v5232 = vadd.f32 %v5208, %v5231
          %5233 = vdwg.mxu0
          %5234 = vmatpush.msra.mxu0 0.0
          %5235 = vmatpush.msra.mxu0 0.0
          %5236 = vmatpush.msra.mxu0 0.0
          %5237 = vmatpush.msra.mxu0 0.0
          %5238 = vmatpush.msra.mxu0 0.0
          %5239 = vmatpush.msra.mxu0 0.0
          %5240 = vmatpush.msra.mxu0 0.0
          %5241 = vmatpush.msra.mxu0 0.0
          %5242 = vmatpush.msra.mxu0 0.0
          %5243 = vmatpush.msra.mxu0 0.0
          %5244 = vmatpush.msra.mxu0 0.0
          %5245 = vmatpush.msra.mxu0 0.0
          %5246 = vmatpush.msra.mxu0 0.0
          %5247 = vmatpush.msra.mxu0 0.0
          %5248 = vmatpush.msra.mxu0 0.0
          %v5249 = vand.u32 %v3274, 4294901760
          %5250 = vmatpush.msra.mxu0 %v5249
          %v5251 = vand.u32 %v5010, 4294901760
          %v5252 = vsub.f32 %v5010, %v5251
          %v5253 = vand.u32 %v5252, 4294901760
          %5254 = vmatmul.f32.gmra.mxu0 %v5253
          %v5255 = vpop.f32.mrf.mxu0
          %v5256 = vadd.f32 %v5232, %v5255
          %5257 = vdwg.mxu0
          %5258 = vmatpush.msra.mxu0 0.0
          %5259 = vmatpush.msra.mxu0 0.0
          %5260 = vmatpush.msra.mxu0 0.0
          %5261 = vmatpush.msra.mxu0 0.0
          %5262 = vmatpush.msra.mxu0 0.0
          %5263 = vmatpush.msra.mxu0 0.0
          %5264 = vmatpush.msra.mxu0 0.0
          %5265 = vmatpush.msra.mxu0 0.0
          %5266 = vmatpush.msra.mxu0 0.0
          %5267 = vmatpush.msra.mxu0 0.0
          %5268 = vmatpush.msra.mxu0 0.0
          %5269 = vmatpush.msra.mxu0 0.0
          %5270 = vmatpush.msra.mxu0 0.0
          %5271 = vmatpush.msra.mxu0 0.0
          %5272 = vmatpush.msra.mxu0 0.0
          %v5273 = vand.u32 %v3274, 4294901760
          %v5274 = vsub.f32 %v3274, %v5273
          %v5275 = vand.u32 %v5274, 4294901760
          %5276 = vmatpush.msra.mxu0 %v5275
          %v5277 = vand.u32 %v5010, 4294901760
          %5278 = vmatmul.f32.gmra.mxu0 %v5277
          %v5279 = vpop.f32.mrf.mxu0
          %v5280 = vadd.f32 %v5256, %v5279
          %5281 = vdwg.mxu0
          %5282 = vmatpush.msra.mxu0 0.0
          %5283 = vmatpush.msra.mxu0 0.0
          %5284 = vmatpush.msra.mxu0 0.0
          %5285 = vmatpush.msra.mxu0 0.0
          %5286 = vmatpush.msra.mxu0 0.0
          %5287 = vmatpush.msra.mxu0 0.0
          %5288 = vmatpush.msra.mxu0 0.0
          %5289 = vmatpush.msra.mxu0 0.0
          %5290 = vmatpush.msra.mxu0 0.0
          %5291 = vmatpush.msra.mxu0 0.0
          %5292 = vmatpush.msra.mxu0 0.0
          %5293 = vmatpush.msra.mxu0 0.0
          %5294 = vmatpush.msra.mxu0 0.0
          %5295 = vmatpush.msra.mxu0 0.0
          %5296 = vmatpush.msra.mxu0 0.0
          %v5297 = vand.u32 %v3274, 4294901760
          %5298 = vmatpush.msra.mxu0 %v5297
          %v5299 = vand.u32 %v5010, 4294901760
          %5300 = vmatmul.f32.gmra.mxu0 %v5299
          %v5301 = vpop.f32.mrf.mxu0
          %v5302 = vadd.f32 %v5280, %v5301
          %5303 = vdwg.mxu0
          %5304 = vst [vmem:[%s282] sm:$0xff] %v5156
          %5305 = vst [vmem:[%s282 + $0x8] sm:$0xff] %v5302
        $region56: #{branch_1_fun.1} parent=39 // pred_fallthru
          _
        %s5306 = sand.u32 %s156, 1
        %s5307 = scalar_lea.sflag [#allocation5], %s5306
        %s5308 = sand.u32 %s156, 1
        %s5309 = smul.addr %s5308, 64
        %s5310 = scalar_lea.vmem [#allocation4], %s5309
        %s5311 = sand.u32 %s182, 1
        %s5312 = scalar_lea.sflag [#allocation7], %s5311
        %s5313 = sand.u32 %s182, 1
        %s5314 = smul.addr %s5313, 16
        %s5315 = scalar_lea.vmem [#allocation6], %s5314
        // Predicated region
        $region57: #{branch_1_fun.1} parent=39 // pred_check
          %p5316 = pneg %p166
        $region58: #{branch_1_fun.1} parent=39 // pred_check_branch
          %5318 = sbr.rel (%p5316) target = $region60
        $region59: #{branch_1_fun.1} parent=39 // pred_region
          %s5319 = smul.u32 4, %s33
          %5321 = vsyncadd %s5307, 0
          %s5322 = smul.addr %s5319, 2
          %s5323 = smul.addr %s5322, 8
          %s5324 = scalar_lea.hbm %s6, %s5323
          %s5325 = sshll.u32 %s5310, 4
          %s5326 = int_to_ptr.vmem [resolvable:$true] %s5325
          %s5327 = sshll.u32 %s5324, 4
          %s5328 = int_to_ptr.hbm [resolvable:$true] %s5327
          %5333 = dma.vmem_to_hbm [thread:$0]  %s5326, 1024, %s5328, %s5307, 256, 256, 16
        $region60: #{branch_1_fun.1} parent=39 // pred_fallthru
          _
        // Predicated region
        $region61: #{branch_1_fun.1} parent=39 // pred_check
          %p5334 = pneg %p192
        $region62: #{branch_1_fun.1} parent=39 // pred_check_branch
          %5336 = sbr.rel (%p5334) target = $region64
        $region63: #{branch_1_fun.1} parent=39 // pred_region
          %5338 = vsyncadd %s5312, 0
          %s5339 = smul.addr %s33, 2
          %s5340 = smul.addr %s5339, 8
          %s5341 = scalar_lea.hbm %s7, %s5340
          %s5343 = sshll.u32 %s5315, 4
          %s5344 = int_to_ptr.vmem [resolvable:$true] %s5343
          %s5345 = sshll.u32 %s5341, 4
          %s5346 = int_to_ptr.hbm [resolvable:$true] %s5345
          %5348 = dma.vmem_to_hbm [thread:$0]  %s5344, 256, %s5346, %s5312
        $region64: #{branch_1_fun.1} parent=39 // pred_fallthru
          _
      $region40: #{branch_1_fun.1} parent=5 // pred_fallthru
        _
      %p5349 = scmp.le.s32.totalorder 2, %s28
      // Predicated region
      $region65: #{branch_1_fun.1} parent=5 // pred_check
        %p5350 = pneg %p5349
      $region66: #{branch_1_fun.1} parent=5 // pred_check_branch
        %5352 = sbr.rel (%p5350) target = $region68
      $region67: #{branch_1_fun.1} parent=5 // pred_region
        %s5353 = ssub.s32 %s28, 2
        // Predicated region
        $region69: #{branch_1_fun.1} parent=67 // pred_check
          %p5354 = pneg %p172
        $region70: #{branch_1_fun.1} parent=67 // pred_check_branch
          %5356 = sbr.rel (%p5354) target = $region72
        $region71: #{branch_1_fun.1} parent=67 // pred_region
          %s5357 = sand.u32 %s157, 1
          %s5358 = scalar_lea.sflag [#allocation5], %s5357
          %s5359 = sand.u32 %s157, 1
          %s5360 = smul.addr %s5359, 64
          %s5361 = scalar_lea.vmem [#allocation4], %s5360
          %5363 = dma.done %s5358, 1024
        $region72: #{branch_1_fun.1} parent=67 // pred_fallthru
          _
        // Predicated region
        $region73: #{branch_1_fun.1} parent=67 // pred_check
          %p5364 = pneg %p198
        $region74: #{branch_1_fun.1} parent=67 // pred_check_branch
          %5366 = sbr.rel (%p5364) target = $region76
        $region75: #{branch_1_fun.1} parent=67 // pred_region
          %s5367 = sand.u32 %s183, 1
          %s5368 = scalar_lea.sflag [#allocation7], %s5367
          %s5369 = sand.u32 %s183, 1
          %s5370 = smul.addr %s5369, 16
          %s5371 = scalar_lea.vmem [#allocation6], %s5370
          %5373 = dma.done %s5368, 256
        $region76: #{branch_1_fun.1} parent=67 // pred_fallthru
          _
      $region68: #{branch_1_fun.1} parent=5 // pred_fallthru
        _
    $region6: #{branch_1_fun.1} parent=1 // loop_footer
      %s32 = sadd.s32 1, %s28
    $region7: #{branch_1_fun.1} parent=1 // loop_footer_branch
      %27 = sbr.rel target = $region3
    $region8: #{branch_1_fun.1} parent=1 // loop_exit
      _
    %5374 = vsyncpa [#allocation5], 1
    %s5375 = scalar_lea.sflag [#allocation5], 1
    %5376 = vsyncpa %s5375, 1
    %5377 = vsyncpa [#allocation7], 1
    %s5378 = scalar_lea.sflag [#allocation7], 1
    %5379 = vsyncpa %s5378, 1

</llo_original>
